<compile_context>
chip_gen: v7x
topology: tpu7x:2x2x1
jax: 0.10.0
libtpu: 0.0.40
codegen_flags: <defaults>
</compile_context>

<pallas_src>
import functools
import math

import jax
import jax.numpy as jnp
from jax import lax
from jax.experimental import pallas as pl
from jax.experimental.pallas import tpu as pltpu

EPS = 1e-12      # BERT LayerNorm eps
LANE = 128       # TPU lane width
SUBLANE = 8      # TPU sublane width

# row layout of the packed [N_VEC, Hp] bias / LayerNorm table
ROW_LN_E_G, ROW_LN_E_B = 0, 1
ROW_BQ, ROW_BK, ROW_BV, ROW_BO = 2, 3, 4, 5
ROW_LN1_G, ROW_LN1_B = 6, 7
ROW_B2 = 8
ROW_LN2_G, ROW_LN2_B = 9, 10
ROW_BP = 11
N_VEC = 12


def _rup(n, m):
    return ((n + m - 1) // m) * m


def _pad_to(x, shape):
    """Zero-pad x (trailing side of each dim) up to `shape`."""
    pads = [(0, t - s) for s, t in zip(x.shape, shape)]
    if all(p == (0, 0) for p in pads):
        return x
    return jnp.pad(x, pads)


def _layernorm_padded(x, g, b, n_real):
    # x: [rows, H_pad] f32. Padded lanes of x / g / b are exactly zero, so the
    # moments computed with the *real* H are exact and padded lanes stay zero.
    s1 = jnp.sum(x, axis=-1, keepdims=True)
    s2 = jnp.sum(x * x, axis=-1, keepdims=True)
    mu = s1 / n_real
    var = s2 / n_real - mu * mu
    return (x - mu) * lax.rsqrt(var + EPS) * g + b


# ---------------------------------------------------------------------------
# Fused kernel: encoder layer + pooler + concat-classifier, Bt sequences / step
# ---------------------------------------------------------------------------
def fused_kernel(h_real,
                 emb_ref, mask_ref, lab_ref,
                 vec_ref, b1_ref, bc_ref,
                 wq_ref, wk_ref, wv_ref, wo_ref,
                 w1_ref, w2_ref, wp_ref, wch_ref, wcl_ref,
                 out_ref):
    f32, bf16 = jnp.float32, jnp.bfloat16
    bt, sp, hp = emb_ref.shape
    r = bt * sp

    # packed LN / bias rows (static Ref slices are free)
    ln_e_g = vec_ref[ROW_LN_E_G:ROW_LN_E_G + 1, :]
    ln_e_b = vec_ref[ROW_LN_E_B:ROW_LN_E_B + 1, :]
    bq = vec_ref[ROW_BQ:ROW_BQ + 1, :]
    bk = vec_ref[ROW_BK:ROW_BK + 1, :]
    bv = vec_ref[ROW_BV:ROW_BV + 1, :]
    bo = vec_ref[ROW_BO:ROW_BO + 1, :]
    ln1_g = vec_ref[ROW_LN1_G:ROW_LN1_G + 1, :]
    ln1_b = vec_ref[ROW_LN1_B:ROW_LN1_B + 1, :]
    b2 = vec_ref[ROW_B2:ROW_B2 + 1, :]
    ln2_g = vec_ref[ROW_LN2_G:ROW_LN2_G + 1, :]
    ln2_b = vec_ref[ROW_LN2_B:ROW_LN2_B + 1, :]
    bp = vec_ref[ROW_BP:ROW_BP + 1, :]

    # --- embedding LayerNorm on flattened [Bt*Sp, Hp] rows (f32, exact) ---
    x = emb_ref[...].reshape(r, hp)
    x = _layernorm_padded(x, ln_e_g, ln_e_b, h_real)

    # --- self-attention (single-head stand-in); bf16 MXU operands, f32 acc ---
    xb = x.astype(bf16)
    q = jnp.dot(xb, wq_ref[...], preferred_element_type=f32) + bq   # 1/sqrt(H) pre-folded
    k = jnp.dot(xb, wk_ref[...], preferred_element_type=f32) + bk
    v = jnp.dot(xb, wv_ref[...], preferred_element_type=f32) + bv

    s = jnp.einsum('bqd,bkd->bqk',
                   q.reshape(bt, sp, hp).astype(bf16),
                   k.reshape(bt, sp, hp).astype(bf16),
                   preferred_element_type=f32)                       # [Bt, Sp, Sp]
    s = s + mask_ref[...]                                            # [Bt, 1, Sp] broadcast
    s = s - jnp.max(s, axis=-1, keepdims=True)
    p = jnp.exp(s)
    p = p * pl.reciprocal(jnp.sum(p, axis=-1, keepdims=True), approx=True)

    ctx = jnp.einsum('bqk,bkd->bqd',
                     p.astype(bf16),
                     v.reshape(bt, sp, hp).astype(bf16),
                     preferred_element_type=f32).reshape(r, hp)
    attn = jnp.dot(ctx.astype(bf16), wo_ref[...], preferred_element_type=f32) + bo
    x = _layernorm_padded(x + attn, ln1_g, ln1_b, h_real)

    # --- feed-forward ---
    xb = x.astype(bf16)
    hmid = jnp.dot(xb, w1_ref[...], preferred_element_type=f32) + b1_ref[...]
    hmid = jax.nn.gelu(hmid, approximate=True)  # TODO(synk): HF BERT default is exact erf GELU
    ffn = jnp.dot(hmid.astype(bf16), w2_ref[...], preferred_element_type=f32) + b2
    x = _layernorm_padded(x + ffn, ln2_g, ln2_b, h_real)

    # --- batched pooler + classifier epilogue (Bt CLS rows, lane-dense output) ---
    cls = x.reshape(bt, sp, hp)[:, 0, :]                             # [Bt, Hp]
    pooled = jnp.tanh(jnp.dot(cls.astype(bf16), wp_ref[...],
                              preferred_element_type=f32) + bp)
    lab = lab_ref[...].reshape(bt, -1).astype(bf16)                  # [Bt, Ep]
    # cat((pooled, label), dim=1) @ Wc == pooled @ Wc[:H] + label @ Wc[H:]
    logits = (jnp.dot(pooled.astype(bf16), wch_ref[...], preferred_element_type=f32)
              + jnp.dot(lab, wcl_ref[...], preferred_element_type=f32)
              + bc_ref[...])                                         # [Bt, Lp]
    out_ref[...] = logits.reshape(bt, 1, -1).astype(out_ref.dtype)


# ---------------------------------------------------------------------------
# Parameter init (deterministic, synthetic) + one-time layout plumbing
# ---------------------------------------------------------------------------
def init_params(key, vocab, S, H, F, E, L):
    keys = jax.random.split(key, 12)

    def nrm(k, shape, scale=0.02):
        return (scale * jax.random.normal(k, shape)).astype(jnp.float32)

    ones = lambda d: jnp.ones((1, d), jnp.float32)
    zeros = lambda d: jnp.zeros((1, d), jnp.float32)

    return dict(
        word_emb=nrm(keys[0], (vocab, H)),
        pos_emb=nrm(keys[1], (S, H)),
        type_emb=nrm(keys[2], (2, H)),
        ln_e_g=ones(H), ln_e_b=zeros(H),
        wq=nrm(keys[3], (H, H)), bq=zeros(H),
        wk=nrm(keys[4], (H, H)), bk=zeros(H),
        wv=nrm(keys[5], (H, H)), bv=zeros(H),
        wo=nrm(keys[6], (H, H)), bo=zeros(H),
        ln1_g=ones(H), ln1_b=zeros(H),
        w1=nrm(keys[7], (H, F)), b1=zeros(F),
        w2=nrm(keys[8], (F, H)), b2=zeros(H),
        ln2_g=ones(H), ln2_b=zeros(H),
        wp=nrm(keys[9], (H, H)), bp=zeros(H),
        wc=nrm(keys[10], (H + E, L)), bc=zeros(L),
    )


def prepare_params(params, H, F, E, L):
    """Zero-pad lane dims to 128, fold 1/sqrt(H) into wq/bq, pack the 12 small
    H-sized bias/LN vectors into one [12, Hp] table, cast matmul weights to bf16,
    and pre-split the classifier weight."""
    Hp, Fp, Ep, Lp = (_rup(d, LANE) for d in (H, F, E, L))
    p = dict(params)
    scale = 1.0 / math.sqrt(H)
    p['wq'] = p['wq'] * scale       # one-time parameter transform (not per-call prescale)
    p['bq'] = p['bq'] * scale

    bf = lambda a: a.astype(jnp.bfloat16)
    padv = lambda a, n: _pad_to(a, (1, n))

    vecs_h = jnp.concatenate([
        padv(p['ln_e_g'], Hp), padv(p['ln_e_b'], Hp),
        padv(p['bq'], Hp), padv(p['bk'], Hp), padv(p['bv'], Hp), padv(p['bo'], Hp),
        padv(p['ln1_g'], Hp), padv(p['ln1_b'], Hp),
        padv(p['b2'], Hp),
        padv(p['ln2_g'], Hp), padv(p['ln2_b'], Hp),
        padv(p['bp'], Hp),
    ], axis=0)                                                    # [N_VEC, Hp] f32

    pp = dict(
        word_emb=p['word_emb'], pos_emb=p['pos_emb'], type_emb=p['type_emb'],
        vecs_h=vecs_h,
        b1=padv(p['b1'], Fp),
        bc=padv(p['bc'], Lp),
        wq=bf(_pad_to(p['wq'], (Hp, Hp))), wk=bf(_pad_to(p['wk'], (Hp, Hp))),
        wv=bf(_pad_to(p['wv'], (Hp, Hp))), wo=bf(_pad_to(p['wo'], (Hp, Hp))),
        w1=bf(_pad_to(p['w1'], (Hp, Fp))), w2=bf(_pad_to(p['w2'], (Fp, Hp))),
        wp=bf(_pad_to(p['wp'], (Hp, Hp))),
        wc_h=bf(_pad_to(p['wc'][:H, :], (Hp, Lp))),
        wc_l=bf(_pad_to(p['wc'][H:, :], (Ep, Lp))),
    )
    return pp, (Hp, Fp, Ep, Lp)


def _choose_batch_tile(B, Sp):
    """Largest Bt s.t. Bt*Sp approaches 256 flattened rows (MXU-saturating) while
    keeping >= 2 grid steps (v7x has 2 TensorCores) and Bt | B (no ragged block)."""
    target_rows = 256
    bt = max(1, min(B, max(1, target_rows // Sp)))
    while bt > 1 and (B + bt - 1) // bt < 2:
        bt = max(1, bt // 2)
    while B % bt:
        bt -= 1
    return bt


# ---------------------------------------------------------------------------
# Forward wrapper
# ---------------------------------------------------------------------------
def custom_model_forward(pp, H, E, L, input_ids, attention_mask, label_embeddings,
                         *, batch_tile=None, single_buffer_weights=True):
    B, S = input_ids.shape
    Hp = pp['wq'].shape[0]
    Fp = pp['w1'].shape[1]
    Ep = pp['wc_l'].shape[0]
    Lp = pp['bc'].shape[1]
    Sp = _rup(S, SUBLANE)

    Bt = batch_tile if batch_tile is not None else _choose_batch_tile(B, Sp)
    G = B // Bt

    # --- glue (plain JAX): embedding gather, mask prep, zero-padding ---
    emb = (pp['word_emb'][input_ids]
           + pp['pos_emb'][jnp.arange(S)][None, :, :]
           + pp['type_emb'][0][None, None, :]).astype(jnp.float32)
    emb = _pad_to(emb, (B, Sp, Hp))                       # stays f32 -> exact first LN

    addmask = (1.0 - attention_mask.astype(jnp.float32)) * -1e9        # [B, S]
    addmask = _pad_to(addmask, (B, Sp))
    if Sp > S:                                                          # mask padded keys
        addmask = addmask.at[:, S:].set(-1e9)
    addmask = addmask[:, None, :]                                       # [B, 1, Sp]

    lab = _pad_to(label_embeddings.astype(jnp.float32), (B, Ep))[:, None, :]  # [B,1,Ep]

    per_b = lambda shape: pl.BlockSpec(shape, lambda g: (g, 0, 0))       # batch tiles
    if single_buffer_weights:
        # weights use a constant index_map -> fetched once; single-buffer to halve
        # their VMEM footprint (matters at real herbert dims on v7x's 64 MiB VMEM)
        shared = lambda shape: pl.BlockSpec(shape, lambda g: (0,) * len(shape),
                                            pipeline_mode=pl.Buffered(1))
    else:
        shared = lambda shape: pl.BlockSpec(shape, lambda g: (0,) * len(shape))

    in_specs = [
        per_b((Bt, Sp, Hp)),                                 # embeddings
        per_b((Bt, 1, Sp)),                                  # additive attention mask
        per_b((Bt, 1, Ep)),                                  # label embeddings
        shared((N_VEC, Hp)),                                 # packed LN / bias table
        shared((1, Fp)), shared((1, Lp)),                    # b1, bc
        shared((Hp, Hp)), shared((Hp, Hp)),                  # wq, wk
        shared((Hp, Hp)), shared((Hp, Hp)),                  # wv, wo
        shared((Hp, Fp)), shared((Fp, Hp)),                  # w1, w2
        shared((Hp, Hp)),                                    # pooler wp
        shared((Hp, Lp)), shared((Ep, Lp)),                  # wc_hidden, wc_label
    ]

    # explicit VMEM budget: weights (+ double-buffer factor) + activation estimate
    weight_keys = ('vecs_h', 'b1', 'bc', 'wq', 'wk', 'wv', 'wo',
                   'w1', 'w2', 'wp', 'wc_h', 'wc_l')
    weight_bytes = sum(int(pp[k].size) * pp[k].dtype.itemsize for k in weight_keys)
    act_bytes = (2 * Bt * Sp * Hp * 4                      # double-buffered emb blocks
                 + 6 * Bt * Sp * max(Hp, Fp) * 4           # f32 intermediates (rough)
                 + Bt * Sp * Sp * 4)                       # attention scores
    wmult = 1 if single_buffer_weights else 2
    vmem_limit = int(min(64 * 2**20, max(32 * 2**20, wmult * weight_bytes + act_bytes)))

    out = pl.pallas_call(
        functools.partial(fused_kernel, H),
        grid=(G,),
        in_specs=in_specs,
        out_specs=pl.BlockSpec((Bt, 1, Lp), lambda g: (g, 0, 0)),
        out_shape=jax.ShapeDtypeStruct((B, 1, Lp), jnp.float32),
        compiler_params=pltpu.CompilerParams(
            dimension_semantics=("parallel",),
            vmem_limit_bytes=vmem_limit),
    )(emb, addmask, lab,
      pp['vecs_h'], pp['b1'], pp['bc'],
      pp['wq'], pp['wk'], pp['wv'], pp['wo'],
      pp['w1'], pp['w2'], pp['wp'], pp['wc_h'], pp['wc_l'])

    return out[:, 0, :L]                                             # strip lane padding


if __name__ == "__main__":
    B, S, H, F, E, L, V = 2, 8, 32, 128, 16, 10, 50

    key = jax.random.PRNGKey(0)
    kp, ki, kl = jax.random.split(key, 3)

    params = init_params(kp, vocab=V, S=S, H=H, F=F, E=E, L=L)
    pp, _ = prepare_params(params, H, F, E, L)

    input_ids = jax.random.randint(ki, (B, S), 0, V, dtype=jnp.int32)
    attention_mask = jnp.ones((B, S), dtype=jnp.int32).at[:, S - 2:].set(0)
    label_embeddings = (0.1 * jax.random.normal(kl, (B, E))).astype(jnp.float32)

    try:
        logits = custom_model_forward(pp, H, E, L, input_ids, attention_mask,
                                      label_embeddings, single_buffer_weights=True)
        logits = jax.block_until_ready(logits)
    except Exception:
        # TODO(synk): pl.Buffered(1) single-buffering not supported on this jax build;
        # fall back to default double-buffered weight BlockSpecs.
        logits = custom_model_forward(pp, H, E, L, input_ids, attention_mask,
                                      label_embeddings, single_buffer_weights=False)
        logits = jax.block_until_ready(logits)

    assert logits.shape == (B, L), logits.shape
    assert bool(jnp.all(jnp.isfinite(logits)))
    print("KERNEL_OK")
</pallas_src>

<mosaic_0001>
module attributes {stable_mosaic.version = 11 : i64} {
  func.func @fused_kernel(%arg0: i32, %arg1: memref<1x8x128xf32, #tpu.memory_space<vmem>>, %arg2: memref<1x1x8xf32, #tpu.memory_space<vmem>>, %arg3: memref<1x1x128xf32, #tpu.memory_space<vmem>>, %arg4: memref<12x128xf32, #tpu.memory_space<vmem>>, %arg5: memref<1x128xf32, #tpu.memory_space<vmem>>, %arg6: memref<1x128xf32, #tpu.memory_space<vmem>>, %arg7: memref<128x128xbf16, #tpu.memory_space<vmem>>, %arg8: memref<128x128xbf16, #tpu.memory_space<vmem>>, %arg9: memref<128x128xbf16, #tpu.memory_space<vmem>>, %arg10: memref<128x128xbf16, #tpu.memory_space<vmem>>, %arg11: memref<128x128xbf16, #tpu.memory_space<vmem>>, %arg12: memref<128x128xbf16, #tpu.memory_space<vmem>>, %arg13: memref<128x128xbf16, #tpu.memory_space<vmem>>, %arg14: memref<128x128xbf16, #tpu.memory_space<vmem>>, %arg15: memref<128x128xbf16, #tpu.memory_space<vmem>>, %arg16: memref<1x1x128xf32, #tpu.memory_space<vmem>>) attributes {dimension_semantics = [#tpu.dimension_semantics<parallel>], iteration_bounds = array<i64: 2>, scalar_prefetch = 0 : i64, scratch_operands = 0 : i64, tpu.core_type = #tpu.core_type<tc>, window_params = [{transform_indices = @transform_0, window_bounds = array<i64: 1, 8, 128>}, {transform_indices = @transform_1, window_bounds = array<i64: 1, 1, 8>}, {transform_indices = @transform_2, window_bounds = array<i64: 1, 1, 128>}, {pipeline_mode = #tpu.pipeline_mode<synchronous>, transform_indices = @transform_3, window_bounds = array<i64: 12, 128>}, {pipeline_mode = #tpu.pipeline_mode<synchronous>, transform_indices = @transform_4, window_bounds = array<i64: 1, 128>}, {pipeline_mode = #tpu.pipeline_mode<synchronous>, transform_indices = @transform_5, window_bounds = array<i64: 1, 128>}, {pipeline_mode = #tpu.pipeline_mode<synchronous>, transform_indices = @transform_6, window_bounds = array<i64: 128, 128>}, {pipeline_mode = #tpu.pipeline_mode<synchronous>, transform_indices = @transform_7, window_bounds = array<i64: 128, 128>}, {pipeline_mode = #tpu.pipeline_mode<synchronous>, transform_indices = @transform_8, window_bounds = array<i64: 128, 128>}, {pipeline_mode = #tpu.pipeline_mode<synchronous>, transform_indices = @transform_9, window_bounds = array<i64: 128, 128>}, {pipeline_mode = #tpu.pipeline_mode<synchronous>, transform_indices = @transform_10, window_bounds = array<i64: 128, 128>}, {pipeline_mode = #tpu.pipeline_mode<synchronous>, transform_indices = @transform_11, window_bounds = array<i64: 128, 128>}, {pipeline_mode = #tpu.pipeline_mode<synchronous>, transform_indices = @transform_12, window_bounds = array<i64: 128, 128>}, {pipeline_mode = #tpu.pipeline_mode<synchronous>, transform_indices = @transform_13, window_bounds = array<i64: 128, 128>}, {pipeline_mode = #tpu.pipeline_mode<synchronous>, transform_indices = @transform_14, window_bounds = array<i64: 128, 128>}, {transform_indices = @transform_15, window_bounds = array<i64: 1, 1, 128>}]} {
    %c0 = arith.constant 0 : index
    %c0_0 = arith.constant 0 : index
    %0 = vector.load %arg4[%c0, %c0_0] : memref<12x128xf32, #tpu.memory_space<vmem>>, vector<1x128xf32>
    %c1 = arith.constant 1 : index
    %c0_1 = arith.constant 0 : index
    %1 = vector.load %arg4[%c1, %c0_1] : memref<12x128xf32, #tpu.memory_space<vmem>>, vector<1x128xf32>
    %c2 = arith.constant 2 : index
    %c0_2 = arith.constant 0 : index
    %2 = vector.load %arg4[%c2, %c0_2] : memref<12x128xf32, #tpu.memory_space<vmem>>, vector<1x128xf32>
    %c3 = arith.constant 3 : index
    %c0_3 = arith.constant 0 : index
    %3 = vector.load %arg4[%c3, %c0_3] : memref<12x128xf32, #tpu.memory_space<vmem>>, vector<1x128xf32>
    %c4 = arith.constant 4 : index
    %c0_4 = arith.constant 0 : index
    %4 = vector.load %arg4[%c4, %c0_4] : memref<12x128xf32, #tpu.memory_space<vmem>>, vector<1x128xf32>
    %c5 = arith.constant 5 : index
    %c0_5 = arith.constant 0 : index
    %5 = vector.load %arg4[%c5, %c0_5] : memref<12x128xf32, #tpu.memory_space<vmem>>, vector<1x128xf32>
    %c6 = arith.constant 6 : index
    %c0_6 = arith.constant 0 : index
    %6 = vector.load %arg4[%c6, %c0_6] : memref<12x128xf32, #tpu.memory_space<vmem>>, vector<1x128xf32>
    %c7 = arith.constant 7 : index
    %c0_7 = arith.constant 0 : index
    %7 = vector.load %arg4[%c7, %c0_7] : memref<12x128xf32, #tpu.memory_space<vmem>>, vector<1x128xf32>
    %c8 = arith.constant 8 : index
    %c0_8 = arith.constant 0 : index
    %8 = vector.load %arg4[%c8, %c0_8] : memref<12x128xf32, #tpu.memory_space<vmem>>, vector<1x128xf32>
    %c9 = arith.constant 9 : index
    %c0_9 = arith.constant 0 : index
    %9 = vector.load %arg4[%c9, %c0_9] : memref<12x128xf32, #tpu.memory_space<vmem>>, vector<1x128xf32>
    %c10 = arith.constant 10 : index
    %c0_10 = arith.constant 0 : index
    %10 = vector.load %arg4[%c10, %c0_10] : memref<12x128xf32, #tpu.memory_space<vmem>>, vector<1x128xf32>
    %c11 = arith.constant 11 : index
    %c0_11 = arith.constant 0 : index
    %11 = vector.load %arg4[%c11, %c0_11] : memref<12x128xf32, #tpu.memory_space<vmem>>, vector<1x128xf32>
    %c0_12 = arith.constant 0 : index
    %c0_13 = arith.constant 0 : index
    %c0_14 = arith.constant 0 : index
    %12 = vector.load %arg1[%c0_12, %c0_13, %c0_14] : memref<1x8x128xf32, #tpu.memory_space<vmem>>, vector<1x8x128xf32>
    %13 = vector.shape_cast %12 : vector<1x8x128xf32> to vector<8x128xf32>
    %cst = arith.constant dense<0.000000e+00> : vector<8xf32>
    %14 = vector.multi_reduction <add>, %13, %cst [1] : vector<8x128xf32> to vector<8xf32>
    %15 = vector.shape_cast %14 : vector<8xf32> to vector<8x1xf32>
    %16 = arith.mulf %13, %13 : vector<8x128xf32>
    %cst_15 = arith.constant dense<0.000000e+00> : vector<8xf32>
    %17 = vector.multi_reduction <add>, %16, %cst_15 [1] : vector<8x128xf32> to vector<8xf32>
    %18 = vector.shape_cast %17 : vector<8xf32> to vector<8x1xf32>
    %cst_16 = arith.constant 3.200000e+01 : f32
    %19 = vector.broadcast %cst_16 : f32 to vector<8x1xf32>
    %20 = arith.divf %15, %19 : vector<8x1xf32>
    %cst_17 = arith.constant 3.200000e+01 : f32
    %21 = vector.broadcast %cst_17 : f32 to vector<8x1xf32>
    %22 = arith.divf %18, %21 : vector<8x1xf32>
    %23 = arith.mulf %20, %20 : vector<8x1xf32>
    %24 = arith.subf %22, %23 : vector<8x1xf32>
    %25 = vector.broadcast %20 : vector<8x1xf32> to vector<8x128xf32>
    %26 = arith.subf %13, %25 : vector<8x128xf32>
    %cst_18 = arith.constant 9.99999996E-13 : f32
    %27 = vector.broadcast %cst_18 : f32 to vector<8x1xf32>
    %28 = arith.addf %24, %27 : vector<8x1xf32>
    %29 = math.rsqrt %28 : vector<8x1xf32>
    %30 = vector.broadcast %29 : vector<8x1xf32> to vector<8x128xf32>
    %31 = arith.mulf %26, %30 : vector<8x128xf32>
    %32 = vector.broadcast %0 : vector<1x128xf32> to vector<8x128xf32>
    %33 = arith.mulf %31, %32 : vector<8x128xf32>
    %34 = vector.broadcast %1 : vector<1x128xf32> to vector<8x128xf32>
    %35 = arith.addf %33, %34 : vector<8x128xf32>
    %36 = arith.truncf %35 : vector<8x128xf32> to vector<8x128xbf16>
    %c0_19 = arith.constant 0 : index
    %c0_20 = arith.constant 0 : index
    %37 = vector.load %arg7[%c0_19, %c0_20] : memref<128x128xbf16, #tpu.memory_space<vmem>>, vector<128x128xbf16>
    %cst_21 = arith.constant dense<0.000000e+00> : vector<8x128xf32>
    %38 = tpu.matmul %36, %37, %cst_21 {dimension_numbers = #tpu.dot_dimension_numbers<[1], [0], [0], [1], [0, 0, 1, 1], [], []>} : vector<8x128xbf16>, vector<128x128xbf16>, vector<8x128xf32> -> vector<8x128xf32>
    %39 = vector.broadcast %2 : vector<1x128xf32> to vector<8x128xf32>
    %40 = arith.addf %38, %39 : vector<8x128xf32>
    %c0_22 = arith.constant 0 : index
    %c0_23 = arith.constant 0 : index
    %41 = vector.load %arg8[%c0_22, %c0_23] : memref<128x128xbf16, #tpu.memory_space<vmem>>, vector<128x128xbf16>
    %cst_24 = arith.constant dense<0.000000e+00> : vector<8x128xf32>
    %42 = tpu.matmul %36, %41, %cst_24 {dimension_numbers = #tpu.dot_dimension_numbers<[1], [0], [0], [1], [0, 0, 1, 1], [], []>} : vector<8x128xbf16>, vector<128x128xbf16>, vector<8x128xf32> -> vector<8x128xf32>
    %43 = vector.broadcast %3 : vector<1x128xf32> to vector<8x128xf32>
    %44 = arith.addf %42, %43 : vector<8x128xf32>
    %c0_25 = arith.constant 0 : index
    %c0_26 = arith.constant 0 : index
    %45 = vector.load %arg9[%c0_25, %c0_26] : memref<128x128xbf16, #tpu.memory_space<vmem>>, vector<128x128xbf16>
    %cst_27 = arith.constant dense<0.000000e+00> : vector<8x128xf32>
    %46 = tpu.matmul %36, %45, %cst_27 {dimension_numbers = #tpu.dot_dimension_numbers<[1], [0], [0], [1], [0, 0, 1, 1], [], []>} : vector<8x128xbf16>, vector<128x128xbf16>, vector<8x128xf32> -> vector<8x128xf32>
    %47 = vector.broadcast %4 : vector<1x128xf32> to vector<8x128xf32>
    %48 = arith.addf %46, %47 : vector<8x128xf32>
    %49 = vector.shape_cast %40 : vector<8x128xf32> to vector<1x8x128xf32>
    %50 = arith.truncf %49 : vector<1x8x128xf32> to vector<1x8x128xbf16>
    %51 = vector.shape_cast %44 : vector<8x128xf32> to vector<1x8x128xf32>
    %52 = arith.truncf %51 : vector<1x8x128xf32> to vector<1x8x128xbf16>
    "tpu.trace_start"() <{level = 10 : i32, message = "bqd,bkd->bqk"}> : () -> ()
    %cst_28 = arith.constant dense<0.000000e+00> : vector<1x8x8xf32>
    %53 = tpu.matmul %50, %52, %cst_28 {dimension_numbers = #tpu.dot_dimension_numbers<[2], [2], [1], [1], [0, 0, 0, 1, 1, 1], [0], [0]>} : vector<1x8x128xbf16>, vector<1x8x128xbf16>, vector<1x8x8xf32> -> vector<1x8x8xf32>
    "tpu.trace_stop"() : () -> ()
    %c0_29 = arith.constant 0 : index
    %c0_30 = arith.constant 0 : index
    %c0_31 = arith.constant 0 : index
    %54 = vector.load %arg2[%c0_29, %c0_30, %c0_31] : memref<1x1x8xf32, #tpu.memory_space<vmem>>, vector<1x1x8xf32>
    %55 = vector.broadcast %54 : vector<1x1x8xf32> to vector<1x8x8xf32>
    %56 = arith.addf %53, %55 : vector<1x8x8xf32>
    %cst_32 = arith.constant dense<0xFF800000> : vector<1x8xf32>
    %57 = vector.multi_reduction <maximumf>, %56, %cst_32 [2] : vector<1x8x8xf32> to vector<1x8xf32>
    %58 = vector.shape_cast %57 : vector<1x8xf32> to vector<1x8x1xf32>
    %59 = vector.broadcast %58 : vector<1x8x1xf32> to vector<1x8x8xf32>
    %60 = arith.subf %56, %59 : vector<1x8x8xf32>
    %61 = math.exp %60 : vector<1x8x8xf32>
    %cst_33 = arith.constant dense<0.000000e+00> : vector<1x8xf32>
    %62 = vector.multi_reduction <add>, %61, %cst_33 [2] : vector<1x8x8xf32> to vector<1x8xf32>
    %63 = vector.shape_cast %62 : vector<1x8xf32> to vector<1x8x1xf32>
    %64 = tpu.reciprocal %63 {approx = true} : vector<1x8x1xf32> -> vector<1x8x1xf32>
    %65 = vector.broadcast %64 : vector<1x8x1xf32> to vector<1x8x8xf32>
    %66 = arith.mulf %61, %65 : vector<1x8x8xf32>
    %67 = arith.truncf %66 : vector<1x8x8xf32> to vector<1x8x8xbf16>
    %68 = vector.shape_cast %48 : vector<8x128xf32> to vector<1x8x128xf32>
    %69 = arith.truncf %68 : vector<1x8x128xf32> to vector<1x8x128xbf16>
    "tpu.trace_start"() <{level = 10 : i32, message = "bqk,bkd->bqd"}> : () -> ()
    %cst_34 = arith.constant dense<0.000000e+00> : vector<1x8x128xf32>
    %70 = tpu.matmul %67, %69, %cst_34 {dimension_numbers = #tpu.dot_dimension_numbers<[2], [1], [1], [2], [0, 0, 0, 1, 1, 2], [0], [0]>} : vector<1x8x8xbf16>, vector<1x8x128xbf16>, vector<1x8x128xf32> -> vector<1x8x128xf32>
    "tpu.trace_stop"() : () -> ()
    %71 = vector.shape_cast %70 : vector<1x8x128xf32> to vector<8x128xf32>
    %72 = arith.truncf %71 : vector<8x128xf32> to vector<8x128xbf16>
    %c0_35 = arith.constant 0 : index
    %c0_36 = arith.constant 0 : index
    %73 = vector.load %arg10[%c0_35, %c0_36] : memref<128x128xbf16, #tpu.memory_space<vmem>>, vector<128x128xbf16>
    %cst_37 = arith.constant dense<0.000000e+00> : vector<8x128xf32>
    %74 = tpu.matmul %72, %73, %cst_37 {dimension_numbers = #tpu.dot_dimension_numbers<[1], [0], [0], [1], [0, 0, 1, 1], [], []>} : vector<8x128xbf16>, vector<128x128xbf16>, vector<8x128xf32> -> vector<8x128xf32>
    %75 = vector.broadcast %5 : vector<1x128xf32> to vector<8x128xf32>
    %76 = arith.addf %74, %75 : vector<8x128xf32>
    %77 = arith.addf %35, %76 : vector<8x128xf32>
    %cst_38 = arith.constant dense<0.000000e+00> : vector<8xf32>
    %78 = vector.multi_reduction <add>, %77, %cst_38 [1] : vector<8x128xf32> to vector<8xf32>
    %79 = vector.shape_cast %78 : vector<8xf32> to vector<8x1xf32>
    %80 = arith.mulf %77, %77 : vector<8x128xf32>
    %cst_39 = arith.constant dense<0.000000e+00> : vector<8xf32>
    %81 = vector.multi_reduction <add>, %80, %cst_39 [1] : vector<8x128xf32> to vector<8xf32>
    %82 = vector.shape_cast %81 : vector<8xf32> to vector<8x1xf32>
    %cst_40 = arith.constant 3.200000e+01 : f32
    %83 = vector.broadcast %cst_40 : f32 to vector<8x1xf32>
    %84 = arith.divf %79, %83 : vector<8x1xf32>
    %cst_41 = arith.constant 3.200000e+01 : f32
    %85 = vector.broadcast %cst_41 : f32 to vector<8x1xf32>
    %86 = arith.divf %82, %85 : vector<8x1xf32>
    %87 = arith.mulf %84, %84 : vector<8x1xf32>
    %88 = arith.subf %86, %87 : vector<8x1xf32>
    %89 = vector.broadcast %84 : vector<8x1xf32> to vector<8x128xf32>
    %90 = arith.subf %77, %89 : vector<8x128xf32>
    %cst_42 = arith.constant 9.99999996E-13 : f32
    %91 = vector.broadcast %cst_42 : f32 to vector<8x1xf32>
    %92 = arith.addf %88, %91 : vector<8x1xf32>
    %93 = math.rsqrt %92 : vector<8x1xf32>
    %94 = vector.broadcast %93 : vector<8x1xf32> to vector<8x128xf32>
    %95 = arith.mulf %90, %94 : vector<8x128xf32>
    %96 = vector.broadcast %6 : vector<1x128xf32> to vector<8x128xf32>
    %97 = arith.mulf %95, %96 : vector<8x128xf32>
    %98 = vector.broadcast %7 : vector<1x128xf32> to vector<8x128xf32>
    %99 = arith.addf %97, %98 : vector<8x128xf32>
    %100 = arith.truncf %99 : vector<8x128xf32> to vector<8x128xbf16>
    %c0_43 = arith.constant 0 : index
    %c0_44 = arith.constant 0 : index
    %101 = vector.load %arg11[%c0_43, %c0_44] : memref<128x128xbf16, #tpu.memory_space<vmem>>, vector<128x128xbf16>
    %cst_45 = arith.constant dense<0.000000e+00> : vector<8x128xf32>
    %102 = tpu.matmul %100, %101, %cst_45 {dimension_numbers = #tpu.dot_dimension_numbers<[1], [0], [0], [1], [0, 0, 1, 1], [], []>} : vector<8x128xbf16>, vector<128x128xbf16>, vector<8x128xf32> -> vector<8x128xf32>
    %c0_46 = arith.constant 0 : index
    %c0_47 = arith.constant 0 : index
    %103 = vector.load %arg5[%c0_46, %c0_47] : memref<1x128xf32, #tpu.memory_space<vmem>>, vector<1x128xf32>
    %104 = vector.broadcast %103 : vector<1x128xf32> to vector<8x128xf32>
    %105 = arith.addf %102, %104 : vector<8x128xf32>
    %106 = arith.mulf %105, %105 : vector<8x128xf32>
    %107 = arith.mulf %105, %106 : vector<8x128xf32>
    %cst_48 = arith.constant 4.471500e-02 : f32
    %108 = vector.broadcast %cst_48 : f32 to vector<8x128xf32>
    %109 = arith.mulf %108, %107 : vector<8x128xf32>
    %110 = arith.addf %105, %109 : vector<8x128xf32>
    %cst_49 = arith.constant 0.797884583 : f32
    %111 = vector.broadcast %cst_49 : f32 to vector<8x128xf32>
    %112 = arith.mulf %111, %110 : vector<8x128xf32>
    %113 = math.tanh %112 : vector<8x128xf32>
    %cst_50 = arith.constant 1.000000e+00 : f32
    %114 = vector.broadcast %cst_50 : f32 to vector<8x128xf32>
    %115 = arith.addf %114, %113 : vector<8x128xf32>
    %cst_51 = arith.constant 5.000000e-01 : f32
    %116 = vector.broadcast %cst_51 : f32 to vector<8x128xf32>
    %117 = arith.mulf %116, %115 : vector<8x128xf32>
    %118 = arith.mulf %105, %117 : vector<8x128xf32>
    %119 = arith.truncf %118 : vector<8x128xf32> to vector<8x128xbf16>
    %c0_52 = arith.constant 0 : index
    %c0_53 = arith.constant 0 : index
    %120 = vector.load %arg12[%c0_52, %c0_53] : memref<128x128xbf16, #tpu.memory_space<vmem>>, vector<128x128xbf16>
    %cst_54 = arith.constant dense<0.000000e+00> : vector<8x128xf32>
    %121 = tpu.matmul %119, %120, %cst_54 {dimension_numbers = #tpu.dot_dimension_numbers<[1], [0], [0], [1], [0, 0, 1, 1], [], []>} : vector<8x128xbf16>, vector<128x128xbf16>, vector<8x128xf32> -> vector<8x128xf32>
    %122 = vector.broadcast %8 : vector<1x128xf32> to vector<8x128xf32>
    %123 = arith.addf %121, %122 : vector<8x128xf32>
    %124 = arith.addf %99, %123 : vector<8x128xf32>
    %cst_55 = arith.constant dense<0.000000e+00> : vector<8xf32>
    %125 = vector.multi_reduction <add>, %124, %cst_55 [1] : vector<8x128xf32> to vector<8xf32>
    %126 = vector.shape_cast %125 : vector<8xf32> to vector<8x1xf32>
    %127 = arith.mulf %124, %124 : vector<8x128xf32>
    %cst_56 = arith.constant dense<0.000000e+00> : vector<8xf32>
    %128 = vector.multi_reduction <add>, %127, %cst_56 [1] : vector<8x128xf32> to vector<8xf32>
    %129 = vector.shape_cast %128 : vector<8xf32> to vector<8x1xf32>
    %cst_57 = arith.constant 3.200000e+01 : f32
    %130 = vector.broadcast %cst_57 : f32 to vector<8x1xf32>
    %131 = arith.divf %126, %130 : vector<8x1xf32>
    %cst_58 = arith.constant 3.200000e+01 : f32
    %132 = vector.broadcast %cst_58 : f32 to vector<8x1xf32>
    %133 = arith.divf %129, %132 : vector<8x1xf32>
    %134 = arith.mulf %131, %131 : vector<8x1xf32>
    %135 = arith.subf %133, %134 : vector<8x1xf32>
    %136 = vector.broadcast %131 : vector<8x1xf32> to vector<8x128xf32>
    %137 = arith.subf %124, %136 : vector<8x128xf32>
    %cst_59 = arith.constant 9.99999996E-13 : f32
    %138 = vector.broadcast %cst_59 : f32 to vector<8x1xf32>
    %139 = arith.addf %135, %138 : vector<8x1xf32>
    %140 = math.rsqrt %139 : vector<8x1xf32>
    %141 = vector.broadcast %140 : vector<8x1xf32> to vector<8x128xf32>
    %142 = arith.mulf %137, %141 : vector<8x128xf32>
    %143 = vector.broadcast %9 : vector<1x128xf32> to vector<8x128xf32>
    %144 = arith.mulf %142, %143 : vector<8x128xf32>
    %145 = vector.broadcast %10 : vector<1x128xf32> to vector<8x128xf32>
    %146 = arith.addf %144, %145 : vector<8x128xf32>
    %147 = vector.shape_cast %146 : vector<8x128xf32> to vector<1x8x128xf32>
    %148 = vector.extract_strided_slice %147 {offsets = [0, 0, 0], sizes = [1, 1, 128], strides = [1, 1, 1]} : vector<1x8x128xf32> to vector<1x1x128xf32>
    %149 = vector.shape_cast %148 : vector<1x1x128xf32> to vector<1x128xf32>
    %150 = arith.truncf %149 : vector<1x128xf32> to vector<1x128xbf16>
    %c0_60 = arith.constant 0 : index
    %c0_61 = arith.constant 0 : index
    %151 = vector.load %arg13[%c0_60, %c0_61] : memref<128x128xbf16, #tpu.memory_space<vmem>>, vector<128x128xbf16>
    %cst_62 = arith.constant dense<0.000000e+00> : vector<1x128xf32>
    %152 = tpu.matmul %150, %151, %cst_62 {dimension_numbers = #tpu.dot_dimension_numbers<[1], [0], [0], [1], [0, 0, 1, 1], [], []>} : vector<1x128xbf16>, vector<128x128xbf16>, vector<1x128xf32> -> vector<1x128xf32>
    %153 = arith.addf %152, %11 : vector<1x128xf32>
    %154 = math.tanh %153 : vector<1x128xf32>
    %c0_63 = arith.constant 0 : index
    %c0_64 = arith.constant 0 : index
    %c0_65 = arith.constant 0 : index
    %155 = vector.load %arg3[%c0_63, %c0_64, %c0_65] : memref<1x1x128xf32, #tpu.memory_space<vmem>>, vector<1x1x128xf32>
    %156 = vector.shape_cast %155 : vector<1x1x128xf32> to vector<1x128xf32>
    %157 = arith.truncf %156 : vector<1x128xf32> to vector<1x128xbf16>
    %158 = arith.truncf %154 : vector<1x128xf32> to vector<1x128xbf16>
    %c0_66 = arith.constant 0 : index
    %c0_67 = arith.constant 0 : index
    %159 = vector.load %arg14[%c0_66, %c0_67] : memref<128x128xbf16, #tpu.memory_space<vmem>>, vector<128x128xbf16>
    %cst_68 = arith.constant dense<0.000000e+00> : vector<1x128xf32>
    %160 = tpu.matmul %158, %159, %cst_68 {dimension_numbers = #tpu.dot_dimension_numbers<[1], [0], [0], [1], [0, 0, 1, 1], [], []>} : vector<1x128xbf16>, vector<128x128xbf16>, vector<1x128xf32> -> vector<1x128xf32>
    %c0_69 = arith.constant 0 : index
    %c0_70 = arith.constant 0 : index
    %161 = vector.load %arg15[%c0_69, %c0_70] : memref<128x128xbf16, #tpu.memory_space<vmem>>, vector<128x128xbf16>
    %cst_71 = arith.constant dense<0.000000e+00> : vector<1x128xf32>
    %162 = tpu.matmul %157, %161, %cst_71 {dimension_numbers = #tpu.dot_dimension_numbers<[1], [0], [0], [1], [0, 0, 1, 1], [], []>} : vector<1x128xbf16>, vector<128x128xbf16>, vector<1x128xf32> -> vector<1x128xf32>
    %163 = arith.addf %160, %162 : vector<1x128xf32>
    %c0_72 = arith.constant 0 : index
    %c0_73 = arith.constant 0 : index
    %164 = vector.load %arg6[%c0_72, %c0_73] : memref<1x128xf32, #tpu.memory_space<vmem>>, vector<1x128xf32>
    %165 = arith.addf %163, %164 : vector<1x128xf32>
    %166 = vector.shape_cast %165 : vector<1x128xf32> to vector<1x1x128xf32>
    %c0_74 = arith.constant 0 : index
    %c0_75 = arith.constant 0 : index
    %c0_76 = arith.constant 0 : index
    %167 = vector.load %arg16[%c0_74, %c0_75, %c0_76] : memref<1x1x128xf32, #tpu.memory_space<vmem>>, vector<1x1x128xf32>
    tpu.vector_store %arg16[%c0_74, %c0_75, %c0_76], %166 {strides = array<i32>} : memref<1x1x128xf32, #tpu.memory_space<vmem>>, vector<1x1x128xf32>,
    return
  }
  func.func @transform_0(%arg0: i32) -> (i32, i32, i32) {
    %c0_i32 = arith.constant 0 : i32
    %c0_i32_0 = arith.constant 0 : i32
    %c0_i32_1 = arith.constant 0 : i32
    return %arg0, %c0_i32, %c0_i32_0 : i32, i32, i32
  }
  func.func @transform_1(%arg0: i32) -> (i32, i32, i32) {
    %c0_i32 = arith.constant 0 : i32
    %c0_i32_0 = arith.constant 0 : i32
    %c0_i32_1 = arith.constant 0 : i32
    return %arg0, %c0_i32, %c0_i32_0 : i32, i32, i32
  }
  func.func @transform_2(%arg0: i32) -> (i32, i32, i32) {
    %c0_i32 = arith.constant 0 : i32
    %c0_i32_0 = arith.constant 0 : i32
    %c0_i32_1 = arith.constant 0 : i32
    return %arg0, %c0_i32, %c0_i32_0 : i32, i32, i32
  }
  func.func @transform_3(%arg0: i32) -> (i32, i32) {
    %c0_i32 = arith.constant 0 : i32
    %c0_i32_0 = arith.constant 0 : i32
    %c0_i32_1 = arith.constant 0 : i32
    return %c0_i32, %c0_i32_0 : i32, i32
  }
  func.func @transform_4(%arg0: i32) -> (i32, i32) {
    %c0_i32 = arith.constant 0 : i32
    %c0_i32_0 = arith.constant 0 : i32
    %c0_i32_1 = arith.constant 0 : i32
    return %c0_i32, %c0_i32_0 : i32, i32
  }
  func.func @transform_5(%arg0: i32) -> (i32, i32) {
    %c0_i32 = arith.constant 0 : i32
    %c0_i32_0 = arith.constant 0 : i32
    %c0_i32_1 = arith.constant 0 : i32
    return %c0_i32, %c0_i32_0 : i32, i32
  }
  func.func @transform_6(%arg0: i32) -> (i32, i32) {
    %c0_i32 = arith.constant 0 : i32
    %c0_i32_0 = arith.constant 0 : i32
    %c0_i32_1 = arith.constant 0 : i32
    return %c0_i32, %c0_i32_0 : i32, i32
  }
  func.func @transform_7(%arg0: i32) -> (i32, i32) {
    %c0_i32 = arith.constant 0 : i32
    %c0_i32_0 = arith.constant 0 : i32
    %c0_i32_1 = arith.constant 0 : i32
    return %c0_i32, %c0_i32_0 : i32, i32
  }
  func.func @transform_8(%arg0: i32) -> (i32, i32) {
    %c0_i32 = arith.constant 0 : i32
    %c0_i32_0 = arith.constant 0 : i32
    %c0_i32_1 = arith.constant 0 : i32
    return %c0_i32, %c0_i32_0 : i32, i32
  }
  func.func @transform_9(%arg0: i32) -> (i32, i32) {
    %c0_i32 = arith.constant 0 : i32
    %c0_i32_0 = arith.constant 0 : i32
    %c0_i32_1 = arith.constant 0 : i32
    return %c0_i32, %c0_i32_0 : i32, i32
  }
  func.func @transform_10(%arg0: i32) -> (i32, i32) {
    %c0_i32 = arith.constant 0 : i32
    %c0_i32_0 = arith.constant 0 : i32
    %c0_i32_1 = arith.constant 0 : i32
    return %c0_i32, %c0_i32_0 : i32, i32
  }
  func.func @transform_11(%arg0: i32) -> (i32, i32) {
    %c0_i32 = arith.constant 0 : i32
    %c0_i32_0 = arith.constant 0 : i32
    %c0_i32_1 = arith.constant 0 : i32
    return %c0_i32, %c0_i32_0 : i32, i32
  }
  func.func @transform_12(%arg0: i32) -> (i32, i32) {
    %c0_i32 = arith.constant 0 : i32
    %c0_i32_0 = arith.constant 0 : i32
    %c0_i32_1 = arith.constant 0 : i32
    return %c0_i32, %c0_i32_0 : i32, i32
  }
  func.func @transform_13(%arg0: i32) -> (i32, i32) {
    %c0_i32 = arith.constant 0 : i32
    %c0_i32_0 = arith.constant 0 : i32
    %c0_i32_1 = arith.constant 0 : i32
    return %c0_i32, %c0_i32_0 : i32, i32
  }
  func.func @transform_14(%arg0: i32) -> (i32, i32) {
    %c0_i32 = arith.constant 0 : i32
    %c0_i32_0 = arith.constant 0 : i32
    %c0_i32_1 = arith.constant 0 : i32
    return %c0_i32, %c0_i32_0 : i32, i32
  }
  func.func @transform_15(%arg0: i32) -> (i32, i32, i32) {
    %c0_i32 = arith.constant 0 : i32
    %c0_i32_0 = arith.constant 0 : i32
    %c0_i32_1 = arith.constant 0 : i32
    return %arg0, %c0_i32, %c0_i32_0 : i32, i32, i32
  }
}

module attributes {stable_mosaic.version = 11 : i64} {
  func.func @fused_kernel(%arg0: i32, %arg1: memref<1x8x128xf32, #tpu.memory_space<vmem>>, %arg2: memref<1x1x8xf32, #tpu.memory_space<vmem>>, %arg3: memref<1x1x128xf32, #tpu.memory_space<vmem>>, %arg4: memref<12x128xf32, #tpu.memory_space<vmem>>, %arg5: memref<1x128xf32, #tpu.memory_space<vmem>>, %arg6: memref<1x128xf32, #tpu.memory_space<vmem>>, %arg7: memref<128x128xbf16, #tpu.memory_space<vmem>>, %arg8: memref<128x128xbf16, #tpu.memory_space<vmem>>, %arg9: memref<128x128xbf16, #tpu.memory_space<vmem>>, %arg10: memref<128x128xbf16, #tpu.memory_space<vmem>>, %arg11: memref<128x128xbf16, #tpu.memory_space<vmem>>, %arg12: memref<128x128xbf16, #tpu.memory_space<vmem>>, %arg13: memref<128x128xbf16, #tpu.memory_space<vmem>>, %arg14: memref<128x128xbf16, #tpu.memory_space<vmem>>, %arg15: memref<128x128xbf16, #tpu.memory_space<vmem>>, %arg16: memref<1x1x128xf32, #tpu.memory_space<vmem>>) attributes {dimension_semantics = [#tpu.dimension_semantics<parallel>], iteration_bounds = array<i64: 2>, scalar_prefetch = 0 : i64, scratch_operands = 0 : i64, tpu.core_type = #tpu.core_type<tc>, window_params = [{transform_indices = @transform_0, window_bounds = array<i64: 1, 8, 128>}, {transform_indices = @transform_1, window_bounds = array<i64: 1, 1, 8>}, {transform_indices = @transform_2, window_bounds = array<i64: 1, 1, 128>}, {pipeline_mode = #tpu.pipeline_mode<synchronous>, transform_indices = @transform_3, window_bounds = array<i64: 12, 128>}, {pipeline_mode = #tpu.pipeline_mode<synchronous>, transform_indices = @transform_4, window_bounds = array<i64: 1, 128>}, {pipeline_mode = #tpu.pipeline_mode<synchronous>, transform_indices = @transform_5, window_bounds = array<i64: 1, 128>}, {pipeline_mode = #tpu.pipeline_mode<synchronous>, transform_indices = @transform_6, window_bounds = array<i64: 128, 128>}, {pipeline_mode = #tpu.pipeline_mode<synchronous>, transform_indices = @transform_7, window_bounds = array<i64: 128, 128>}, {pipeline_mode = #tpu.pipeline_mode<synchronous>, transform_indices = @transform_8, window_bounds = array<i64: 128, 128>}, {pipeline_mode = #tpu.pipeline_mode<synchronous>, transform_indices = @transform_9, window_bounds = array<i64: 128, 128>}, {pipeline_mode = #tpu.pipeline_mode<synchronous>, transform_indices = @transform_10, window_bounds = array<i64: 128, 128>}, {pipeline_mode = #tpu.pipeline_mode<synchronous>, transform_indices = @transform_11, window_bounds = array<i64: 128, 128>}, {pipeline_mode = #tpu.pipeline_mode<synchronous>, transform_indices = @transform_12, window_bounds = array<i64: 128, 128>}, {pipeline_mode = #tpu.pipeline_mode<synchronous>, transform_indices = @transform_13, window_bounds = array<i64: 128, 128>}, {pipeline_mode = #tpu.pipeline_mode<synchronous>, transform_indices = @transform_14, window_bounds = array<i64: 128, 128>}, {transform_indices = @transform_15, window_bounds = array<i64: 1, 1, 128>}]} {
    %c0 = arith.constant 0 : index
    %c0_0 = arith.constant 0 : index
    %0 = vector.load %arg4[%c0, %c0_0] : memref<12x128xf32, #tpu.memory_space<vmem>>, vector<1x128xf32>
    %c1 = arith.constant 1 : index
    %c0_1 = arith.constant 0 : index
    %1 = vector.load %arg4[%c1, %c0_1] : memref<12x128xf32, #tpu.memory_space<vmem>>, vector<1x128xf32>
    %c2 = arith.constant 2 : index
    %c0_2 = arith.constant 0 : index
    %2 = vector.load %arg4[%c2, %c0_2] : memref<12x128xf32, #tpu.memory_space<vmem>>, vector<1x128xf32>
    %c3 = arith.constant 3 : index
    %c0_3 = arith.constant 0 : index
    %3 = vector.load %arg4[%c3, %c0_3] : memref<12x128xf32, #tpu.memory_space<vmem>>, vector<1x128xf32>
    %c4 = arith.constant 4 : index
    %c0_4 = arith.constant 0 : index
    %4 = vector.load %arg4[%c4, %c0_4] : memref<12x128xf32, #tpu.memory_space<vmem>>, vector<1x128xf32>
    %c5 = arith.constant 5 : index
    %c0_5 = arith.constant 0 : index
    %5 = vector.load %arg4[%c5, %c0_5] : memref<12x128xf32, #tpu.memory_space<vmem>>, vector<1x128xf32>
    %c6 = arith.constant 6 : index
    %c0_6 = arith.constant 0 : index
    %6 = vector.load %arg4[%c6, %c0_6] : memref<12x128xf32, #tpu.memory_space<vmem>>, vector<1x128xf32>
    %c7 = arith.constant 7 : index
    %c0_7 = arith.constant 0 : index
    %7 = vector.load %arg4[%c7, %c0_7] : memref<12x128xf32, #tpu.memory_space<vmem>>, vector<1x128xf32>
    %c8 = arith.constant 8 : index
    %c0_8 = arith.constant 0 : index
    %8 = vector.load %arg4[%c8, %c0_8] : memref<12x128xf32, #tpu.memory_space<vmem>>, vector<1x128xf32>
    %c9 = arith.constant 9 : index
    %c0_9 = arith.constant 0 : index
    %9 = vector.load %arg4[%c9, %c0_9] : memref<12x128xf32, #tpu.memory_space<vmem>>, vector<1x128xf32>
    %c10 = arith.constant 10 : index
    %c0_10 = arith.constant 0 : index
    %10 = vector.load %arg4[%c10, %c0_10] : memref<12x128xf32, #tpu.memory_space<vmem>>, vector<1x128xf32>
    %c11 = arith.constant 11 : index
    %c0_11 = arith.constant 0 : index
    %11 = vector.load %arg4[%c11, %c0_11] : memref<12x128xf32, #tpu.memory_space<vmem>>, vector<1x128xf32>
    %c0_12 = arith.constant 0 : index
    %c0_13 = arith.constant 0 : index
    %c0_14 = arith.constant 0 : index
    %12 = vector.load %arg1[%c0_12, %c0_13, %c0_14] : memref<1x8x128xf32, #tpu.memory_space<vmem>>, vector<1x8x128xf32>
    %13 = vector.shape_cast %12 : vector<1x8x128xf32> to vector<8x128xf32>
    %cst = arith.constant dense<0.000000e+00> : vector<8xf32>
    %14 = vector.multi_reduction <add>, %13, %cst [1] : vector<8x128xf32> to vector<8xf32>
    %15 = vector.shape_cast %14 : vector<8xf32> to vector<8x1xf32>
    %16 = arith.mulf %13, %13 : vector<8x128xf32>
    %cst_15 = arith.constant dense<0.000000e+00> : vector<8xf32>
    %17 = vector.multi_reduction <add>, %16, %cst_15 [1] : vector<8x128xf32> to vector<8xf32>
    %18 = vector.shape_cast %17 : vector<8xf32> to vector<8x1xf32>
    %cst_16 = arith.constant 3.200000e+01 : f32
    %19 = vector.broadcast %cst_16 : f32 to vector<8x1xf32>
    %20 = arith.divf %15, %19 : vector<8x1xf32>
    %cst_17 = arith.constant 3.200000e+01 : f32
    %21 = vector.broadcast %cst_17 : f32 to vector<8x1xf32>
    %22 = arith.divf %18, %21 : vector<8x1xf32>
    %23 = arith.mulf %20, %20 : vector<8x1xf32>
    %24 = arith.subf %22, %23 : vector<8x1xf32>
    %25 = vector.broadcast %20 : vector<8x1xf32> to vector<8x128xf32>
    %26 = arith.subf %13, %25 : vector<8x128xf32>
    %cst_18 = arith.constant 9.99999996E-13 : f32
    %27 = vector.broadcast %cst_18 : f32 to vector<8x1xf32>
    %28 = arith.addf %24, %27 : vector<8x1xf32>
    %29 = math.rsqrt %28 : vector<8x1xf32>
    %30 = vector.broadcast %29 : vector<8x1xf32> to vector<8x128xf32>
    %31 = arith.mulf %26, %30 : vector<8x128xf32>
    %32 = vector.broadcast %0 : vector<1x128xf32> to vector<8x128xf32>
    %33 = arith.mulf %31, %32 : vector<8x128xf32>
    %34 = vector.broadcast %1 : vector<1x128xf32> to vector<8x128xf32>
    %35 = arith.addf %33, %34 : vector<8x128xf32>
    %36 = arith.truncf %35 : vector<8x128xf32> to vector<8x128xbf16>
    %c0_19 = arith.constant 0 : index
    %c0_20 = arith.constant 0 : index
    %37 = vector.load %arg7[%c0_19, %c0_20] : memref<128x128xbf16, #tpu.memory_space<vmem>>, vector<128x128xbf16>
    %cst_21 = arith.constant dense<0.000000e+00> : vector<8x128xf32>
    %38 = tpu.matmul %36, %37, %cst_21 {dimension_numbers = #tpu.dot_dimension_numbers<[1], [0], [0], [1], [0, 0, 1, 1], [], []>} : vector<8x128xbf16>, vector<128x128xbf16>, vector<8x128xf32> -> vector<8x128xf32>
    %39 = vector.broadcast %2 : vector<1x128xf32> to vector<8x128xf32>
    %40 = arith.addf %38, %39 : vector<8x128xf32>
    %c0_22 = arith.constant 0 : index
    %c0_23 = arith.constant 0 : index
    %41 = vector.load %arg8[%c0_22, %c0_23] : memref<128x128xbf16, #tpu.memory_space<vmem>>, vector<128x128xbf16>
    %cst_24 = arith.constant dense<0.000000e+00> : vector<8x128xf32>
    %42 = tpu.matmul %36, %41, %cst_24 {dimension_numbers = #tpu.dot_dimension_numbers<[1], [0], [0], [1], [0, 0, 1, 1], [], []>} : vector<8x128xbf16>, vector<128x128xbf16>, vector<8x128xf32> -> vector<8x128xf32>
    %43 = vector.broadcast %3 : vector<1x128xf32> to vector<8x128xf32>
    %44 = arith.addf %42, %43 : vector<8x128xf32>
    %c0_25 = arith.constant 0 : index
    %c0_26 = arith.constant 0 : index
    %45 = vector.load %arg9[%c0_25, %c0_26] : memref<128x128xbf16, #tpu.memory_space<vmem>>, vector<128x128xbf16>
    %cst_27 = arith.constant dense<0.000000e+00> : vector<8x128xf32>
    %46 = tpu.matmul %36, %45, %cst_27 {dimension_numbers = #tpu.dot_dimension_numbers<[1], [0], [0], [1], [0, 0, 1, 1], [], []>} : vector<8x128xbf16>, vector<128x128xbf16>, vector<8x128xf32> -> vector<8x128xf32>
    %47 = vector.broadcast %4 : vector<1x128xf32> to vector<8x128xf32>
    %48 = arith.addf %46, %47 : vector<8x128xf32>
    %49 = vector.shape_cast %40 : vector<8x128xf32> to vector<1x8x128xf32>
    %50 = arith.truncf %49 : vector<1x8x128xf32> to vector<1x8x128xbf16>
    %51 = vector.shape_cast %44 : vector<8x128xf32> to vector<1x8x128xf32>
    %52 = arith.truncf %51 : vector<1x8x128xf32> to vector<1x8x128xbf16>
    "tpu.trace_start"() <{level = 10 : i32, message = "bqd,bkd->bqk"}> : () -> ()
    %cst_28 = arith.constant dense<0.000000e+00> : vector<1x8x8xf32>
    %53 = tpu.matmul %50, %52, %cst_28 {dimension_numbers = #tpu.dot_dimension_numbers<[2], [2], [1], [1], [0, 0, 0, 1, 1, 1], [0], [0]>} : vector<1x8x128xbf16>, vector<1x8x128xbf16>, vector<1x8x8xf32> -> vector<1x8x8xf32>
    "tpu.trace_stop"() : () -> ()
    %c0_29 = arith.constant 0 : index
    %c0_30 = arith.constant 0 : index
    %c0_31 = arith.constant 0 : index
    %54 = vector.load %arg2[%c0_29, %c0_30, %c0_31] : memref<1x1x8xf32, #tpu.memory_space<vmem>>, vector<1x1x8xf32>
    %55 = vector.broadcast %54 : vector<1x1x8xf32> to vector<1x8x8xf32>
    %56 = arith.addf %53, %55 : vector<1x8x8xf32>
    %cst_32 = arith.constant dense<0xFF800000> : vector<1x8xf32>
    %57 = vector.multi_reduction <maximumf>, %56, %cst_32 [2] : vector<1x8x8xf32> to vector<1x8xf32>
    %58 = vector.shape_cast %57 : vector<1x8xf32> to vector<1x8x1xf32>
    %59 = vector.broadcast %58 : vector<1x8x1xf32> to vector<1x8x8xf32>
    %60 = arith.subf %56, %59 : vector<1x8x8xf32>
    %61 = math.exp %60 : vector<1x8x8xf32>
    %cst_33 = arith.constant dense<0.000000e+00> : vector<1x8xf32>
    %62 = vector.multi_reduction <add>, %61, %cst_33 [2] : vector<1x8x8xf32> to vector<1x8xf32>
    %63 = vector.shape_cast %62 : vector<1x8xf32> to vector<1x8x1xf32>
    %64 = tpu.reciprocal %63 {approx = true} : vector<1x8x1xf32> -> vector<1x8x1xf32>
    %65 = vector.broadcast %64 : vector<1x8x1xf32> to vector<1x8x8xf32>
    %66 = arith.mulf %61, %65 : vector<1x8x8xf32>
    %67 = arith.truncf %66 : vector<1x8x8xf32> to vector<1x8x8xbf16>
    %68 = vector.shape_cast %48 : vector<8x128xf32> to vector<1x8x128xf32>
    %69 = arith.truncf %68 : vector<1x8x128xf32> to vector<1x8x128xbf16>
    "tpu.trace_start"() <{level = 10 : i32, message = "bqk,bkd->bqd"}> : () -> ()
    %cst_34 = arith.constant dense<0.000000e+00> : vector<1x8x128xf32>
    %70 = tpu.matmul %67, %69, %cst_34 {dimension_numbers = #tpu.dot_dimension_numbers<[2], [1], [1], [2], [0, 0, 0, 1, 1, 2], [0], [0]>} : vector<1x8x8xbf16>, vector<1x8x128xbf16>, vector<1x8x128xf32> -> vector<1x8x128xf32>
    "tpu.trace_stop"() : () -> ()
    %71 = vector.shape_cast %70 : vector<1x8x128xf32> to vector<8x128xf32>
    %72 = arith.truncf %71 : vector<8x128xf32> to vector<8x128xbf16>
    %c0_35 = arith.constant 0 : index
    %c0_36 = arith.constant 0 : index
    %73 = vector.load %arg10[%c0_35, %c0_36] : memref<128x128xbf16, #tpu.memory_space<vmem>>, vector<128x128xbf16>
    %cst_37 = arith.constant dense<0.000000e+00> : vector<8x128xf32>
    %74 = tpu.matmul %72, %73, %cst_37 {dimension_numbers = #tpu.dot_dimension_numbers<[1], [0], [0], [1], [0, 0, 1, 1], [], []>} : vector<8x128xbf16>, vector<128x128xbf16>, vector<8x128xf32> -> vector<8x128xf32>
    %75 = vector.broadcast %5 : vector<1x128xf32> to vector<8x128xf32>
    %76 = arith.addf %74, %75 : vector<8x128xf32>
    %77 = arith.addf %35, %76 : vector<8x128xf32>
    %cst_38 = arith.constant dense<0.000000e+00> : vector<8xf32>
    %78 = vector.multi_reduction <add>, %77, %cst_38 [1] : vector<8x128xf32> to vector<8xf32>
    %79 = vector.shape_cast %78 : vector<8xf32> to vector<8x1xf32>
    %80 = arith.mulf %77, %77 : vector<8x128xf32>
    %cst_39 = arith.constant dense<0.000000e+00> : vector<8xf32>
    %81 = vector.multi_reduction <add>, %80, %cst_39 [1] : vector<8x128xf32> to vector<8xf32>
    %82 = vector.shape_cast %81 : vector<8xf32> to vector<8x1xf32>
    %cst_40 = arith.constant 3.200000e+01 : f32
    %83 = vector.broadcast %cst_40 : f32 to vector<8x1xf32>
    %84 = arith.divf %79, %83 : vector<8x1xf32>
    %cst_41 = arith.constant 3.200000e+01 : f32
    %85 = vector.broadcast %cst_41 : f32 to vector<8x1xf32>
    %86 = arith.divf %82, %85 : vector<8x1xf32>
    %87 = arith.mulf %84, %84 : vector<8x1xf32>
    %88 = arith.subf %86, %87 : vector<8x1xf32>
    %89 = vector.broadcast %84 : vector<8x1xf32> to vector<8x128xf32>
    %90 = arith.subf %77, %89 : vector<8x128xf32>
    %cst_42 = arith.constant 9.99999996E-13 : f32
    %91 = vector.broadcast %cst_42 : f32 to vector<8x1xf32>
    %92 = arith.addf %88, %91 : vector<8x1xf32>
    %93 = math.rsqrt %92 : vector<8x1xf32>
    %94 = vector.broadcast %93 : vector<8x1xf32> to vector<8x128xf32>
    %95 = arith.mulf %90, %94 : vector<8x128xf32>
    %96 = vector.broadcast %6 : vector<1x128xf32> to vector<8x128xf32>
    %97 = arith.mulf %95, %96 : vector<8x128xf32>
    %98 = vector.broadcast %7 : vector<1x128xf32> to vector<8x128xf32>
    %99 = arith.addf %97, %98 : vector<8x128xf32>
    %100 = arith.truncf %99 : vector<8x128xf32> to vector<8x128xbf16>
    %c0_43 = arith.constant 0 : index
    %c0_44 = arith.constant 0 : index
    %101 = vector.load %arg11[%c0_43, %c0_44] : memref<128x128xbf16, #tpu.memory_space<vmem>>, vector<128x128xbf16>
    %cst_45 = arith.constant dense<0.000000e+00> : vector<8x128xf32>
    %102 = tpu.matmul %100, %101, %cst_45 {dimension_numbers = #tpu.dot_dimension_numbers<[1], [0], [0], [1], [0, 0, 1, 1], [], []>} : vector<8x128xbf16>, vector<128x128xbf16>, vector<8x128xf32> -> vector<8x128xf32>
    %c0_46 = arith.constant 0 : index
    %c0_47 = arith.constant 0 : index
    %103 = vector.load %arg5[%c0_46, %c0_47] : memref<1x128xf32, #tpu.memory_space<vmem>>, vector<1x128xf32>
    %104 = vector.broadcast %103 : vector<1x128xf32> to vector<8x128xf32>
    %105 = arith.addf %102, %104 : vector<8x128xf32>
    %106 = arith.mulf %105, %105 : vector<8x128xf32>
    %107 = arith.mulf %105, %106 : vector<8x128xf32>
    %cst_48 = arith.constant 4.471500e-02 : f32
    %108 = vector.broadcast %cst_48 : f32 to vector<8x128xf32>
    %109 = arith.mulf %108, %107 : vector<8x128xf32>
    %110 = arith.addf %105, %109 : vector<8x128xf32>
    %cst_49 = arith.constant 0.797884583 : f32
    %111 = vector.broadcast %cst_49 : f32 to vector<8x128xf32>
    %112 = arith.mulf %111, %110 : vector<8x128xf32>
    %113 = math.tanh %112 : vector<8x128xf32>
    %cst_50 = arith.constant 1.000000e+00 : f32
    %114 = vector.broadcast %cst_50 : f32 to vector<8x128xf32>
    %115 = arith.addf %114, %113 : vector<8x128xf32>
    %cst_51 = arith.constant 5.000000e-01 : f32
    %116 = vector.broadcast %cst_51 : f32 to vector<8x128xf32>
    %117 = arith.mulf %116, %115 : vector<8x128xf32>
    %118 = arith.mulf %105, %117 : vector<8x128xf32>
    %119 = arith.truncf %118 : vector<8x128xf32> to vector<8x128xbf16>
    %c0_52 = arith.constant 0 : index
    %c0_53 = arith.constant 0 : index
    %120 = vector.load %arg12[%c0_52, %c0_53] : memref<128x128xbf16, #tpu.memory_space<vmem>>, vector<128x128xbf16>
    %cst_54 = arith.constant dense<0.000000e+00> : vector<8x128xf32>
    %121 = tpu.matmul %119, %120, %cst_54 {dimension_numbers = #tpu.dot_dimension_numbers<[1], [0], [0], [1], [0, 0, 1, 1], [], []>} : vector<8x128xbf16>, vector<128x128xbf16>, vector<8x128xf32> -> vector<8x128xf32>
    %122 = vector.broadcast %8 : vector<1x128xf32> to vector<8x128xf32>
    %123 = arith.addf %121, %122 : vector<8x128xf32>
    %124 = arith.addf %99, %123 : vector<8x128xf32>
    %cst_55 = arith.constant dense<0.000000e+00> : vector<8xf32>
    %125 = vector.multi_reduction <add>, %124, %cst_55 [1] : vector<8x128xf32> to vector<8xf32>
    %126 = vector.shape_cast %125 : vector<8xf32> to vector<8x1xf32>
    %127 = arith.mulf %124, %124 : vector<8x128xf32>
    %cst_56 = arith.constant dense<0.000000e+00> : vector<8xf32>
    %128 = vector.multi_reduction <add>, %127, %cst_56 [1] : vector<8x128xf32> to vector<8xf32>
    %129 = vector.shape_cast %128 : vector<8xf32> to vector<8x1xf32>
    %cst_57 = arith.constant 3.200000e+01 : f32
    %130 = vector.broadcast %cst_57 : f32 to vector<8x1xf32>
    %131 = arith.divf %126, %130 : vector<8x1xf32>
    %cst_58 = arith.constant 3.200000e+01 : f32
    %132 = vector.broadcast %cst_58 : f32 to vector<8x1xf32>
    %133 = arith.divf %129, %132 : vector<8x1xf32>
    %134 = arith.mulf %131, %131 : vector<8x1xf32>
    %135 = arith.subf %133, %134 : vector<8x1xf32>
    %136 = vector.broadcast %131 : vector<8x1xf32> to vector<8x128xf32>
    %137 = arith.subf %124, %136 : vector<8x128xf32>
    %cst_59 = arith.constant 9.99999996E-13 : f32
    %138 = vector.broadcast %cst_59 : f32 to vector<8x1xf32>
    %139 = arith.addf %135, %138 : vector<8x1xf32>
    %140 = math.rsqrt %139 : vector<8x1xf32>
    %141 = vector.broadcast %140 : vector<8x1xf32> to vector<8x128xf32>
    %142 = arith.mulf %137, %141 : vector<8x128xf32>
    %143 = vector.broadcast %9 : vector<1x128xf32> to vector<8x128xf32>
    %144 = arith.mulf %142, %143 : vector<8x128xf32>
    %145 = vector.broadcast %10 : vector<1x128xf32> to vector<8x128xf32>
    %146 = arith.addf %144, %145 : vector<8x128xf32>
    %147 = vector.shape_cast %146 : vector<8x128xf32> to vector<1x8x128xf32>
    %148 = vector.extract_strided_slice %147 {offsets = [0, 0, 0], sizes = [1, 1, 128], strides = [1, 1, 1]} : vector<1x8x128xf32> to vector<1x1x128xf32>
    %149 = vector.shape_cast %148 : vector<1x1x128xf32> to vector<1x128xf32>
    %150 = arith.truncf %149 : vector<1x128xf32> to vector<1x128xbf16>
    %c0_60 = arith.constant 0 : index
    %c0_61 = arith.constant 0 : index
    %151 = vector.load %arg13[%c0_60, %c0_61] : memref<128x128xbf16, #tpu.memory_space<vmem>>, vector<128x128xbf16>
    %cst_62 = arith.constant dense<0.000000e+00> : vector<1x128xf32>
    %152 = tpu.matmul %150, %151, %cst_62 {dimension_numbers = #tpu.dot_dimension_numbers<[1], [0], [0], [1], [0, 0, 1, 1], [], []>} : vector<1x128xbf16>, vector<128x128xbf16>, vector<1x128xf32> -> vector<1x128xf32>
    %153 = arith.addf %152, %11 : vector<1x128xf32>
    %154 = math.tanh %153 : vector<1x128xf32>
    %c0_63 = arith.constant 0 : index
    %c0_64 = arith.constant 0 : index
    %c0_65 = arith.constant 0 : index
    %155 = vector.load %arg3[%c0_63, %c0_64, %c0_65] : memref<1x1x128xf32, #tpu.memory_space<vmem>>, vector<1x1x128xf32>
    %156 = vector.shape_cast %155 : vector<1x1x128xf32> to vector<1x128xf32>
    %157 = arith.truncf %156 : vector<1x128xf32> to vector<1x128xbf16>
    %158 = arith.truncf %154 : vector<1x128xf32> to vector<1x128xbf16>
    %c0_66 = arith.constant 0 : index
    %c0_67 = arith.constant 0 : index
    %159 = vector.load %arg14[%c0_66, %c0_67] : memref<128x128xbf16, #tpu.memory_space<vmem>>, vector<128x128xbf16>
    %cst_68 = arith.constant dense<0.000000e+00> : vector<1x128xf32>
    %160 = tpu.matmul %158, %159, %cst_68 {dimension_numbers = #tpu.dot_dimension_numbers<[1], [0], [0], [1], [0, 0, 1, 1], [], []>} : vector<1x128xbf16>, vector<128x128xbf16>, vector<1x128xf32> -> vector<1x128xf32>
    %c0_69 = arith.constant 0 : index
    %c0_70 = arith.constant 0 : index
    %161 = vector.load %arg15[%c0_69, %c0_70] : memref<128x128xbf16, #tpu.memory_space<vmem>>, vector<128x128xbf16>
    %cst_71 = arith.constant dense<0.000000e+00> : vector<1x128xf32>
    %162 = tpu.matmul %157, %161, %cst_71 {dimension_numbers = #tpu.dot_dimension_numbers<[1], [0], [0], [1], [0, 0, 1, 1], [], []>} : vector<1x128xbf16>, vector<128x128xbf16>, vector<1x128xf32> -> vector<1x128xf32>
    %163 = arith.addf %160, %162 : vector<1x128xf32>
    %c0_72 = arith.constant 0 : index
    %c0_73 = arith.constant 0 : index
    %164 = vector.load %arg6[%c0_72, %c0_73] : memref<1x128xf32, #tpu.memory_space<vmem>>, vector<1x128xf32>
    %165 = arith.addf %163, %164 : vector<1x128xf32>
    %166 = vector.shape_cast %165 : vector<1x128xf32> to vector<1x1x128xf32>
    %c0_74 = arith.constant 0 : index
    %c0_75 = arith.constant 0 : index
    %c0_76 = arith.constant 0 : index
    %167 = vector.load %arg16[%c0_74, %c0_75, %c0_76] : memref<1x1x128xf32, #tpu.memory_space<vmem>>, vector<1x1x128xf32>
    tpu.vector_store %arg16[%c0_74, %c0_75, %c0_76], %166 {strides = array<i32>} : memref<1x1x128xf32, #tpu.memory_space<vmem>>, vector<1x1x128xf32>,
    return
  }
  func.func @transform_0(%arg0: i32) -> (i32, i32, i32) {
    %c0_i32 = arith.constant 0 : i32
    %c0_i32_0 = arith.constant 0 : i32
    %c0_i32_1 = arith.constant 0 : i32
    return %arg0, %c0_i32, %c0_i32_0 : i32, i32, i32
  }
  func.func @transform_1(%arg0: i32) -> (i32, i32, i32) {
    %c0_i32 = arith.constant 0 : i32
    %c0_i32_0 = arith.constant 0 : i32
    %c0_i32_1 = arith.constant 0 : i32
    return %arg0, %c0_i32, %c0_i32_0 : i32, i32, i32
  }
  func.func @transform_2(%arg0: i32) -> (i32, i32, i32) {
    %c0_i32 = arith.constant 0 : i32
    %c0_i32_0 = arith.constant 0 : i32
    %c0_i32_1 = arith.constant 0 : i32
    return %arg0, %c0_i32, %c0_i32_0 : i32, i32, i32
  }
  func.func @transform_3(%arg0: i32) -> (i32, i32) {
    %c0_i32 = arith.constant 0 : i32
    %c0_i32_0 = arith.constant 0 : i32
    %c0_i32_1 = arith.constant 0 : i32
    return %c0_i32, %c0_i32_0 : i32, i32
  }
  func.func @transform_4(%arg0: i32) -> (i32, i32) {
    %c0_i32 = arith.constant 0 : i32
    %c0_i32_0 = arith.constant 0 : i32
    %c0_i32_1 = arith.constant 0 : i32
    return %c0_i32, %c0_i32_0 : i32, i32
  }
  func.func @transform_5(%arg0: i32) -> (i32, i32) {
    %c0_i32 = arith.constant 0 : i32
    %c0_i32_0 = arith.constant 0 : i32
    %c0_i32_1 = arith.constant 0 : i32
    return %c0_i32, %c0_i32_0 : i32, i32
  }
  func.func @transform_6(%arg0: i32) -> (i32, i32) {
    %c0_i32 = arith.constant 0 : i32
    %c0_i32_0 = arith.constant 0 : i32
    %c0_i32_1 = arith.constant 0 : i32
    return %c0_i32, %c0_i32_0 : i32, i32
  }
  func.func @transform_7(%arg0: i32) -> (i32, i32) {
    %c0_i32 = arith.constant 0 : i32
    %c0_i32_0 = arith.constant 0 : i32
    %c0_i32_1 = arith.constant 0 : i32
    return %c0_i32, %c0_i32_0 : i32, i32
  }
  func.func @transform_8(%arg0: i32) -> (i32, i32) {
    %c0_i32 = arith.constant 0 : i32
    %c0_i32_0 = arith.constant 0 : i32
    %c0_i32_1 = arith.constant 0 : i32
    return %c0_i32, %c0_i32_0 : i32, i32
  }
  func.func @transform_9(%arg0: i32) -> (i32, i32) {
    %c0_i32 = arith.constant 0 : i32
    %c0_i32_0 = arith.constant 0 : i32
    %c0_i32_1 = arith.constant 0 : i32
    return %c0_i32, %c0_i32_0 : i32, i32
  }
  func.func @transform_10(%arg0: i32) -> (i32, i32) {
    %c0_i32 = arith.constant 0 : i32
    %c0_i32_0 = arith.constant 0 : i32
    %c0_i32_1 = arith.constant 0 : i32
    return %c0_i32, %c0_i32_0 : i32, i32
  }
  func.func @transform_11(%arg0: i32) -> (i32, i32) {
    %c0_i32 = arith.constant 0 : i32
    %c0_i32_0 = arith.constant 0 : i32
    %c0_i32_1 = arith.constant 0 : i32
    return %c0_i32, %c0_i32_0 : i32, i32
  }
  func.func @transform_12(%arg0: i32) -> (i32, i32) {
    %c0_i32 = arith.constant 0 : i32
    %c0_i32_0 = arith.constant 0 : i32
    %c0_i32_1 = arith.constant 0 : i32
    return %c0_i32, %c0_i32_0 : i32, i32
  }
  func.func @transform_13(%arg0: i32) -> (i32, i32) {
    %c0_i32 = arith.constant 0 : i32
    %c0_i32_0 = arith.constant 0 : i32
    %c0_i32_1 = arith.constant 0 : i32
    return %c0_i32, %c0_i32_0 : i32, i32
  }
  func.func @transform_14(%arg0: i32) -> (i32, i32) {
    %c0_i32 = arith.constant 0 : i32
    %c0_i32_0 = arith.constant 0 : i32
    %c0_i32_1 = arith.constant 0 : i32
    return %c0_i32, %c0_i32_0 : i32, i32
  }
  func.func @transform_15(%arg0: i32) -> (i32, i32, i32) {
    %c0_i32 = arith.constant 0 : i32
    %c0_i32_0 = arith.constant 0 : i32
    %c0_i32_1 = arith.constant 0 : i32
    return %arg0, %c0_i32, %c0_i32_0 : i32, i32, i32
  }
}

</mosaic_0001>

<llo_original>
// kernel: tpu_custom_call.1
$region0: #{tpu_custom_call.1}
  #allocation0 [shape = 'u32[]', space=smem, size = 0x4, offset = 0x4, fixed_abs, tag = 'smem constant byte address 0x4 - core index']
  #allocation1 [shape = 'u32[144,128]{1,0:T(1,128)}', space=vmem, size = 0x12000, scoped, tag = 'internal scratch']
  %s0 = inlined_call_operand.hbm [shape: f32[2,8,128], index: 0, kind: input, shape index: {}]
  %s1 = inlined_call_operand.vmem [shape: f32[2,1,8], index: 1, kind: input, shape index: {}]
  %s2 = inlined_call_operand.vmem [shape: f32[2,1,128], index: 2, kind: input, shape index: {}]
  %s3 = inlined_call_operand.hbm [shape: f32[12,128], index: 3, kind: input, shape index: {}]
  %s4 = inlined_call_operand.vmem [shape: f32[1,128], index: 4, kind: input, shape index: {}]
  %s5 = inlined_call_operand.vmem [shape: f32[1,128], index: 5, kind: input, shape index: {}]
  %s6 = inlined_call_operand.hbm [shape: bf16[128,128], index: 6, kind: input, shape index: {}]
  %s7 = inlined_call_operand.hbm [shape: bf16[128,128], index: 7, kind: input, shape index: {}]
  %s8 = inlined_call_operand.hbm [shape: bf16[128,128], index: 8, kind: input, shape index: {}]
  %s9 = inlined_call_operand.hbm [shape: bf16[128,128], index: 9, kind: input, shape index: {}]
  %s10 = inlined_call_operand.hbm [shape: bf16[128,128], index: 10, kind: input, shape index: {}]
  %s11 = inlined_call_operand.hbm [shape: bf16[128,128], index: 11, kind: input, shape index: {}]
  %s12 = inlined_call_operand.hbm [shape: bf16[128,128], index: 12, kind: input, shape index: {}]
  %s13 = inlined_call_operand.hbm [shape: bf16[128,128], index: 13, kind: input, shape index: {}]
  %s14 = inlined_call_operand.hbm [shape: bf16[128,128], index: 14, kind: input, shape index: {}]
  %s15 = inlined_call_operand.hbm [shape: f32[2,1,128], index: 15, kind: output, shape index: {}]
  %s16 = sld [smem:[#allocation0]]
  $region137: #{tpu_custom_call.1} parent=0
    _
  %s18 = ssub.s32 1, %s16
  %s19 = scalar_select 0, %s18, %s16
  $region1: #{tpu_custom_call.1} parent=0
    #allocation2 [shape = 'u8[8192]{0}', space=vmem, size = 0x2000, scoped, tag = 'input window, operand 0']
    #allocation3 [shape = 's32[2]{0}', space=sflag, size = 0x8, scoped, tag = 'scoped memory for tpu_custom_call.1']
    #allocation4 [shape = 's32[2]{0}', space=sflag, size = 0x8, scoped, tag = 'scoped memory for tpu_custom_call.1']
    #allocation5 [shape = 'u8[8192]{0}', space=vmem, size = 0x2000, scoped, tag = 'input window, operand 3, single buffered']
    #allocation6 [shape = 's32[1]{0}', space=sflag, size = 0x4, scoped, tag = 'scoped memory for tpu_custom_call.1']
    #allocation7 [shape = 'u8[32768]{0}', space=vmem, size = 0x8000, scoped, tag = 'input window, operand 6, single buffered']
    #allocation8 [shape = 'u8[32768]{0}', space=vmem, size = 0x8000, scoped, tag = 'input window, operand 7, single buffered']
    #allocation9 [shape = 's32[1]{0}', space=sflag, size = 0x4, scoped, tag = 'scoped memory for tpu_custom_call.1']
    #allocation10 [shape = 'u8[32768]{0}', space=vmem, size = 0x8000, scoped, tag = 'input window, operand 8, single buffered']
    #allocation11 [shape = 'u8[32768]{0}', space=vmem, size = 0x8000, scoped, tag = 'input window, operand 9, single buffered']
    #allocation12 [shape = 's32[1]{0}', space=sflag, size = 0x4, scoped, tag = 'scoped memory for tpu_custom_call.1']
    #allocation13 [shape = 'u8[32768]{0}', space=vmem, size = 0x8000, scoped, tag = 'input window, operand 10, single buffered']
    #allocation14 [shape = 'u8[32768]{0}', space=vmem, size = 0x8000, scoped, tag = 'input window, operand 11, single buffered']
    #allocation15 [shape = 's32[1]{0}', space=sflag, size = 0x4, scoped, tag = 'scoped memory for tpu_custom_call.1']
    #allocation16 [shape = 'u8[32768]{0}', space=vmem, size = 0x8000, scoped, tag = 'input window, operand 12, single buffered']
    #allocation17 [shape = 'u8[32768]{0}', space=vmem, size = 0x8000, scoped, tag = 'input window, operand 13, single buffered']
    #allocation18 [shape = 's32[1]{0}', space=sflag, size = 0x4, scoped, tag = 'scoped memory for tpu_custom_call.1']
    #allocation19 [shape = 'u8[32768]{0}', space=vmem, size = 0x8000, scoped, tag = 'input window, operand 14, single buffered']
    #allocation20 [shape = 'u8[1024]{0}', space=vmem, size = 0x400, scoped, tag = 'output window, operand 0']
    %20 = vsyncpa [#allocation3], 0
    %s21 = scalar_lea.sflag [#allocation3], 1
    %22 = vsyncpa %s21, 0
    %23 = vsyncpa [#allocation6], 0
    %24 = vsyncpa [#allocation9], 0
    %25 = vsyncpa [#allocation12], 0
    %26 = vsyncpa [#allocation15], 0
    %27 = vsyncpa [#allocation18], 0
    %28 = vsyncpa [#allocation4], 0
    %s29 = scalar_lea.sflag [#allocation4], 1
    %30 = vsyncpa %s29, 0
    loop: start=0, step=1, limit=4
    $region2: #{tpu_custom_call.1} parent=1 // loop_pre_header
      _
    $region3: #{tpu_custom_call.1} parent=1 // loop_header
      %s32 = sphi 0, %s36
      %p33 = scmp.ge.s32.totalorder %s32, 4
      %s42 = sphi 0, %s44
      %s45 = sphi 0, %s42
      %s46 = sphi 0, %s45
      %s62 = sphi 0, %s46
      %s68 = sphi 0, %s70
      %s71 = sphi 0, %s68
      %s72 = sphi 0, %s71
      %s88 = sphi 0, %s72
      %s94 = sphi 0, %s96
      %s97 = sphi 0, %s94
      %s98 = sphi 0, %s97
      %s114 = sphi 0, %s98
      %s118 = sphi 0, %s118
      %s120 = sphi 0, %s118
      %s121 = sphi 0, %s120
      %s135 = sphi 0, %s121
      %s139 = sphi 0, %s139
      %s141 = sphi 0, %s139
      %s142 = sphi 0, %s141
      %s156 = sphi 0, %s142
      %s160 = sphi 0, %s160
      %s162 = sphi 0, %s160
      %s163 = sphi 0, %s162
      %s177 = sphi 0, %s163
      %s181 = sphi 0, %s181
      %s183 = sphi 0, %s181
      %s184 = sphi 0, %s183
      %s198 = sphi 0, %s184
      %s202 = sphi 0, %s202
      %s204 = sphi 0, %s202
      %s205 = sphi 0, %s204
      %s219 = sphi 0, %s205
      %s223 = sphi 0, %s223
      %s225 = sphi 0, %s223
      %s226 = sphi 0, %s225
      %s240 = sphi 0, %s226
      %s244 = sphi 0, %s244
      %s246 = sphi 0, %s244
      %s247 = sphi 0, %s246
      %s261 = sphi 0, %s247
      %s265 = sphi 0, %s265
      %s267 = sphi 0, %s265
      %s268 = sphi 0, %s267
      %s282 = sphi 0, %s268
      %s286 = sphi 0, %s286
      %s288 = sphi 0, %s286
      %s289 = sphi 0, %s288
      %s303 = sphi 0, %s289
      %s307 = sphi 0, %s307
      %s309 = sphi 0, %s307
      %s310 = sphi 0, %s309
      %s324 = sphi 0, %s310
      %s328 = sphi 0, %s328
      %s330 = sphi 0, %s328
      %s331 = sphi 0, %s330
      %s345 = sphi 0, %s331
      %s349 = sphi 0, %s349
      %s351 = sphi 0, %s349
      %s352 = sphi 0, %s351
      %s366 = sphi 0, %s352
      %s372 = sphi 0, %s374
      %s375 = sphi 0, %s372
      %s376 = sphi 0, %s375
      %s392 = sphi 0, %s376
    $region4: #{tpu_custom_call.1} parent=1 // loop_header_branch
      %35 = sbr.rel (%p33) target = $region8
    $region5: #{tpu_custom_call.1} parent=1 // loop_body
      %s37 = ssub.s32 %s32, 1
      %s38 = ssub.s32 %s32, 2
      %s39 = sadd.s32 %s32, 1
      %s40 = ssub.s32 %s32, %s39
      %p41 = scmp.eq.s32.totalorder %s40, 0
      %s43 = sadd.s32 %s42, 1
      %s44 = scalar_select %p41, %s42, %s43
      %p47 = pneg %p41
      %p48 = scmp.eq.s32.totalorder %s32, 1
      %p49 = por %p47, %p48
      %p50 = scmp.ne.s32.totalorder %s42, %s45
      %p51 = scmp.eq.s32.totalorder %s32, 0
      %p52 = por %p50, %p51
      %p53 = scmp.ne.s32.totalorder %s42, %s45
      %p54 = scmp.eq.s32.totalorder %s37, 1
      %p55 = por %p53, %p54
      %p56 = scmp.ne.s32.totalorder %s45, %s46
      %p57 = scmp.eq.s32.totalorder %s37, 0
      %p58 = por %p56, %p57
      %p59 = scmp.ne.s32.totalorder %s45, %s46
      %p60 = scmp.eq.s32.totalorder %s38, 1
      %p61 = por %p59, %p60
      %p63 = scmp.ne.s32.totalorder %s46, %s62
      %p64 = scmp.eq.s32.totalorder %s38, 0
      %p65 = por %p63, %p64
      %s66 = ssub.s32 %s32, %s39
      %p67 = scmp.eq.s32.totalorder %s66, 0
      %s69 = sadd.s32 %s68, 1
      %s70 = scalar_select %p67, %s68, %s69
      %p73 = pneg %p67
      %p74 = scmp.eq.s32.totalorder %s32, 1
      %p75 = por %p73, %p74
      %p76 = scmp.ne.s32.totalorder %s68, %s71
      %p77 = scmp.eq.s32.totalorder %s32, 0
      %p78 = por %p76, %p77
      %p79 = scmp.ne.s32.totalorder %s68, %s71
      %p80 = scmp.eq.s32.totalorder %s37, 1
      %p81 = por %p79, %p80
      %p82 = scmp.ne.s32.totalorder %s71, %s72
      %p83 = scmp.eq.s32.totalorder %s37, 0
      %p84 = por %p82, %p83
      %p85 = scmp.ne.s32.totalorder %s71, %s72
      %p86 = scmp.eq.s32.totalorder %s38, 1
      %p87 = por %p85, %p86
      %p89 = scmp.ne.s32.totalorder %s72, %s88
      %p90 = scmp.eq.s32.totalorder %s38, 0
      %p91 = por %p89, %p90
      %s92 = ssub.s32 %s32, %s39
      %p93 = scmp.eq.s32.totalorder %s92, 0
      %s95 = sadd.s32 %s94, 1
      %s96 = scalar_select %p93, %s94, %s95
      %p99 = pneg %p93
      %p100 = scmp.eq.s32.totalorder %s32, 1
      %p101 = por %p99, %p100
      %p102 = scmp.ne.s32.totalorder %s94, %s97
      %p103 = scmp.eq.s32.totalorder %s32, 0
      %p104 = por %p102, %p103
      %p105 = scmp.ne.s32.totalorder %s94, %s97
      %p106 = scmp.eq.s32.totalorder %s37, 1
      %p107 = por %p105, %p106
      %p108 = scmp.ne.s32.totalorder %s97, %s98
      %p109 = scmp.eq.s32.totalorder %s37, 0
      %p110 = por %p108, %p109
      %p111 = scmp.ne.s32.totalorder %s97, %s98
      %p112 = scmp.eq.s32.totalorder %s38, 1
      %p113 = por %p111, %p112
      %p115 = scmp.ne.s32.totalorder %s98, %s114
      %p116 = scmp.eq.s32.totalorder %s38, 0
      %p117 = por %p115, %p116
      %s119 = sadd.s32 %s118, 1
      %p122 = scmp.eq.s32.totalorder %s32, 1
      %p123 = scmp.ne.s32.totalorder %s118, %s120
      %p124 = scmp.eq.s32.totalorder %s32, 0
      %p125 = por %p123, %p124
      %p126 = scmp.ne.s32.totalorder %s118, %s120
      %p127 = scmp.eq.s32.totalorder %s37, 1
      %p128 = por %p126, %p127
      %p129 = scmp.ne.s32.totalorder %s120, %s121
      %p130 = scmp.eq.s32.totalorder %s37, 0
      %p131 = por %p129, %p130
      %p132 = scmp.ne.s32.totalorder %s120, %s121
      %p133 = scmp.eq.s32.totalorder %s38, 1
      %p134 = por %p132, %p133
      %p136 = scmp.ne.s32.totalorder %s121, %s135
      %p137 = scmp.eq.s32.totalorder %s38, 0
      %p138 = por %p136, %p137
      %s140 = sadd.s32 %s139, 1
      %p143 = scmp.eq.s32.totalorder %s32, 1
      %p144 = scmp.ne.s32.totalorder %s139, %s141
      %p145 = scmp.eq.s32.totalorder %s32, 0
      %p146 = por %p144, %p145
      %p147 = scmp.ne.s32.totalorder %s139, %s141
      %p148 = scmp.eq.s32.totalorder %s37, 1
      %p149 = por %p147, %p148
      %p150 = scmp.ne.s32.totalorder %s141, %s142
      %p151 = scmp.eq.s32.totalorder %s37, 0
      %p152 = por %p150, %p151
      %p153 = scmp.ne.s32.totalorder %s141, %s142
      %p154 = scmp.eq.s32.totalorder %s38, 1
      %p155 = por %p153, %p154
      %p157 = scmp.ne.s32.totalorder %s142, %s156
      %p158 = scmp.eq.s32.totalorder %s38, 0
      %p159 = por %p157, %p158
      %s161 = sadd.s32 %s160, 1
      %p164 = scmp.eq.s32.totalorder %s32, 1
      %p165 = scmp.ne.s32.totalorder %s160, %s162
      %p166 = scmp.eq.s32.totalorder %s32, 0
      %p167 = por %p165, %p166
      %p168 = scmp.ne.s32.totalorder %s160, %s162
      %p169 = scmp.eq.s32.totalorder %s37, 1
      %p170 = por %p168, %p169
      %p171 = scmp.ne.s32.totalorder %s162, %s163
      %p172 = scmp.eq.s32.totalorder %s37, 0
      %p173 = por %p171, %p172
      %p174 = scmp.ne.s32.totalorder %s162, %s163
      %p175 = scmp.eq.s32.totalorder %s38, 1
      %p176 = por %p174, %p175
      %p178 = scmp.ne.s32.totalorder %s163, %s177
      %p179 = scmp.eq.s32.totalorder %s38, 0
      %p180 = por %p178, %p179
      %s182 = sadd.s32 %s181, 1
      %p185 = scmp.eq.s32.totalorder %s32, 1
      %p186 = scmp.ne.s32.totalorder %s181, %s183
      %p187 = scmp.eq.s32.totalorder %s32, 0
      %p188 = por %p186, %p187
      %p189 = scmp.ne.s32.totalorder %s181, %s183
      %p190 = scmp.eq.s32.totalorder %s37, 1
      %p191 = por %p189, %p190
      %p192 = scmp.ne.s32.totalorder %s183, %s184
      %p193 = scmp.eq.s32.totalorder %s37, 0
      %p194 = por %p192, %p193
      %p195 = scmp.ne.s32.totalorder %s183, %s184
      %p196 = scmp.eq.s32.totalorder %s38, 1
      %p197 = por %p195, %p196
      %p199 = scmp.ne.s32.totalorder %s184, %s198
      %p200 = scmp.eq.s32.totalorder %s38, 0
      %p201 = por %p199, %p200
      %s203 = sadd.s32 %s202, 1
      %p206 = scmp.eq.s32.totalorder %s32, 1
      %p207 = scmp.ne.s32.totalorder %s202, %s204
      %p208 = scmp.eq.s32.totalorder %s32, 0
      %p209 = por %p207, %p208
      %p210 = scmp.ne.s32.totalorder %s202, %s204
      %p211 = scmp.eq.s32.totalorder %s37, 1
      %p212 = por %p210, %p211
      %p213 = scmp.ne.s32.totalorder %s204, %s205
      %p214 = scmp.eq.s32.totalorder %s37, 0
      %p215 = por %p213, %p214
      %p216 = scmp.ne.s32.totalorder %s204, %s205
      %p217 = scmp.eq.s32.totalorder %s38, 1
      %p218 = por %p216, %p217
      %p220 = scmp.ne.s32.totalorder %s205, %s219
      %p221 = scmp.eq.s32.totalorder %s38, 0
      %p222 = por %p220, %p221
      %s224 = sadd.s32 %s223, 1
      %p227 = scmp.eq.s32.totalorder %s32, 1
      %p228 = scmp.ne.s32.totalorder %s223, %s225
      %p229 = scmp.eq.s32.totalorder %s32, 0
      %p230 = por %p228, %p229
      %p231 = scmp.ne.s32.totalorder %s223, %s225
      %p232 = scmp.eq.s32.totalorder %s37, 1
      %p233 = por %p231, %p232
      %p234 = scmp.ne.s32.totalorder %s225, %s226
      %p235 = scmp.eq.s32.totalorder %s37, 0
      %p236 = por %p234, %p235
      %p237 = scmp.ne.s32.totalorder %s225, %s226
      %p238 = scmp.eq.s32.totalorder %s38, 1
      %p239 = por %p237, %p238
      %p241 = scmp.ne.s32.totalorder %s226, %s240
      %p242 = scmp.eq.s32.totalorder %s38, 0
      %p243 = por %p241, %p242
      %s245 = sadd.s32 %s244, 1
      %p248 = scmp.eq.s32.totalorder %s32, 1
      %p249 = scmp.ne.s32.totalorder %s244, %s246
      %p250 = scmp.eq.s32.totalorder %s32, 0
      %p251 = por %p249, %p250
      %p252 = scmp.ne.s32.totalorder %s244, %s246
      %p253 = scmp.eq.s32.totalorder %s37, 1
      %p254 = por %p252, %p253
      %p255 = scmp.ne.s32.totalorder %s246, %s247
      %p256 = scmp.eq.s32.totalorder %s37, 0
      %p257 = por %p255, %p256
      %p258 = scmp.ne.s32.totalorder %s246, %s247
      %p259 = scmp.eq.s32.totalorder %s38, 1
      %p260 = por %p258, %p259
      %p262 = scmp.ne.s32.totalorder %s247, %s261
      %p263 = scmp.eq.s32.totalorder %s38, 0
      %p264 = por %p262, %p263
      %s266 = sadd.s32 %s265, 1
      %p269 = scmp.eq.s32.totalorder %s32, 1
      %p270 = scmp.ne.s32.totalorder %s265, %s267
      %p271 = scmp.eq.s32.totalorder %s32, 0
      %p272 = por %p270, %p271
      %p273 = scmp.ne.s32.totalorder %s265, %s267
      %p274 = scmp.eq.s32.totalorder %s37, 1
      %p275 = por %p273, %p274
      %p276 = scmp.ne.s32.totalorder %s267, %s268
      %p277 = scmp.eq.s32.totalorder %s37, 0
      %p278 = por %p276, %p277
      %p279 = scmp.ne.s32.totalorder %s267, %s268
      %p280 = scmp.eq.s32.totalorder %s38, 1
      %p281 = por %p279, %p280
      %p283 = scmp.ne.s32.totalorder %s268, %s282
      %p284 = scmp.eq.s32.totalorder %s38, 0
      %p285 = por %p283, %p284
      %s287 = sadd.s32 %s286, 1
      %p290 = scmp.eq.s32.totalorder %s32, 1
      %p291 = scmp.ne.s32.totalorder %s286, %s288
      %p292 = scmp.eq.s32.totalorder %s32, 0
      %p293 = por %p291, %p292
      %p294 = scmp.ne.s32.totalorder %s286, %s288
      %p295 = scmp.eq.s32.totalorder %s37, 1
      %p296 = por %p294, %p295
      %p297 = scmp.ne.s32.totalorder %s288, %s289
      %p298 = scmp.eq.s32.totalorder %s37, 0
      %p299 = por %p297, %p298
      %p300 = scmp.ne.s32.totalorder %s288, %s289
      %p301 = scmp.eq.s32.totalorder %s38, 1
      %p302 = por %p300, %p301
      %p304 = scmp.ne.s32.totalorder %s289, %s303
      %p305 = scmp.eq.s32.totalorder %s38, 0
      %p306 = por %p304, %p305
      %s308 = sadd.s32 %s307, 1
      %p311 = scmp.eq.s32.totalorder %s32, 1
      %p312 = scmp.ne.s32.totalorder %s307, %s309
      %p313 = scmp.eq.s32.totalorder %s32, 0
      %p314 = por %p312, %p313
      %p315 = scmp.ne.s32.totalorder %s307, %s309
      %p316 = scmp.eq.s32.totalorder %s37, 1
      %p317 = por %p315, %p316
      %p318 = scmp.ne.s32.totalorder %s309, %s310
      %p319 = scmp.eq.s32.totalorder %s37, 0
      %p320 = por %p318, %p319
      %p321 = scmp.ne.s32.totalorder %s309, %s310
      %p322 = scmp.eq.s32.totalorder %s38, 1
      %p323 = por %p321, %p322
      %p325 = scmp.ne.s32.totalorder %s310, %s324
      %p326 = scmp.eq.s32.totalorder %s38, 0
      %p327 = por %p325, %p326
      %s329 = sadd.s32 %s328, 1
      %p332 = scmp.eq.s32.totalorder %s32, 1
      %p333 = scmp.ne.s32.totalorder %s328, %s330
      %p334 = scmp.eq.s32.totalorder %s32, 0
      %p335 = por %p333, %p334
      %p336 = scmp.ne.s32.totalorder %s328, %s330
      %p337 = scmp.eq.s32.totalorder %s37, 1
      %p338 = por %p336, %p337
      %p339 = scmp.ne.s32.totalorder %s330, %s331
      %p340 = scmp.eq.s32.totalorder %s37, 0
      %p341 = por %p339, %p340
      %p342 = scmp.ne.s32.totalorder %s330, %s331
      %p343 = scmp.eq.s32.totalorder %s38, 1
      %p344 = por %p342, %p343
      %p346 = scmp.ne.s32.totalorder %s331, %s345
      %p347 = scmp.eq.s32.totalorder %s38, 0
      %p348 = por %p346, %p347
      %s350 = sadd.s32 %s349, 1
      %p353 = scmp.eq.s32.totalorder %s32, 1
      %p354 = scmp.ne.s32.totalorder %s349, %s351
      %p355 = scmp.eq.s32.totalorder %s32, 0
      %p356 = por %p354, %p355
      %p357 = scmp.ne.s32.totalorder %s349, %s351
      %p358 = scmp.eq.s32.totalorder %s37, 1
      %p359 = por %p357, %p358
      %p360 = scmp.ne.s32.totalorder %s351, %s352
      %p361 = scmp.eq.s32.totalorder %s37, 0
      %p362 = por %p360, %p361
      %p363 = scmp.ne.s32.totalorder %s351, %s352
      %p364 = scmp.eq.s32.totalorder %s38, 1
      %p365 = por %p363, %p364
      %p367 = scmp.ne.s32.totalorder %s352, %s366
      %p368 = scmp.eq.s32.totalorder %s38, 0
      %p369 = por %p367, %p368
      %s370 = ssub.s32 %s32, %s39
      %p371 = scmp.eq.s32.totalorder %s370, 0
      %s373 = sadd.s32 %s372, 1
      %s374 = scalar_select %p371, %s372, %s373
      %p377 = pneg %p371
      %p378 = scmp.eq.s32.totalorder %s32, 1
      %p379 = por %p377, %p378
      %p380 = scmp.ne.s32.totalorder %s372, %s375
      %p381 = scmp.eq.s32.totalorder %s32, 0
      %p382 = por %p380, %p381
      %p383 = scmp.ne.s32.totalorder %s372, %s375
      %p384 = scmp.eq.s32.totalorder %s37, 1
      %p385 = por %p383, %p384
      %p386 = scmp.ne.s32.totalorder %s375, %s376
      %p387 = scmp.eq.s32.totalorder %s37, 0
      %p388 = por %p386, %p387
      %p389 = scmp.ne.s32.totalorder %s375, %s376
      %p390 = scmp.eq.s32.totalorder %s38, 1
      %p391 = por %p389, %p390
      %p393 = scmp.ne.s32.totalorder %s376, %s392
      %p394 = scmp.eq.s32.totalorder %s38, 0
      %p395 = por %p393, %p394
      %p396 = scmp.le.s32.totalorder 1, %s32
      %p397 = scmp.lt.s32.totalorder %s32, 3
      %p398 = pnand %p396, %p397
      %p399 = pneg %p398
      // Predicated region
      $region9: #{tpu_custom_call.1} parent=5 // pred_check
        _
      $region10: #{tpu_custom_call.1} parent=5 // pred_check_branch
        %401 = sbr.rel (%p398) target = $region12
      $region11: #{tpu_custom_call.1} parent=5 // pred_region
        %s402 = ssub.s32 %s32, 1
        // Predicated region
        $region13: #{tpu_custom_call.1} parent=11 // pred_check
          %p403 = pneg %p131
        $region14: #{tpu_custom_call.1} parent=11 // pred_check_branch
          %405 = sbr.rel (%p403) target = $region16
        $region15: #{tpu_custom_call.1} parent=11 // pred_region
          %s407 = ssub.s32 256, 256
          %408 = vsyncadd [#allocation6], %s407
          %s409 = sshll.u32 [#allocation5], 4
          %s410 = int_to_ptr.vmem [resolvable:$true] %s409
          %415 = dma.hbm_to_vmem [thread:$0]  %s3, 256, %s410, [#allocation6], 128, 128, 8
        $region16: #{tpu_custom_call.1} parent=11 // pred_fallthru
          _
        // Predicated region
        $region17: #{tpu_custom_call.1} parent=11 // pred_check
          %p416 = pneg %p152
        $region18: #{tpu_custom_call.1} parent=11 // pred_check_branch
          %418 = sbr.rel (%p416) target = $region20
        $region19: #{tpu_custom_call.1} parent=11 // pred_region
          _
        $region20: #{tpu_custom_call.1} parent=11 // pred_fallthru
          _
        // Predicated region
        $region21: #{tpu_custom_call.1} parent=11 // pred_check
          %p419 = pneg %p173
        $region22: #{tpu_custom_call.1} parent=11 // pred_check_branch
          %421 = sbr.rel (%p419) target = $region24
        $region23: #{tpu_custom_call.1} parent=11 // pred_region
          _
        $region24: #{tpu_custom_call.1} parent=11 // pred_fallthru
          _
        // Predicated region
        $region25: #{tpu_custom_call.1} parent=11 // pred_check
          %p422 = pneg %p194
        $region26: #{tpu_custom_call.1} parent=11 // pred_check_branch
          %424 = sbr.rel (%p422) target = $region28
        $region27: #{tpu_custom_call.1} parent=11 // pred_region
          %s426 = ssub.s32 1024, 1024
          %427 = vsyncadd [#allocation6], %s426
          %s428 = sshll.u32 [#allocation7], 4
          %s429 = int_to_ptr.vmem [resolvable:$true] %s428
          %434 = dma.hbm_to_vmem [thread:$0]  %s6, 1024, %s429, [#allocation6], 64, 64, 4
        $region28: #{tpu_custom_call.1} parent=11 // pred_fallthru
          _
        // Predicated region
        $region29: #{tpu_custom_call.1} parent=11 // pred_check
          %p435 = pneg %p215
        $region30: #{tpu_custom_call.1} parent=11 // pred_check_branch
          %437 = sbr.rel (%p435) target = $region32
        $region31: #{tpu_custom_call.1} parent=11 // pred_region
          %s439 = ssub.s32 1024, 1024
          %440 = vsyncadd [#allocation9], %s439
          %s441 = sshll.u32 [#allocation8], 4
          %s442 = int_to_ptr.vmem [resolvable:$true] %s441
          %447 = dma.hbm_to_vmem [thread:$0]  %s7, 1024, %s442, [#allocation9], 64, 64, 4
        $region32: #{tpu_custom_call.1} parent=11 // pred_fallthru
          _
        // Predicated region
        $region33: #{tpu_custom_call.1} parent=11 // pred_check
          %p448 = pneg %p236
        $region34: #{tpu_custom_call.1} parent=11 // pred_check_branch
          %450 = sbr.rel (%p448) target = $region36
        $region35: #{tpu_custom_call.1} parent=11 // pred_region
          %s452 = ssub.s32 1024, 1024
          %453 = vsyncadd [#allocation9], %s452
          %s454 = sshll.u32 [#allocation10], 4
          %s455 = int_to_ptr.vmem [resolvable:$true] %s454
          %460 = dma.hbm_to_vmem [thread:$0]  %s8, 1024, %s455, [#allocation9], 64, 64, 4
        $region36: #{tpu_custom_call.1} parent=11 // pred_fallthru
          _
        // Predicated region
        $region37: #{tpu_custom_call.1} parent=11 // pred_check
          %p461 = pneg %p257
        $region38: #{tpu_custom_call.1} parent=11 // pred_check_branch
          %463 = sbr.rel (%p461) target = $region40
        $region39: #{tpu_custom_call.1} parent=11 // pred_region
          %s465 = ssub.s32 1024, 1024
          %466 = vsyncadd [#allocation12], %s465
          %s467 = sshll.u32 [#allocation11], 4
          %s468 = int_to_ptr.vmem [resolvable:$true] %s467
          %473 = dma.hbm_to_vmem [thread:$0]  %s9, 1024, %s468, [#allocation12], 64, 64, 4
        $region40: #{tpu_custom_call.1} parent=11 // pred_fallthru
          _
        // Predicated region
        $region41: #{tpu_custom_call.1} parent=11 // pred_check
          %p474 = pneg %p278
        $region42: #{tpu_custom_call.1} parent=11 // pred_check_branch
          %476 = sbr.rel (%p474) target = $region44
        $region43: #{tpu_custom_call.1} parent=11 // pred_region
          %s478 = ssub.s32 1024, 1024
          %479 = vsyncadd [#allocation12], %s478
          %s480 = sshll.u32 [#allocation13], 4
          %s481 = int_to_ptr.vmem [resolvable:$true] %s480
          %486 = dma.hbm_to_vmem [thread:$0]  %s10, 1024, %s481, [#allocation12], 64, 64, 4
        $region44: #{tpu_custom_call.1} parent=11 // pred_fallthru
          _
        // Predicated region
        $region45: #{tpu_custom_call.1} parent=11 // pred_check
          %p487 = pneg %p299
        $region46: #{tpu_custom_call.1} parent=11 // pred_check_branch
          %489 = sbr.rel (%p487) target = $region48
        $region47: #{tpu_custom_call.1} parent=11 // pred_region
          %s491 = ssub.s32 1024, 1024
          %492 = vsyncadd [#allocation15], %s491
          %s493 = sshll.u32 [#allocation14], 4
          %s494 = int_to_ptr.vmem [resolvable:$true] %s493
          %499 = dma.hbm_to_vmem [thread:$0]  %s11, 1024, %s494, [#allocation15], 64, 64, 4
        $region48: #{tpu_custom_call.1} parent=11 // pred_fallthru
          _
        // Predicated region
        $region49: #{tpu_custom_call.1} parent=11 // pred_check
          %p500 = pneg %p320
        $region50: #{tpu_custom_call.1} parent=11 // pred_check_branch
          %502 = sbr.rel (%p500) target = $region52
        $region51: #{tpu_custom_call.1} parent=11 // pred_region
          %s504 = ssub.s32 1024, 1024
          %505 = vsyncadd [#allocation15], %s504
          %s506 = sshll.u32 [#allocation16], 4
          %s507 = int_to_ptr.vmem [resolvable:$true] %s506
          %512 = dma.hbm_to_vmem [thread:$0]  %s12, 1024, %s507, [#allocation15], 64, 64, 4
        $region52: #{tpu_custom_call.1} parent=11 // pred_fallthru
          _
        // Predicated region
        $region53: #{tpu_custom_call.1} parent=11 // pred_check
          %p513 = pneg %p341
        $region54: #{tpu_custom_call.1} parent=11 // pred_check_branch
          %515 = sbr.rel (%p513) target = $region56
        $region55: #{tpu_custom_call.1} parent=11 // pred_region
          %s517 = ssub.s32 1024, 1024
          %518 = vsyncadd [#allocation18], %s517
          %s519 = sshll.u32 [#allocation17], 4
          %s520 = int_to_ptr.vmem [resolvable:$true] %s519
          %525 = dma.hbm_to_vmem [thread:$0]  %s13, 1024, %s520, [#allocation18], 64, 64, 4
        $region56: #{tpu_custom_call.1} parent=11 // pred_fallthru
          _
        // Predicated region
        $region57: #{tpu_custom_call.1} parent=11 // pred_check
          %p526 = pneg %p362
        $region58: #{tpu_custom_call.1} parent=11 // pred_check_branch
          %528 = sbr.rel (%p526) target = $region60
        $region59: #{tpu_custom_call.1} parent=11 // pred_region
          %s530 = ssub.s32 1024, 1024
          %531 = vsyncadd [#allocation18], %s530
          %s532 = sshll.u32 [#allocation19], 4
          %s533 = int_to_ptr.vmem [resolvable:$true] %s532
          %538 = dma.hbm_to_vmem [thread:$0]  %s14, 1024, %s533, [#allocation18], 64, 64, 4
        $region60: #{tpu_custom_call.1} parent=11 // pred_fallthru
          _
      $region12: #{tpu_custom_call.1} parent=5 // pred_fallthru
        _
      %p539 = scmp.lt.s32.totalorder %s32, 2
      // Predicated region
      $region61: #{tpu_custom_call.1} parent=5 // pred_check
        %p540 = pneg %p539
      $region62: #{tpu_custom_call.1} parent=5 // pred_check_branch
        %542 = sbr.rel (%p540) target = $region64
      $region63: #{tpu_custom_call.1} parent=5 // pred_region
        // Predicated region
        $region65: #{tpu_custom_call.1} parent=63 // pred_check
          %p543 = pneg %p52
        $region66: #{tpu_custom_call.1} parent=63 // pred_check_branch
          %545 = sbr.rel (%p543) target = $region68
        $region67: #{tpu_custom_call.1} parent=63 // pred_region
          %s546 = sand.u32 %s42, 1
          %s547 = scalar_lea.sflag [#allocation3], %s546
          %s548 = sand.u32 %s42, 1
          %s549 = smul.addr %s548, 8
          %s550 = scalar_lea.vmem [#allocation2], %s549
          %s552 = ssub.s32 128, 128
          %553 = vsyncadd %s547, %s552
          %s554 = smul.addr %s32, 128
          %s555 = scalar_lea.hbm %s0, %s554
          %s557 = sshll.u32 %s550, 4
          %s558 = int_to_ptr.vmem [resolvable:$true] %s557
          %560 = dma.hbm_to_vmem [thread:$0]  %s555, 128, %s558, %s547
        $region68: #{tpu_custom_call.1} parent=63 // pred_fallthru
          _
        // Predicated region
        $region69: #{tpu_custom_call.1} parent=63 // pred_check
          %p561 = pneg %p78
        $region70: #{tpu_custom_call.1} parent=63 // pred_check_branch
          %563 = sbr.rel (%p561) target = $region72
        $region71: #{tpu_custom_call.1} parent=63 // pred_region
          %p564 = scmp.lt.s32.totalorder %s32, 1
          %s565 = scalar_select %p564, %s32, 1
          %s566 = scalar_lea.vmem %s1, %s565
        $region72: #{tpu_custom_call.1} parent=63 // pred_fallthru
          _
        // Predicated region
        $region73: #{tpu_custom_call.1} parent=63 // pred_check
          %p567 = pneg %p104
        $region74: #{tpu_custom_call.1} parent=63 // pred_check_branch
          %569 = sbr.rel (%p567) target = $region76
        $region75: #{tpu_custom_call.1} parent=63 // pred_region
          %p570 = scmp.lt.s32.totalorder %s32, 1
          %s571 = scalar_select %p570, %s32, 1
          %s572 = scalar_lea.vmem %s2, %s571
        $region76: #{tpu_custom_call.1} parent=63 // pred_fallthru
          _
      $region64: #{tpu_custom_call.1} parent=5 // pred_fallthru
        _
      %p573 = scmp.le.s32.totalorder 1, %s32
      %p574 = scmp.lt.s32.totalorder %s32, 3
      %p575 = pnand %p573, %p574
      %p576 = pneg %p575
      // Predicated region
      $region77: #{tpu_custom_call.1} parent=5 // pred_check
        _
      $region78: #{tpu_custom_call.1} parent=5 // pred_check_branch
        %578 = sbr.rel (%p575) target = $region80
      $region79: #{tpu_custom_call.1} parent=5 // pred_region
        %s579 = ssub.s32 %s32, 1
        %s580 = sand.u32 %s45, 1
        %s581 = scalar_lea.sflag [#allocation3], %s580
        %s582 = sand.u32 %s45, 1
        %s583 = smul.addr %s582, 8
        %s584 = scalar_lea.vmem [#allocation2], %s583
        // Predicated region
        $region81: #{tpu_custom_call.1} parent=79 // pred_check
          %p585 = pneg %p58
        $region82: #{tpu_custom_call.1} parent=79 // pred_check_branch
          %587 = sbr.rel (%p585) target = $region84
        $region83: #{tpu_custom_call.1} parent=79 // pred_region
          %588 = dma.done %s581, 128
        $region84: #{tpu_custom_call.1} parent=79 // pred_fallthru
          _
        // Predicated region
        $region85: #{tpu_custom_call.1} parent=79 // pred_check
          %p589 = pneg %p131
        $region86: #{tpu_custom_call.1} parent=79 // pred_check_branch
          %591 = sbr.rel (%p589) target = $region88
        $region87: #{tpu_custom_call.1} parent=79 // pred_region
          %592 = dma.done [#allocation6], 256
        $region88: #{tpu_custom_call.1} parent=79 // pred_fallthru
          _
        // Predicated region
        $region89: #{tpu_custom_call.1} parent=79 // pred_check
          %p593 = pneg %p194
        $region90: #{tpu_custom_call.1} parent=79 // pred_check_branch
          %595 = sbr.rel (%p593) target = $region92
        $region91: #{tpu_custom_call.1} parent=79 // pred_region
          %596 = dma.done [#allocation6], 1024
        $region92: #{tpu_custom_call.1} parent=79 // pred_fallthru
          _
        // Predicated region
        $region93: #{tpu_custom_call.1} parent=79 // pred_check
          %p597 = pneg %p215
        $region94: #{tpu_custom_call.1} parent=79 // pred_check_branch
          %599 = sbr.rel (%p597) target = $region96
        $region95: #{tpu_custom_call.1} parent=79 // pred_region
          %600 = dma.done [#allocation9], 1024
        $region96: #{tpu_custom_call.1} parent=79 // pred_fallthru
          _
        // Predicated region
        $region97: #{tpu_custom_call.1} parent=79 // pred_check
          %p601 = pneg %p236
        $region98: #{tpu_custom_call.1} parent=79 // pred_check_branch
          %603 = sbr.rel (%p601) target = $region100
        $region99: #{tpu_custom_call.1} parent=79 // pred_region
          %604 = dma.done [#allocation9], 1024
        $region100: #{tpu_custom_call.1} parent=79 // pred_fallthru
          _
        // Predicated region
        $region101: #{tpu_custom_call.1} parent=79 // pred_check
          %p605 = pneg %p257
        $region102: #{tpu_custom_call.1} parent=79 // pred_check_branch
          %607 = sbr.rel (%p605) target = $region104
        $region103: #{tpu_custom_call.1} parent=79 // pred_region
          %608 = dma.done [#allocation12], 1024
        $region104: #{tpu_custom_call.1} parent=79 // pred_fallthru
          _
        // Predicated region
        $region105: #{tpu_custom_call.1} parent=79 // pred_check
          %p609 = pneg %p278
        $region106: #{tpu_custom_call.1} parent=79 // pred_check_branch
          %611 = sbr.rel (%p609) target = $region108
        $region107: #{tpu_custom_call.1} parent=79 // pred_region
          %612 = dma.done [#allocation12], 1024
        $region108: #{tpu_custom_call.1} parent=79 // pred_fallthru
          _
        // Predicated region
        $region109: #{tpu_custom_call.1} parent=79 // pred_check
          %p613 = pneg %p299
        $region110: #{tpu_custom_call.1} parent=79 // pred_check_branch
          %615 = sbr.rel (%p613) target = $region112
        $region111: #{tpu_custom_call.1} parent=79 // pred_region
          %616 = dma.done [#allocation15], 1024
        $region112: #{tpu_custom_call.1} parent=79 // pred_fallthru
          _
        // Predicated region
        $region113: #{tpu_custom_call.1} parent=79 // pred_check
          %p617 = pneg %p320
        $region114: #{tpu_custom_call.1} parent=79 // pred_check_branch
          %619 = sbr.rel (%p617) target = $region116
        $region115: #{tpu_custom_call.1} parent=79 // pred_region
          %620 = dma.done [#allocation15], 1024
        $region116: #{tpu_custom_call.1} parent=79 // pred_fallthru
          _
        // Predicated region
        $region117: #{tpu_custom_call.1} parent=79 // pred_check
          %p621 = pneg %p341
        $region118: #{tpu_custom_call.1} parent=79 // pred_check_branch
          %623 = sbr.rel (%p621) target = $region120
        $region119: #{tpu_custom_call.1} parent=79 // pred_region
          %624 = dma.done [#allocation18], 1024
        $region120: #{tpu_custom_call.1} parent=79 // pred_fallthru
          _
        // Predicated region
        $region121: #{tpu_custom_call.1} parent=79 // pred_check
          %p625 = pneg %p362
        $region122: #{tpu_custom_call.1} parent=79 // pred_check_branch
          %627 = sbr.rel (%p625) target = $region124
        $region123: #{tpu_custom_call.1} parent=79 // pred_region
          %628 = dma.done [#allocation18], 1024
        $region124: #{tpu_custom_call.1} parent=79 // pred_fallthru
          _
        %s629 = sand.u32 %s45, 1
        %s630 = scalar_lea.sflag [#allocation3], %s629
        %s631 = sand.u32 %s45, 1
        %s632 = smul.addr %s631, 8
        %s633 = scalar_lea.vmem [#allocation2], %s632
        %p634 = pneg %p58
        %p635 = pneg %p55
        %p636 = scmp.lt.s32.totalorder %s37, 1
        %s637 = scalar_select %p636, %s37, 1
        %s638 = scalar_lea.vmem %s1, %s637
        %p639 = pneg %p84
        %p640 = pneg %p81
        %p641 = scmp.lt.s32.totalorder %s37, 1
        %s642 = scalar_select %p641, %s37, 1
        %s643 = scalar_lea.vmem %s2, %s642
        %p644 = pneg %p110
        %p645 = pneg %p107
        %p646 = pneg %p131
        %p647 = pneg %p128
        %p648 = pneg %p152
        %p649 = pneg %p149
        %p650 = pneg %p173
        %p651 = pneg %p170
        %p652 = pneg %p194
        %p653 = pneg %p191
        %p654 = pneg %p215
        %p655 = pneg %p212
        %p656 = pneg %p236
        %p657 = pneg %p233
        %p658 = pneg %p257
        %p659 = pneg %p254
        %p660 = pneg %p278
        %p661 = pneg %p275
        %p662 = pneg %p299
        %p663 = pneg %p296
        %p664 = pneg %p320
        %p665 = pneg %p317
        %p666 = pneg %p341
        %p667 = pneg %p338
        %p668 = pneg %p362
        %p669 = pneg %p359
        %p670 = pneg %p388
        %p671 = pneg %p385
        %s672 = sand.u32 %s375, 1
        %s673 = scalar_lea.sflag [#allocation4], %s672
        %s674 = sand.u32 %s375, 1
        %s675 = scalar_lea.vmem [#allocation20], %s674
        %p676 = scmp.lt.s32.totalorder %s37, 1
        %s677 = scalar_select %p676, %s37, 1
        %s678 = scalar_lea.vmem %s1, %s677
        %p679 = scmp.lt.s32.totalorder %s37, 1
        %s680 = scalar_select %p679, %s37, 1
        %s681 = scalar_lea.vmem %s2, %s680
        %v683 = vld [vmem:[#allocation5] sm:$0x1]
        %v684 = vld [vmem:[#allocation5 + $0x1] sm:$0x1]
        %v685 = vld [vmem:[#allocation5 + $0x2] sm:$0x1]
        %v686 = vld [vmem:[#allocation5 + $0x3] sm:$0x1]
        %v687 = vld [vmem:[#allocation5 + $0x4] sm:$0x1]
        %v688 = vld [vmem:[#allocation5 + $0x5] sm:$0x1]
        %v689 = vld [vmem:[#allocation5 + $0x6] sm:$0x1]
        %v690 = vld [vmem:[#allocation5 + $0x7] sm:$0x1]
        %v691 = vld [vmem:[#allocation5 + $0x8] sm:$0x1]
        %v692 = vld [vmem:[#allocation5 + $0x9] sm:$0x1]
        %v693 = vld [vmem:[#allocation5 + $0xa] sm:$0x1]
        %v694 = vld [vmem:[#allocation5 + $0xb] sm:$0x1]
        %v695 = vld [vmem:[%s584] sm:$0xff]
        %696 = vadd.xlane.f32.xlu0 %v695
        %v697 = vpop.xlane.xlu0 %696
        %v698 = vmul.f32 %v695, %v695
        %699 = vadd.xlane.f32.xlu0 %v698
        %v700 = vpop.xlane.xlu0 %699
        %v701 = vrcp.pop 32.0
        %v702 = vmul.f32 %v697, %v701
        %v703 = vmul.f32 %v700, %v701
        %v704 = vmul.f32 %v702, %v702
        %v705 = vsub.f32 %v703, %v704
        %v706 = vsub.f32 %v695, %v702
        %v707 = vadd.f32 %v705, 1e-12
        %v708 = vrsqrt.pop %v707
        %v709 = vmul.f32 %v706, %v708
        %v710 = vlaneseq
        %v711 = vshrl.u32 %v710, 7
        %v712 = vsub.s32 0, %v711
        %v713 = vrot.slane %v683, %v712
        %v714 = vmul.f32 %v709, %v713
        %v715 = vlaneseq
        %v716 = vshrl.u32 %v715, 7
        %v717 = vsub.s32 0, %v716
        %v718 = vrot.slane %v684, %v717
        %v719 = vadd.f32 %v714, %v718
        %v720 = vpack.c.bf16 %v719, %v719
        %v721 = vld [vmem:[#allocation7] sm:$0xf]
        %v722 = vld [vmem:[#allocation7 + $0x4] sm:$0xf]
        %v723 = vld [vmem:[#allocation7 + $0x8] sm:$0xf]
        %v724 = vld [vmem:[#allocation7 + $0xc] sm:$0xf]
        %v725 = vld [vmem:[#allocation7 + $0x10] sm:$0xf]
        %v726 = vld [vmem:[#allocation7 + $0x14] sm:$0xf]
        %v727 = vld [vmem:[#allocation7 + $0x18] sm:$0xf]
        %v728 = vld [vmem:[#allocation7 + $0x1c] sm:$0xf]
        %v729 = vld [vmem:[#allocation7 + $0x20] sm:$0xf]
        %v730 = vld [vmem:[#allocation7 + $0x24] sm:$0xf]
        %v731 = vld [vmem:[#allocation7 + $0x28] sm:$0xf]
        %v732 = vld [vmem:[#allocation7 + $0x2c] sm:$0xf]
        %v733 = vld [vmem:[#allocation7 + $0x30] sm:$0xf]
        %v734 = vld [vmem:[#allocation7 + $0x34] sm:$0xf]
        %v735 = vld [vmem:[#allocation7 + $0x38] sm:$0xf]
        %v736 = vld [vmem:[#allocation7 + $0x3c] sm:$0xf]
        %v737 = vlaneseq
        %v738 = vshrl.u32 %v737, 7
        %v739 = vsub.s32 0, %v738
        %v740 = vrot.slane %v685, %v739
        %v757 = vunpack.c.l.b16 %v721
        %v758 = vunpack.c.l.b16 %v722
        %v759 = vunpack.c.l.b16 %v723
        %v760 = vunpack.c.l.b16 %v724
        %v761 = vunpack.c.l.b16 %v725
        %v762 = vunpack.c.l.b16 %v726
        %v763 = vunpack.c.l.b16 %v727
        %v764 = vunpack.c.l.b16 %v728
        %v765 = vunpack.c.l.b16 %v729
        %v766 = vunpack.c.l.b16 %v730
        %v767 = vunpack.c.l.b16 %v731
        %v768 = vunpack.c.l.b16 %v732
        %v769 = vunpack.c.l.b16 %v733
        %v770 = vunpack.c.l.b16 %v734
        %v771 = vunpack.c.l.b16 %v735
        %v772 = vunpack.c.l.b16 %v736
        %v773 = vpack.c.b16 %v758, %v757
        %v774 = vpack.c.b16 %v760, %v759
        %v775 = vpack.c.b16 %v762, %v761
        %v776 = vpack.c.b16 %v764, %v763
        %v777 = vpack.c.b16 %v766, %v765
        %v778 = vpack.c.b16 %v768, %v767
        %v779 = vpack.c.b16 %v770, %v769
        %v780 = vpack.c.b16 %v772, %v771
        %789 = vmatprep.subr.bf16.mxu0 0
        %790 = vmatpush1.bf16.msra.mxu0 %v773
        %791 = vmatprep.subr.bf16.mxu0 0
        %792 = vmatpush1.bf16.msra.mxu0 %v774
        %793 = vmatprep.subr.bf16.mxu0 0
        %794 = vmatpush1.bf16.msra.mxu0 %v775
        %795 = vmatprep.subr.bf16.mxu0 0
        %796 = vmatpush1.bf16.msra.mxu0 %v776
        %797 = vmatprep.subr.bf16.mxu0 0
        %798 = vmatpush1.bf16.msra.mxu0 %v777
        %799 = vmatprep.subr.bf16.mxu0 0
        %800 = vmatpush1.bf16.msra.mxu0 %v778
        %801 = vmatprep.subr.bf16.mxu0 0
        %802 = vmatpush1.bf16.msra.mxu0 %v779
        %803 = vmatprep.subr.bf16.mxu0 0
        %804 = vmatpush1.bf16.msra.mxu0 %v780
        %805 = vmatprep.subr.bf16.mxu0 0
        %806 = vmatpush1.bf16.msra.mxu0 0
        %807 = vmatprep.subr.bf16.mxu0 0
        %808 = vmatpush1.bf16.msra.mxu0 0
        %809 = vmatprep.subr.bf16.mxu0 0
        %810 = vmatpush1.bf16.msra.mxu0 0
        %811 = vmatprep.subr.bf16.mxu0 0
        %812 = vmatpush1.bf16.msra.mxu0 0
        %813 = vmatprep.subr.bf16.mxu0 0
        %814 = vmatpush1.bf16.msra.mxu0 0
        %815 = vmatprep.subr.bf16.mxu0 0
        %816 = vmatpush1.bf16.msra.mxu0 0
        %817 = vmatprep.subr.bf16.mxu0 0
        %818 = vmatpush1.bf16.msra.mxu0 0
        %819 = vmatprep.subr.bf16.mxu0 0
        %820 = vmatpush1.bf16.msra.mxu0 0
        %821 = vmatprep.mubr.bf16.mxu0 0
        %822 = vmatmul.mubr.bf16.gmra.mrb[0].mxu0 %v720
        %v823 = vpop.f32.mrb[0].mxu0
        %v824 = vadd.f32 %v740, %v823
        %v825 = vpop.f32.mrb[0].mxu0
        %v826 = vpop.f32.mrb[0].mxu0
        %v827 = vpop.f32.mrb[0].mxu0
        %828 = vdwg.mxu0
        %v829 = vld [vmem:[#allocation8] sm:$0xf]
        %v830 = vld [vmem:[#allocation8 + $0x4] sm:$0xf]
        %v831 = vld [vmem:[#allocation8 + $0x8] sm:$0xf]
        %v832 = vld [vmem:[#allocation8 + $0xc] sm:$0xf]
        %v833 = vld [vmem:[#allocation8 + $0x10] sm:$0xf]
        %v834 = vld [vmem:[#allocation8 + $0x14] sm:$0xf]
        %v835 = vld [vmem:[#allocation8 + $0x18] sm:$0xf]
        %v836 = vld [vmem:[#allocation8 + $0x1c] sm:$0xf]
        %v837 = vld [vmem:[#allocation8 + $0x20] sm:$0xf]
        %v838 = vld [vmem:[#allocation8 + $0x24] sm:$0xf]
        %v839 = vld [vmem:[#allocation8 + $0x28] sm:$0xf]
        %v840 = vld [vmem:[#allocation8 + $0x2c] sm:$0xf]
        %v841 = vld [vmem:[#allocation8 + $0x30] sm:$0xf]
        %v842 = vld [vmem:[#allocation8 + $0x34] sm:$0xf]
        %v843 = vld [vmem:[#allocation8 + $0x38] sm:$0xf]
        %v844 = vld [vmem:[#allocation8 + $0x3c] sm:$0xf]
        %v845 = vlaneseq
        %v846 = vshrl.u32 %v845, 7
        %v847 = vsub.s32 0, %v846
        %v848 = vrot.slane %v686, %v847
        %v865 = vunpack.c.l.b16 %v829
        %v866 = vunpack.c.l.b16 %v830
        %v867 = vunpack.c.l.b16 %v831
        %v868 = vunpack.c.l.b16 %v832
        %v869 = vunpack.c.l.b16 %v833
        %v870 = vunpack.c.l.b16 %v834
        %v871 = vunpack.c.l.b16 %v835
        %v872 = vunpack.c.l.b16 %v836
        %v873 = vunpack.c.l.b16 %v837
        %v874 = vunpack.c.l.b16 %v838
        %v875 = vunpack.c.l.b16 %v839
        %v876 = vunpack.c.l.b16 %v840
        %v877 = vunpack.c.l.b16 %v841
        %v878 = vunpack.c.l.b16 %v842
        %v879 = vunpack.c.l.b16 %v843
        %v880 = vunpack.c.l.b16 %v844
        %v881 = vpack.c.b16 %v866, %v865
        %v882 = vpack.c.b16 %v868, %v867
        %v883 = vpack.c.b16 %v870, %v869
        %v884 = vpack.c.b16 %v872, %v871
        %v885 = vpack.c.b16 %v874, %v873
        %v886 = vpack.c.b16 %v876, %v875
        %v887 = vpack.c.b16 %v878, %v877
        %v888 = vpack.c.b16 %v880, %v879
        %897 = vmatprep.subr.bf16.mxu0 0
        %898 = vmatpush1.bf16.msra.mxu0 %v881
        %899 = vmatprep.subr.bf16.mxu0 0
        %900 = vmatpush1.bf16.msra.mxu0 %v882
        %901 = vmatprep.subr.bf16.mxu0 0
        %902 = vmatpush1.bf16.msra.mxu0 %v883
        %903 = vmatprep.subr.bf16.mxu0 0
        %904 = vmatpush1.bf16.msra.mxu0 %v884
        %905 = vmatprep.subr.bf16.mxu0 0
        %906 = vmatpush1.bf16.msra.mxu0 %v885
        %907 = vmatprep.subr.bf16.mxu0 0
        %908 = vmatpush1.bf16.msra.mxu0 %v886
        %909 = vmatprep.subr.bf16.mxu0 0
        %910 = vmatpush1.bf16.msra.mxu0 %v887
        %911 = vmatprep.subr.bf16.mxu0 0
        %912 = vmatpush1.bf16.msra.mxu0 %v888
        %913 = vmatprep.subr.bf16.mxu0 0
        %914 = vmatpush1.bf16.msra.mxu0 0
        %915 = vmatprep.subr.bf16.mxu0 0
        %916 = vmatpush1.bf16.msra.mxu0 0
        %917 = vmatprep.subr.bf16.mxu0 0
        %918 = vmatpush1.bf16.msra.mxu0 0
        %919 = vmatprep.subr.bf16.mxu0 0
        %920 = vmatpush1.bf16.msra.mxu0 0
        %921 = vmatprep.subr.bf16.mxu0 0
        %922 = vmatpush1.bf16.msra.mxu0 0
        %923 = vmatprep.subr.bf16.mxu0 0
        %924 = vmatpush1.bf16.msra.mxu0 0
        %925 = vmatprep.subr.bf16.mxu0 0
        %926 = vmatpush1.bf16.msra.mxu0 0
        %927 = vmatprep.subr.bf16.mxu0 0
        %928 = vmatpush1.bf16.msra.mxu0 0
        %929 = vmatprep.mubr.bf16.mxu0 0
        %930 = vmatmul.mubr.bf16.gmra.mrb[0].mxu0 %v720
        %v931 = vpop.f32.mrb[0].mxu0
        %v932 = vadd.f32 %v848, %v931
        %v933 = vpop.f32.mrb[0].mxu0
        %v934 = vpop.f32.mrb[0].mxu0
        %v935 = vpop.f32.mrb[0].mxu0
        %936 = vdwg.mxu0
        %v937 = vld [vmem:[#allocation10] sm:$0xf]
        %v938 = vld [vmem:[#allocation10 + $0x4] sm:$0xf]
        %v939 = vld [vmem:[#allocation10 + $0x8] sm:$0xf]
        %v940 = vld [vmem:[#allocation10 + $0xc] sm:$0xf]
        %v941 = vld [vmem:[#allocation10 + $0x10] sm:$0xf]
        %v942 = vld [vmem:[#allocation10 + $0x14] sm:$0xf]
        %v943 = vld [vmem:[#allocation10 + $0x18] sm:$0xf]
        %v944 = vld [vmem:[#allocation10 + $0x1c] sm:$0xf]
        %v945 = vld [vmem:[#allocation10 + $0x20] sm:$0xf]
        %v946 = vld [vmem:[#allocation10 + $0x24] sm:$0xf]
        %v947 = vld [vmem:[#allocation10 + $0x28] sm:$0xf]
        %v948 = vld [vmem:[#allocation10 + $0x2c] sm:$0xf]
        %v949 = vld [vmem:[#allocation10 + $0x30] sm:$0xf]
        %v950 = vld [vmem:[#allocation10 + $0x34] sm:$0xf]
        %v951 = vld [vmem:[#allocation10 + $0x38] sm:$0xf]
        %v952 = vld [vmem:[#allocation10 + $0x3c] sm:$0xf]
        %v953 = vlaneseq
        %v954 = vshrl.u32 %v953, 7
        %v955 = vsub.s32 0, %v954
        %v956 = vrot.slane %v687, %v955
        %v973 = vunpack.c.l.b16 %v937
        %v974 = vunpack.c.l.b16 %v938
        %v975 = vunpack.c.l.b16 %v939
        %v976 = vunpack.c.l.b16 %v940
        %v977 = vunpack.c.l.b16 %v941
        %v978 = vunpack.c.l.b16 %v942
        %v979 = vunpack.c.l.b16 %v943
        %v980 = vunpack.c.l.b16 %v944
        %v981 = vunpack.c.l.b16 %v945
        %v982 = vunpack.c.l.b16 %v946
        %v983 = vunpack.c.l.b16 %v947
        %v984 = vunpack.c.l.b16 %v948
        %v985 = vunpack.c.l.b16 %v949
        %v986 = vunpack.c.l.b16 %v950
        %v987 = vunpack.c.l.b16 %v951
        %v988 = vunpack.c.l.b16 %v952
        %v989 = vpack.c.b16 %v974, %v973
        %v990 = vpack.c.b16 %v976, %v975
        %v991 = vpack.c.b16 %v978, %v977
        %v992 = vpack.c.b16 %v980, %v979
        %v993 = vpack.c.b16 %v982, %v981
        %v994 = vpack.c.b16 %v984, %v983
        %v995 = vpack.c.b16 %v986, %v985
        %v996 = vpack.c.b16 %v988, %v987
        %1005 = vmatprep.subr.bf16.mxu0 0
        %1006 = vmatpush1.bf16.msra.mxu0 %v989
        %1007 = vmatprep.subr.bf16.mxu0 0
        %1008 = vmatpush1.bf16.msra.mxu0 %v990
        %1009 = vmatprep.subr.bf16.mxu0 0
        %1010 = vmatpush1.bf16.msra.mxu0 %v991
        %1011 = vmatprep.subr.bf16.mxu0 0
        %1012 = vmatpush1.bf16.msra.mxu0 %v992
        %1013 = vmatprep.subr.bf16.mxu0 0
        %1014 = vmatpush1.bf16.msra.mxu0 %v993
        %1015 = vmatprep.subr.bf16.mxu0 0
        %1016 = vmatpush1.bf16.msra.mxu0 %v994
        %1017 = vmatprep.subr.bf16.mxu0 0
        %1018 = vmatpush1.bf16.msra.mxu0 %v995
        %1019 = vmatprep.subr.bf16.mxu0 0
        %1020 = vmatpush1.bf16.msra.mxu0 %v996
        %1021 = vmatprep.subr.bf16.mxu0 0
        %1022 = vmatpush1.bf16.msra.mxu0 0
        %1023 = vmatprep.subr.bf16.mxu0 0
        %1024 = vmatpush1.bf16.msra.mxu0 0
        %1025 = vmatprep.subr.bf16.mxu0 0
        %1026 = vmatpush1.bf16.msra.mxu0 0
        %1027 = vmatprep.subr.bf16.mxu0 0
        %1028 = vmatpush1.bf16.msra.mxu0 0
        %1029 = vmatprep.subr.bf16.mxu0 0
        %1030 = vmatpush1.bf16.msra.mxu0 0
        %1031 = vmatprep.subr.bf16.mxu0 0
        %1032 = vmatpush1.bf16.msra.mxu0 0
        %1033 = vmatprep.subr.bf16.mxu0 0
        %1034 = vmatpush1.bf16.msra.mxu0 0
        %1035 = vmatprep.subr.bf16.mxu0 0
        %1036 = vmatpush1.bf16.msra.mxu0 0
        %1037 = vmatprep.mubr.bf16.mxu0 0
        %1038 = vmatmul.mubr.bf16.gmra.mrb[0].mxu0 %v720
        %v1039 = vpop.f32.mrb[0].mxu0
        %v1040 = vadd.f32 %v956, %v1039
        %v1041 = vpop.f32.mrb[0].mxu0
        %v1042 = vpop.f32.mrb[0].mxu0
        %v1043 = vpop.f32.mrb[0].mxu0
        %1044 = vdwg.mxu0
        %v1045 = vpack.c.bf16 %v824, %v824
        %v1046 = vpack.c.bf16 %v932, %v932
        %v1047 = vld [vmem:[%s678] sm:$0x1]
        %v1049 = vlaneseq
        %v1050 = vshrl.u32 %v1049, 7
        %v1051 = vsub.s32 0, %v1050
        %v1052 = vrot.slane %v1047, %v1051
        %1054 = vmatprep.subr.bf16.mxu0 0
        %1055 = vmatpush1.bf16.xpose.msra.mxu0 %v1046
        %1056 = vmatprep.subr.bf16.mxu0 0
        %1057 = vmatpush1.bf16.xpose.msra.mxu0 0
        %1058 = vmatprep.subr.bf16.mxu0 0
        %1059 = vmatpush1.bf16.xpose.msra.mxu0 0
        %1060 = vmatprep.subr.bf16.mxu0 0
        %1061 = vmatpush1.bf16.xpose.msra.mxu0 0
        %1062 = vmatprep.subr.bf16.mxu0 0
        %1063 = vmatpush1.bf16.xpose.msra.mxu0 0
        %1064 = vmatprep.subr.bf16.mxu0 0
        %1065 = vmatpush1.bf16.xpose.msra.mxu0 0
        %1066 = vmatprep.subr.bf16.mxu0 0
        %1067 = vmatpush1.bf16.xpose.msra.mxu0 0
        %1068 = vmatprep.subr.bf16.mxu0 0
        %1069 = vmatpush1.bf16.xpose.msra.mxu0 0
        %1070 = vmatprep.subr.bf16.mxu0 0
        %1071 = vmatpush1.bf16.xpose.msra.mxu0 0
        %1072 = vmatprep.subr.bf16.mxu0 0
        %1073 = vmatpush1.bf16.xpose.msra.mxu0 0
        %1074 = vmatprep.subr.bf16.mxu0 0
        %1075 = vmatpush1.bf16.xpose.msra.mxu0 0
        %1076 = vmatprep.subr.bf16.mxu0 0
        %1077 = vmatpush1.bf16.xpose.msra.mxu0 0
        %1078 = vmatprep.subr.bf16.mxu0 0
        %1079 = vmatpush1.bf16.xpose.msra.mxu0 0
        %1080 = vmatprep.subr.bf16.mxu0 0
        %1081 = vmatpush1.bf16.xpose.msra.mxu0 0
        %1082 = vmatprep.subr.bf16.mxu0 0
        %1083 = vmatpush1.bf16.xpose.msra.mxu0 0
        %1084 = vmatprep.subr.bf16.mxu0 0
        %1085 = vmatpush1.bf16.xpose.msra.mxu0 0
        %1086 = vmatprep.mubr.bf16.mxu0 0
        %1087 = vmatmul.mubr.bf16.gmra.mrb[0].mxu0 %v1045
        %v1088 = vpop.f32.mrb[0].mxu0
        %v1089 = vadd.f32 %v1052, %v1088
        %v1090 = vpop.f32.mrb[0].mxu0
        %v1091 = vpop.f32.mrb[0].mxu0
        %v1092 = vpop.f32.mrb[0].mxu0
        %1093 = vdwg.mxu0
        %vm1094 = vcmask 64512
        %v1095 = vsel %vm1094, %v1089, -inf
        %1096 = vmax.xlane.f32.xlu0 %v1095
        %v1097 = vpop.xlane.xlu0 %1096
        %v1098 = vsub.f32 %v1089, %v1097
        %v1099 = vmul.f32 %v1098, 1.442695
        %v1100 = vpow.pop %v1099
        %v1101 = vsel %vm1094, %v1100, 0.0
        %1102 = vadd.xlane.f32.xlu0 %v1101
        %v1103 = vpop.xlane.xlu0 %1102
        %v1104 = vrcp.pop %v1103
        %v1105 = vmul.f32 %v1100, %v1104
        %v1106 = vpack.c.bf16 %v1105, %v1105
        %v1107 = vpack.c.bf16 %v1040, %v1040
        %v1109 = vsel %vm1094, %v1106, 0
        %vm1111 = vcmask 1043456
        %v1113 = vsel %vm1111, %v1107, 0
        %1115 = vmatprep.subr.bf16.mxu0 0
        %1116 = vmatpush1.bf16.msra.mxu0 %v1113
        %1117 = vmatprep.subr.bf16.mxu0 0
        %1118 = vmatpush1.bf16.msra.mxu0 0
        %1119 = vmatprep.subr.bf16.mxu0 0
        %1120 = vmatpush1.bf16.msra.mxu0 0
        %1121 = vmatprep.subr.bf16.mxu0 0
        %1122 = vmatpush1.bf16.msra.mxu0 0
        %1123 = vmatprep.subr.bf16.mxu0 0
        %1124 = vmatpush1.bf16.msra.mxu0 0
        %1125 = vmatprep.subr.bf16.mxu0 0
        %1126 = vmatpush1.bf16.msra.mxu0 0
        %1127 = vmatprep.subr.bf16.mxu0 0
        %1128 = vmatpush1.bf16.msra.mxu0 0
        %1129 = vmatprep.subr.bf16.mxu0 0
        %1130 = vmatpush1.bf16.msra.mxu0 0
        %1131 = vmatprep.subr.bf16.mxu0 0
        %1132 = vmatpush1.bf16.msra.mxu0 0
        %1133 = vmatprep.subr.bf16.mxu0 0
        %1134 = vmatpush1.bf16.msra.mxu0 0
        %1135 = vmatprep.subr.bf16.mxu0 0
        %1136 = vmatpush1.bf16.msra.mxu0 0
        %1137 = vmatprep.subr.bf16.mxu0 0
        %1138 = vmatpush1.bf16.msra.mxu0 0
        %1139 = vmatprep.subr.bf16.mxu0 0
        %1140 = vmatpush1.bf16.msra.mxu0 0
        %1141 = vmatprep.subr.bf16.mxu0 0
        %1142 = vmatpush1.bf16.msra.mxu0 0
        %1143 = vmatprep.subr.bf16.mxu0 0
        %1144 = vmatpush1.bf16.msra.mxu0 0
        %1145 = vmatprep.subr.bf16.mxu0 0
        %1146 = vmatpush1.bf16.msra.mxu0 0
        %1147 = vmatprep.mubr.bf16.mxu0 0
        %1148 = vmatmul.mubr.bf16.gmra.mrb[0].mxu0 %v1109
        %v1149 = vpop.f32.mrb[0].mxu0
        %v1150 = vadd.f32 0.0, %v1149
        %v1151 = vpop.f32.mrb[0].mxu0
        %v1152 = vpop.f32.mrb[0].mxu0
        %v1153 = vpop.f32.mrb[0].mxu0
        %1154 = vdwg.mxu0
        %v1155 = vpack.c.bf16 %v1150, %v1150
        %v1156 = vld [vmem:[#allocation11] sm:$0xf]
        %v1157 = vld [vmem:[#allocation11 + $0x4] sm:$0xf]
        %v1158 = vld [vmem:[#allocation11 + $0x8] sm:$0xf]
        %v1159 = vld [vmem:[#allocation11 + $0xc] sm:$0xf]
        %v1160 = vld [vmem:[#allocation11 + $0x10] sm:$0xf]
        %v1161 = vld [vmem:[#allocation11 + $0x14] sm:$0xf]
        %v1162 = vld [vmem:[#allocation11 + $0x18] sm:$0xf]
        %v1163 = vld [vmem:[#allocation11 + $0x1c] sm:$0xf]
        %v1164 = vld [vmem:[#allocation11 + $0x20] sm:$0xf]
        %v1165 = vld [vmem:[#allocation11 + $0x24] sm:$0xf]
        %v1166 = vld [vmem:[#allocation11 + $0x28] sm:$0xf]
        %v1167 = vld [vmem:[#allocation11 + $0x2c] sm:$0xf]
        %v1168 = vld [vmem:[#allocation11 + $0x30] sm:$0xf]
        %v1169 = vld [vmem:[#allocation11 + $0x34] sm:$0xf]
        %v1170 = vld [vmem:[#allocation11 + $0x38] sm:$0xf]
        %v1171 = vld [vmem:[#allocation11 + $0x3c] sm:$0xf]
        %v1172 = vlaneseq
        %v1173 = vshrl.u32 %v1172, 7
        %v1174 = vsub.s32 0, %v1173
        %v1175 = vrot.slane %v688, %v1174
        %v1192 = vunpack.c.l.b16 %v1156
        %v1193 = vunpack.c.l.b16 %v1157
        %v1194 = vunpack.c.l.b16 %v1158
        %v1195 = vunpack.c.l.b16 %v1159
        %v1196 = vunpack.c.l.b16 %v1160
        %v1197 = vunpack.c.l.b16 %v1161
        %v1198 = vunpack.c.l.b16 %v1162
        %v1199 = vunpack.c.l.b16 %v1163
        %v1200 = vunpack.c.l.b16 %v1164
        %v1201 = vunpack.c.l.b16 %v1165
        %v1202 = vunpack.c.l.b16 %v1166
        %v1203 = vunpack.c.l.b16 %v1167
        %v1204 = vunpack.c.l.b16 %v1168
        %v1205 = vunpack.c.l.b16 %v1169
        %v1206 = vunpack.c.l.b16 %v1170
        %v1207 = vunpack.c.l.b16 %v1171
        %v1208 = vpack.c.b16 %v1193, %v1192
        %v1209 = vpack.c.b16 %v1195, %v1194
        %v1210 = vpack.c.b16 %v1197, %v1196
        %v1211 = vpack.c.b16 %v1199, %v1198
        %v1212 = vpack.c.b16 %v1201, %v1200
        %v1213 = vpack.c.b16 %v1203, %v1202
        %v1214 = vpack.c.b16 %v1205, %v1204
        %v1215 = vpack.c.b16 %v1207, %v1206
        %1224 = vmatprep.subr.bf16.mxu0 0
        %1225 = vmatpush1.bf16.msra.mxu0 %v1208
        %1226 = vmatprep.subr.bf16.mxu0 0
        %1227 = vmatpush1.bf16.msra.mxu0 %v1209
        %1228 = vmatprep.subr.bf16.mxu0 0
        %1229 = vmatpush1.bf16.msra.mxu0 %v1210
        %1230 = vmatprep.subr.bf16.mxu0 0
        %1231 = vmatpush1.bf16.msra.mxu0 %v1211
        %1232 = vmatprep.subr.bf16.mxu0 0
        %1233 = vmatpush1.bf16.msra.mxu0 %v1212
        %1234 = vmatprep.subr.bf16.mxu0 0
        %1235 = vmatpush1.bf16.msra.mxu0 %v1213
        %1236 = vmatprep.subr.bf16.mxu0 0
        %1237 = vmatpush1.bf16.msra.mxu0 %v1214
        %1238 = vmatprep.subr.bf16.mxu0 0
        %1239 = vmatpush1.bf16.msra.mxu0 %v1215
        %1240 = vmatprep.subr.bf16.mxu0 0
        %1241 = vmatpush1.bf16.msra.mxu0 0
        %1242 = vmatprep.subr.bf16.mxu0 0
        %1243 = vmatpush1.bf16.msra.mxu0 0
        %1244 = vmatprep.subr.bf16.mxu0 0
        %1245 = vmatpush1.bf16.msra.mxu0 0
        %1246 = vmatprep.subr.bf16.mxu0 0
        %1247 = vmatpush1.bf16.msra.mxu0 0
        %1248 = vmatprep.subr.bf16.mxu0 0
        %1249 = vmatpush1.bf16.msra.mxu0 0
        %1250 = vmatprep.subr.bf16.mxu0 0
        %1251 = vmatpush1.bf16.msra.mxu0 0
        %1252 = vmatprep.subr.bf16.mxu0 0
        %1253 = vmatpush1.bf16.msra.mxu0 0
        %1254 = vmatprep.subr.bf16.mxu0 0
        %1255 = vmatpush1.bf16.msra.mxu0 0
        %1256 = vmatprep.mubr.bf16.mxu0 0
        %1257 = vmatmul.mubr.bf16.gmra.mrb[0].mxu0 %v1155
        %v1258 = vpop.f32.mrb[0].mxu0
        %v1259 = vadd.f32 %v1175, %v1258
        %v1260 = vpop.f32.mrb[0].mxu0
        %v1261 = vpop.f32.mrb[0].mxu0
        %v1262 = vpop.f32.mrb[0].mxu0
        %1263 = vdwg.mxu0
        %v1264 = vadd.f32 %v719, %v1259
        %1265 = vadd.xlane.f32.xlu0 %v1264
        %v1266 = vpop.xlane.xlu0 %1265
        %v1267 = vmul.f32 %v1264, %v1264
        %1268 = vadd.xlane.f32.xlu0 %v1267
        %v1269 = vpop.xlane.xlu0 %1268
        %v1270 = vmul.f32 %v1266, %v701
        %v1271 = vmul.f32 %v1269, %v701
        %v1272 = vmul.f32 %v1270, %v1270
        %v1273 = vsub.f32 %v1271, %v1272
        %v1274 = vsub.f32 %v1264, %v1270
        %v1275 = vadd.f32 %v1273, 1e-12
        %v1276 = vrsqrt.pop %v1275
        %v1277 = vmul.f32 %v1274, %v1276
        %v1278 = vlaneseq
        %v1279 = vshrl.u32 %v1278, 7
        %v1280 = vsub.s32 0, %v1279
        %v1281 = vrot.slane %v689, %v1280
        %v1282 = vmul.f32 %v1277, %v1281
        %v1283 = vlaneseq
        %v1284 = vshrl.u32 %v1283, 7
        %v1285 = vsub.s32 0, %v1284
        %v1286 = vrot.slane %v690, %v1285
        %v1287 = vadd.f32 %v1282, %v1286
        %v1288 = vpack.c.bf16 %v1287, %v1287
        %v1289 = vld [vmem:[#allocation13] sm:$0xf]
        %v1290 = vld [vmem:[#allocation13 + $0x4] sm:$0xf]
        %v1291 = vld [vmem:[#allocation13 + $0x8] sm:$0xf]
        %v1292 = vld [vmem:[#allocation13 + $0xc] sm:$0xf]
        %v1293 = vld [vmem:[#allocation13 + $0x10] sm:$0xf]
        %v1294 = vld [vmem:[#allocation13 + $0x14] sm:$0xf]
        %v1295 = vld [vmem:[#allocation13 + $0x18] sm:$0xf]
        %v1296 = vld [vmem:[#allocation13 + $0x1c] sm:$0xf]
        %v1297 = vld [vmem:[#allocation13 + $0x20] sm:$0xf]
        %v1298 = vld [vmem:[#allocation13 + $0x24] sm:$0xf]
        %v1299 = vld [vmem:[#allocation13 + $0x28] sm:$0xf]
        %v1300 = vld [vmem:[#allocation13 + $0x2c] sm:$0xf]
        %v1301 = vld [vmem:[#allocation13 + $0x30] sm:$0xf]
        %v1302 = vld [vmem:[#allocation13 + $0x34] sm:$0xf]
        %v1303 = vld [vmem:[#allocation13 + $0x38] sm:$0xf]
        %v1304 = vld [vmem:[#allocation13 + $0x3c] sm:$0xf]
        %v1305 = vld [vmem:[%s4] sm:$0x1]
        %v1307 = vlaneseq
        %v1308 = vshrl.u32 %v1307, 7
        %v1309 = vsub.s32 0, %v1308
        %v1310 = vrot.slane %v1305, %v1309
        %v1328 = vunpack.c.l.b16 %v1289
        %v1329 = vunpack.c.l.b16 %v1290
        %v1330 = vunpack.c.l.b16 %v1291
        %v1331 = vunpack.c.l.b16 %v1292
        %v1332 = vunpack.c.l.b16 %v1293
        %v1333 = vunpack.c.l.b16 %v1294
        %v1334 = vunpack.c.l.b16 %v1295
        %v1335 = vunpack.c.l.b16 %v1296
        %v1336 = vunpack.c.l.b16 %v1297
        %v1337 = vunpack.c.l.b16 %v1298
        %v1338 = vunpack.c.l.b16 %v1299
        %v1339 = vunpack.c.l.b16 %v1300
        %v1340 = vunpack.c.l.b16 %v1301
        %v1341 = vunpack.c.l.b16 %v1302
        %v1342 = vunpack.c.l.b16 %v1303
        %v1343 = vunpack.c.l.b16 %v1304
        %v1344 = vpack.c.b16 %v1329, %v1328
        %v1345 = vpack.c.b16 %v1331, %v1330
        %v1346 = vpack.c.b16 %v1333, %v1332
        %v1347 = vpack.c.b16 %v1335, %v1334
        %v1348 = vpack.c.b16 %v1337, %v1336
        %v1349 = vpack.c.b16 %v1339, %v1338
        %v1350 = vpack.c.b16 %v1341, %v1340
        %v1351 = vpack.c.b16 %v1343, %v1342
        %1360 = vmatprep.subr.bf16.mxu0 0
        %1361 = vmatpush1.bf16.msra.mxu0 %v1344
        %1362 = vmatprep.subr.bf16.mxu0 0
        %1363 = vmatpush1.bf16.msra.mxu0 %v1345
        %1364 = vmatprep.subr.bf16.mxu0 0
        %1365 = vmatpush1.bf16.msra.mxu0 %v1346
        %1366 = vmatprep.subr.bf16.mxu0 0
        %1367 = vmatpush1.bf16.msra.mxu0 %v1347
        %1368 = vmatprep.subr.bf16.mxu0 0
        %1369 = vmatpush1.bf16.msra.mxu0 %v1348
        %1370 = vmatprep.subr.bf16.mxu0 0
        %1371 = vmatpush1.bf16.msra.mxu0 %v1349
        %1372 = vmatprep.subr.bf16.mxu0 0
        %1373 = vmatpush1.bf16.msra.mxu0 %v1350
        %1374 = vmatprep.subr.bf16.mxu0 0
        %1375 = vmatpush1.bf16.msra.mxu0 %v1351
        %1376 = vmatprep.subr.bf16.mxu0 0
        %1377 = vmatpush1.bf16.msra.mxu0 0
        %1378 = vmatprep.subr.bf16.mxu0 0
        %1379 = vmatpush1.bf16.msra.mxu0 0
        %1380 = vmatprep.subr.bf16.mxu0 0
        %1381 = vmatpush1.bf16.msra.mxu0 0
        %1382 = vmatprep.subr.bf16.mxu0 0
        %1383 = vmatpush1.bf16.msra.mxu0 0
        %1384 = vmatprep.subr.bf16.mxu0 0
        %1385 = vmatpush1.bf16.msra.mxu0 0
        %1386 = vmatprep.subr.bf16.mxu0 0
        %1387 = vmatpush1.bf16.msra.mxu0 0
        %1388 = vmatprep.subr.bf16.mxu0 0
        %1389 = vmatpush1.bf16.msra.mxu0 0
        %1390 = vmatprep.subr.bf16.mxu0 0
        %1391 = vmatpush1.bf16.msra.mxu0 0
        %1392 = vmatprep.mubr.bf16.mxu0 0
        %1393 = vmatmul.mubr.bf16.gmra.mrb[0].mxu0 %v1288
        %v1394 = vpop.f32.mrb[0].mxu0
        %v1395 = vadd.f32 %v1310, %v1394
        %v1396 = vpop.f32.mrb[0].mxu0
        %v1397 = vpop.f32.mrb[0].mxu0
        %v1398 = vpop.f32.mrb[0].mxu0
        %1399 = vdwg.mxu0
        %v1400 = vmul.f32 %v1395, %v1395
        %v1401 = vmul.f32 %v1395, %v1400
        %v1402 = vmul.f32 %v1401, 0.044715
        %v1403 = vadd.f32 %v1395, %v1402
        %v1404 = vmul.f32 %v1403, 0.7978846
        %v1405 = vtanh.pop %v1404
        %v1406 = vadd.f32 %v1405, 1.0
        %v1407 = vmul.f32 %v1406, 0.5
        %v1408 = vmul.f32 %v1395, %v1407
        %v1409 = vpack.c.bf16 %v1408, %v1408
        %v1410 = vld [vmem:[#allocation14] sm:$0xf]
        %v1411 = vld [vmem:[#allocation14 + $0x4] sm:$0xf]
        %v1412 = vld [vmem:[#allocation14 + $0x8] sm:$0xf]
        %v1413 = vld [vmem:[#allocation14 + $0xc] sm:$0xf]
        %v1414 = vld [vmem:[#allocation14 + $0x10] sm:$0xf]
        %v1415 = vld [vmem:[#allocation14 + $0x14] sm:$0xf]
        %v1416 = vld [vmem:[#allocation14 + $0x18] sm:$0xf]
        %v1417 = vld [vmem:[#allocation14 + $0x1c] sm:$0xf]
        %v1418 = vld [vmem:[#allocation14 + $0x20] sm:$0xf]
        %v1419 = vld [vmem:[#allocation14 + $0x24] sm:$0xf]
        %v1420 = vld [vmem:[#allocation14 + $0x28] sm:$0xf]
        %v1421 = vld [vmem:[#allocation14 + $0x2c] sm:$0xf]
        %v1422 = vld [vmem:[#allocation14 + $0x30] sm:$0xf]
        %v1423 = vld [vmem:[#allocation14 + $0x34] sm:$0xf]
        %v1424 = vld [vmem:[#allocation14 + $0x38] sm:$0xf]
        %v1425 = vld [vmem:[#allocation14 + $0x3c] sm:$0xf]
        %v1426 = vlaneseq
        %v1427 = vshrl.u32 %v1426, 7
        %v1428 = vsub.s32 0, %v1427
        %v1429 = vrot.slane %v691, %v1428
        %v1446 = vunpack.c.l.b16 %v1410
        %v1447 = vunpack.c.l.b16 %v1411
        %v1448 = vunpack.c.l.b16 %v1412
        %v1449 = vunpack.c.l.b16 %v1413
        %v1450 = vunpack.c.l.b16 %v1414
        %v1451 = vunpack.c.l.b16 %v1415
        %v1452 = vunpack.c.l.b16 %v1416
        %v1453 = vunpack.c.l.b16 %v1417
        %v1454 = vunpack.c.l.b16 %v1418
        %v1455 = vunpack.c.l.b16 %v1419
        %v1456 = vunpack.c.l.b16 %v1420
        %v1457 = vunpack.c.l.b16 %v1421
        %v1458 = vunpack.c.l.b16 %v1422
        %v1459 = vunpack.c.l.b16 %v1423
        %v1460 = vunpack.c.l.b16 %v1424
        %v1461 = vunpack.c.l.b16 %v1425
        %v1462 = vpack.c.b16 %v1447, %v1446
        %v1463 = vpack.c.b16 %v1449, %v1448
        %v1464 = vpack.c.b16 %v1451, %v1450
        %v1465 = vpack.c.b16 %v1453, %v1452
        %v1466 = vpack.c.b16 %v1455, %v1454
        %v1467 = vpack.c.b16 %v1457, %v1456
        %v1468 = vpack.c.b16 %v1459, %v1458
        %v1469 = vpack.c.b16 %v1461, %v1460
        %1478 = vmatprep.subr.bf16.mxu0 0
        %1479 = vmatpush1.bf16.msra.mxu0 %v1462
        %1480 = vmatprep.subr.bf16.mxu0 0
        %1481 = vmatpush1.bf16.msra.mxu0 %v1463
        %1482 = vmatprep.subr.bf16.mxu0 0
        %1483 = vmatpush1.bf16.msra.mxu0 %v1464
        %1484 = vmatprep.subr.bf16.mxu0 0
        %1485 = vmatpush1.bf16.msra.mxu0 %v1465
        %1486 = vmatprep.subr.bf16.mxu0 0
        %1487 = vmatpush1.bf16.msra.mxu0 %v1466
        %1488 = vmatprep.subr.bf16.mxu0 0
        %1489 = vmatpush1.bf16.msra.mxu0 %v1467
        %1490 = vmatprep.subr.bf16.mxu0 0
        %1491 = vmatpush1.bf16.msra.mxu0 %v1468
        %1492 = vmatprep.subr.bf16.mxu0 0
        %1493 = vmatpush1.bf16.msra.mxu0 %v1469
        %1494 = vmatprep.subr.bf16.mxu0 0
        %1495 = vmatpush1.bf16.msra.mxu0 0
        %1496 = vmatprep.subr.bf16.mxu0 0
        %1497 = vmatpush1.bf16.msra.mxu0 0
        %1498 = vmatprep.subr.bf16.mxu0 0
        %1499 = vmatpush1.bf16.msra.mxu0 0
        %1500 = vmatprep.subr.bf16.mxu0 0
        %1501 = vmatpush1.bf16.msra.mxu0 0
        %1502 = vmatprep.subr.bf16.mxu0 0
        %1503 = vmatpush1.bf16.msra.mxu0 0
        %1504 = vmatprep.subr.bf16.mxu0 0
        %1505 = vmatpush1.bf16.msra.mxu0 0
        %1506 = vmatprep.subr.bf16.mxu0 0
        %1507 = vmatpush1.bf16.msra.mxu0 0
        %1508 = vmatprep.subr.bf16.mxu0 0
        %1509 = vmatpush1.bf16.msra.mxu0 0
        %1510 = vmatprep.mubr.bf16.mxu0 0
        %1511 = vmatmul.mubr.bf16.gmra.mrb[0].mxu0 %v1409
        %v1512 = vpop.f32.mrb[0].mxu0
        %v1513 = vadd.f32 %v1429, %v1512
        %v1514 = vpop.f32.mrb[0].mxu0
        %v1515 = vpop.f32.mrb[0].mxu0
        %v1516 = vpop.f32.mrb[0].mxu0
        %1517 = vdwg.mxu0
        %v1518 = vadd.f32 %v1287, %v1513
        %1519 = vadd.xlane.f32.xlu0 %v1518
        %v1520 = vpop.xlane.xlu0 %1519
        %v1521 = vmul.f32 %v1518, %v1518
        %1522 = vadd.xlane.f32.xlu0 %v1521
        %v1523 = vpop.xlane.xlu0 %1522
        %v1524 = vmul.f32 %v1520, %v701
        %v1525 = vmul.f32 %v1523, %v701
        %v1526 = vmul.f32 %v1524, %v1524
        %v1527 = vsub.f32 %v1525, %v1526
        %v1528 = vsub.f32 %v1518, %v1524
        %v1529 = vadd.f32 %v1527, 1e-12
        %v1530 = vrsqrt.pop %v1529
        %v1531 = vmul.f32 %v1528, %v1530
        %v1532 = vlaneseq
        %v1533 = vshrl.u32 %v1532, 7
        %v1534 = vsub.s32 0, %v1533
        %v1535 = vrot.slane %v692, %v1534
        %v1536 = vmul.f32 %v1531, %v1535
        %v1537 = vlaneseq
        %v1538 = vshrl.u32 %v1537, 7
        %v1539 = vsub.s32 0, %v1538
        %v1540 = vrot.slane %v693, %v1539
        %v1541 = vadd.f32 %v1536, %v1540
        %v1542 = vpack.c.bf16 %v1541, %v1541
        %v1543 = vld [vmem:[#allocation16] sm:$0xf]
        %v1544 = vld [vmem:[#allocation16 + $0x4] sm:$0xf]
        %v1545 = vld [vmem:[#allocation16 + $0x8] sm:$0xf]
        %v1546 = vld [vmem:[#allocation16 + $0xc] sm:$0xf]
        %v1547 = vld [vmem:[#allocation16 + $0x10] sm:$0xf]
        %v1548 = vld [vmem:[#allocation16 + $0x14] sm:$0xf]
        %v1549 = vld [vmem:[#allocation16 + $0x18] sm:$0xf]
        %v1550 = vld [vmem:[#allocation16 + $0x1c] sm:$0xf]
        %v1551 = vld [vmem:[#allocation16 + $0x20] sm:$0xf]
        %v1552 = vld [vmem:[#allocation16 + $0x24] sm:$0xf]
        %v1553 = vld [vmem:[#allocation16 + $0x28] sm:$0xf]
        %v1554 = vld [vmem:[#allocation16 + $0x2c] sm:$0xf]
        %v1555 = vld [vmem:[#allocation16 + $0x30] sm:$0xf]
        %v1556 = vld [vmem:[#allocation16 + $0x34] sm:$0xf]
        %v1557 = vld [vmem:[#allocation16 + $0x38] sm:$0xf]
        %v1558 = vld [vmem:[#allocation16 + $0x3c] sm:$0xf]
        %v1575 = vunpack.c.l.b16 %v1543
        %v1576 = vunpack.c.l.b16 %v1544
        %v1577 = vunpack.c.l.b16 %v1545
        %v1578 = vunpack.c.l.b16 %v1546
        %v1579 = vunpack.c.l.b16 %v1547
        %v1580 = vunpack.c.l.b16 %v1548
        %v1581 = vunpack.c.l.b16 %v1549
        %v1582 = vunpack.c.l.b16 %v1550
        %v1583 = vunpack.c.l.b16 %v1551
        %v1584 = vunpack.c.l.b16 %v1552
        %v1585 = vunpack.c.l.b16 %v1553
        %v1586 = vunpack.c.l.b16 %v1554
        %v1587 = vunpack.c.l.b16 %v1555
        %v1588 = vunpack.c.l.b16 %v1556
        %v1589 = vunpack.c.l.b16 %v1557
        %v1590 = vunpack.c.l.b16 %v1558
        %v1591 = vpack.c.b16 %v1576, %v1575
        %v1592 = vpack.c.b16 %v1578, %v1577
        %v1593 = vpack.c.b16 %v1580, %v1579
        %v1594 = vpack.c.b16 %v1582, %v1581
        %v1595 = vpack.c.b16 %v1584, %v1583
        %v1596 = vpack.c.b16 %v1586, %v1585
        %v1597 = vpack.c.b16 %v1588, %v1587
        %v1598 = vpack.c.b16 %v1590, %v1589
        %1607 = vmatprep.subr.bf16.mxu0 0
        %1608 = vmatpush1.bf16.msra.mxu0 %v1591
        %1609 = vmatprep.subr.bf16.mxu0 0
        %1610 = vmatpush1.bf16.msra.mxu0 %v1592
        %1611 = vmatprep.subr.bf16.mxu0 0
        %1612 = vmatpush1.bf16.msra.mxu0 %v1593
        %1613 = vmatprep.subr.bf16.mxu0 0
        %1614 = vmatpush1.bf16.msra.mxu0 %v1594
        %1615 = vmatprep.subr.bf16.mxu0 0
        %1616 = vmatpush1.bf16.msra.mxu0 %v1595
        %1617 = vmatprep.subr.bf16.mxu0 0
        %1618 = vmatpush1.bf16.msra.mxu0 %v1596
        %1619 = vmatprep.subr.bf16.mxu0 0
        %1620 = vmatpush1.bf16.msra.mxu0 %v1597
        %1621 = vmatprep.subr.bf16.mxu0 0
        %1622 = vmatpush1.bf16.msra.mxu0 %v1598
        %1623 = vmatprep.subr.bf16.mxu0 0
        %1624 = vmatpush1.bf16.msra.mxu0 0
        %1625 = vmatprep.subr.bf16.mxu0 0
        %1626 = vmatpush1.bf16.msra.mxu0 0
        %1627 = vmatprep.subr.bf16.mxu0 0
        %1628 = vmatpush1.bf16.msra.mxu0 0
        %1629 = vmatprep.subr.bf16.mxu0 0
        %1630 = vmatpush1.bf16.msra.mxu0 0
        %1631 = vmatprep.subr.bf16.mxu0 0
        %1632 = vmatpush1.bf16.msra.mxu0 0
        %1633 = vmatprep.subr.bf16.mxu0 0
        %1634 = vmatpush1.bf16.msra.mxu0 0
        %1635 = vmatprep.subr.bf16.mxu0 0
        %1636 = vmatpush1.bf16.msra.mxu0 0
        %1637 = vmatprep.subr.bf16.mxu0 0
        %1638 = vmatpush1.bf16.msra.mxu0 0
        %1639 = vmatprep.mubr.bf16.mxu0 0
        %1640 = vmatmul.mubr.bf16.gmra.mrb[0].mxu0 %v1542
        %v1641 = vpop.f32.mrb[0].mxu0
        %v1642 = vadd.f32 %v694, %v1641
        %v1643 = vpop.f32.mrb[0].mxu0
        %v1644 = vpop.f32.mrb[0].mxu0
        %v1645 = vpop.f32.mrb[0].mxu0
        %1646 = vdwg.mxu0
        %v1647 = vtanh.pop %v1642
        %v1648 = vld [vmem:[%s681] sm:$0x1]
        %v1649 = vpack.c.bf16 %v1648, %v1648
        %v1650 = vpack.c.bf16 %v1647, %v1647
        %v1651 = vld [vmem:[#allocation17] sm:$0xf]
        %v1652 = vld [vmem:[#allocation17 + $0x4] sm:$0xf]
        %v1653 = vld [vmem:[#allocation17 + $0x8] sm:$0xf]
        %v1654 = vld [vmem:[#allocation17 + $0xc] sm:$0xf]
        %v1655 = vld [vmem:[#allocation17 + $0x10] sm:$0xf]
        %v1656 = vld [vmem:[#allocation17 + $0x14] sm:$0xf]
        %v1657 = vld [vmem:[#allocation17 + $0x18] sm:$0xf]
        %v1658 = vld [vmem:[#allocation17 + $0x1c] sm:$0xf]
        %v1659 = vld [vmem:[#allocation17 + $0x20] sm:$0xf]
        %v1660 = vld [vmem:[#allocation17 + $0x24] sm:$0xf]
        %v1661 = vld [vmem:[#allocation17 + $0x28] sm:$0xf]
        %v1662 = vld [vmem:[#allocation17 + $0x2c] sm:$0xf]
        %v1663 = vld [vmem:[#allocation17 + $0x30] sm:$0xf]
        %v1664 = vld [vmem:[#allocation17 + $0x34] sm:$0xf]
        %v1665 = vld [vmem:[#allocation17 + $0x38] sm:$0xf]
        %v1666 = vld [vmem:[#allocation17 + $0x3c] sm:$0xf]
        %v1667 = vld [vmem:[#allocation19] sm:$0xf]
        %v1668 = vld [vmem:[#allocation19 + $0x4] sm:$0xf]
        %v1669 = vld [vmem:[#allocation19 + $0x8] sm:$0xf]
        %v1670 = vld [vmem:[#allocation19 + $0xc] sm:$0xf]
        %v1671 = vld [vmem:[#allocation19 + $0x10] sm:$0xf]
        %v1672 = vld [vmem:[#allocation19 + $0x14] sm:$0xf]
        %v1673 = vld [vmem:[#allocation19 + $0x18] sm:$0xf]
        %v1674 = vld [vmem:[#allocation19 + $0x1c] sm:$0xf]
        %v1675 = vld [vmem:[#allocation19 + $0x20] sm:$0xf]
        %v1676 = vld [vmem:[#allocation19 + $0x24] sm:$0xf]
        %v1677 = vld [vmem:[#allocation19 + $0x28] sm:$0xf]
        %v1678 = vld [vmem:[#allocation19 + $0x2c] sm:$0xf]
        %v1679 = vld [vmem:[#allocation19 + $0x30] sm:$0xf]
        %v1680 = vld [vmem:[#allocation19 + $0x34] sm:$0xf]
        %v1681 = vld [vmem:[#allocation19 + $0x38] sm:$0xf]
        %v1682 = vld [vmem:[#allocation19 + $0x3c] sm:$0xf]
        %v1699 = vunpack.c.l.b16 %v1667
        %v1700 = vunpack.c.l.b16 %v1668
        %v1701 = vunpack.c.l.b16 %v1669
        %v1702 = vunpack.c.l.b16 %v1670
        %v1703 = vunpack.c.l.b16 %v1671
        %v1704 = vunpack.c.l.b16 %v1672
        %v1705 = vunpack.c.l.b16 %v1673
        %v1706 = vunpack.c.l.b16 %v1674
        %v1707 = vunpack.c.l.b16 %v1675
        %v1708 = vunpack.c.l.b16 %v1676
        %v1709 = vunpack.c.l.b16 %v1677
        %v1710 = vunpack.c.l.b16 %v1678
        %v1711 = vunpack.c.l.b16 %v1679
        %v1712 = vunpack.c.l.b16 %v1680
        %v1713 = vunpack.c.l.b16 %v1681
        %v1714 = vunpack.c.l.b16 %v1682
        %v1715 = vpack.c.b16 %v1700, %v1699
        %v1716 = vpack.c.b16 %v1702, %v1701
        %v1717 = vpack.c.b16 %v1704, %v1703
        %v1718 = vpack.c.b16 %v1706, %v1705
        %v1719 = vpack.c.b16 %v1708, %v1707
        %v1720 = vpack.c.b16 %v1710, %v1709
        %v1721 = vpack.c.b16 %v1712, %v1711
        %v1722 = vpack.c.b16 %v1714, %v1713
        %1731 = vmatprep.subr.bf16.mxu0 0
        %1732 = vmatpush1.bf16.msra.mxu0 %v1715
        %1733 = vmatprep.subr.bf16.mxu0 0
        %1734 = vmatpush1.bf16.msra.mxu0 %v1716
        %1735 = vmatprep.subr.bf16.mxu0 0
        %1736 = vmatpush1.bf16.msra.mxu0 %v1717
        %1737 = vmatprep.subr.bf16.mxu0 0
        %1738 = vmatpush1.bf16.msra.mxu0 %v1718
        %1739 = vmatprep.subr.bf16.mxu0 0
        %1740 = vmatpush1.bf16.msra.mxu0 %v1719
        %1741 = vmatprep.subr.bf16.mxu0 0
        %1742 = vmatpush1.bf16.msra.mxu0 %v1720
        %1743 = vmatprep.subr.bf16.mxu0 0
        %1744 = vmatpush1.bf16.msra.mxu0 %v1721
        %1745 = vmatprep.subr.bf16.mxu0 0
        %1746 = vmatpush1.bf16.msra.mxu0 %v1722
        %1747 = vmatprep.subr.bf16.mxu0 0
        %1748 = vmatpush1.bf16.msra.mxu0 0
        %1749 = vmatprep.subr.bf16.mxu0 0
        %1750 = vmatpush1.bf16.msra.mxu0 0
        %1751 = vmatprep.subr.bf16.mxu0 0
        %1752 = vmatpush1.bf16.msra.mxu0 0
        %1753 = vmatprep.subr.bf16.mxu0 0
        %1754 = vmatpush1.bf16.msra.mxu0 0
        %1755 = vmatprep.subr.bf16.mxu0 0
        %1756 = vmatpush1.bf16.msra.mxu0 0
        %1757 = vmatprep.subr.bf16.mxu0 0
        %1758 = vmatpush1.bf16.msra.mxu0 0
        %1759 = vmatprep.subr.bf16.mxu0 0
        %1760 = vmatpush1.bf16.msra.mxu0 0
        %1761 = vmatprep.subr.bf16.mxu0 0
        %1762 = vmatpush1.bf16.msra.mxu0 0
        %1763 = vmatprep.mubr.bf16.mxu0 0
        %1764 = vmatmul.mubr.bf16.gmra.mrb[0].mxu0 %v1649
        %v1765 = vpop.f32.mrb[0].mxu0
        %v1766 = vadd.f32 0.0, %v1765
        %v1767 = vpop.f32.mrb[0].mxu0
        %v1768 = vpop.f32.mrb[0].mxu0
        %v1769 = vpop.f32.mrb[0].mxu0
        %1770 = vdwg.mxu0
        %v1787 = vunpack.c.l.b16 %v1651
        %v1788 = vunpack.c.l.b16 %v1652
        %v1789 = vunpack.c.l.b16 %v1653
        %v1790 = vunpack.c.l.b16 %v1654
        %v1791 = vunpack.c.l.b16 %v1655
        %v1792 = vunpack.c.l.b16 %v1656
        %v1793 = vunpack.c.l.b16 %v1657
        %v1794 = vunpack.c.l.b16 %v1658
        %v1795 = vunpack.c.l.b16 %v1659
        %v1796 = vunpack.c.l.b16 %v1660
        %v1797 = vunpack.c.l.b16 %v1661
        %v1798 = vunpack.c.l.b16 %v1662
        %v1799 = vunpack.c.l.b16 %v1663
        %v1800 = vunpack.c.l.b16 %v1664
        %v1801 = vunpack.c.l.b16 %v1665
        %v1802 = vunpack.c.l.b16 %v1666
        %v1803 = vpack.c.b16 %v1788, %v1787
        %v1804 = vpack.c.b16 %v1790, %v1789
        %v1805 = vpack.c.b16 %v1792, %v1791
        %v1806 = vpack.c.b16 %v1794, %v1793
        %v1807 = vpack.c.b16 %v1796, %v1795
        %v1808 = vpack.c.b16 %v1798, %v1797
        %v1809 = vpack.c.b16 %v1800, %v1799
        %v1810 = vpack.c.b16 %v1802, %v1801
        %1819 = vmatprep.subr.bf16.mxu0 0
        %1820 = vmatpush1.bf16.msra.mxu0 %v1803
        %1821 = vmatprep.subr.bf16.mxu0 0
        %1822 = vmatpush1.bf16.msra.mxu0 %v1804
        %1823 = vmatprep.subr.bf16.mxu0 0
        %1824 = vmatpush1.bf16.msra.mxu0 %v1805
        %1825 = vmatprep.subr.bf16.mxu0 0
        %1826 = vmatpush1.bf16.msra.mxu0 %v1806
        %1827 = vmatprep.subr.bf16.mxu0 0
        %1828 = vmatpush1.bf16.msra.mxu0 %v1807
        %1829 = vmatprep.subr.bf16.mxu0 0
        %1830 = vmatpush1.bf16.msra.mxu0 %v1808
        %1831 = vmatprep.subr.bf16.mxu0 0
        %1832 = vmatpush1.bf16.msra.mxu0 %v1809
        %1833 = vmatprep.subr.bf16.mxu0 0
        %1834 = vmatpush1.bf16.msra.mxu0 %v1810
        %1835 = vmatprep.subr.bf16.mxu0 0
        %1836 = vmatpush1.bf16.msra.mxu0 0
        %1837 = vmatprep.subr.bf16.mxu0 0
        %1838 = vmatpush1.bf16.msra.mxu0 0
        %1839 = vmatprep.subr.bf16.mxu0 0
        %1840 = vmatpush1.bf16.msra.mxu0 0
        %1841 = vmatprep.subr.bf16.mxu0 0
        %1842 = vmatpush1.bf16.msra.mxu0 0
        %1843 = vmatprep.subr.bf16.mxu0 0
        %1844 = vmatpush1.bf16.msra.mxu0 0
        %1845 = vmatprep.subr.bf16.mxu0 0
        %1846 = vmatpush1.bf16.msra.mxu0 0
        %1847 = vmatprep.subr.bf16.mxu0 0
        %1848 = vmatpush1.bf16.msra.mxu0 0
        %1849 = vmatprep.subr.bf16.mxu0 0
        %1850 = vmatpush1.bf16.msra.mxu0 0
        %1851 = vmatprep.mubr.bf16.mxu0 0
        %1852 = vmatmul.mubr.bf16.gmra.mrb[0].mxu0 %v1650
        %v1853 = vpop.f32.mrb[0].mxu0
        %v1854 = vadd.f32 %v1766, %v1853
        %v1855 = vpop.f32.mrb[0].mxu0
        %v1856 = vpop.f32.mrb[0].mxu0
        %v1857 = vpop.f32.mrb[0].mxu0
        %1858 = vdwg.mxu0
        %v1859 = vld [vmem:[%s5] sm:$0x1]
        %v1860 = vadd.f32 %v1854, %v1859
        %1861 = vst [vmem:[%s675] sm:$0x1] %v1860
        %s1862 = sand.u32 %s375, 1
        %s1863 = scalar_lea.sflag [#allocation4], %s1862
        %s1864 = sand.u32 %s375, 1
        %s1865 = scalar_lea.vmem [#allocation20], %s1864
        // Predicated region
        $region125: #{tpu_custom_call.1} parent=79 // pred_check
          %p1866 = pneg %p385
        $region126: #{tpu_custom_call.1} parent=79 // pred_check_branch
          %1868 = sbr.rel (%p1866) target = $region128
        $region127: #{tpu_custom_call.1} parent=79 // pred_region
          %s1870 = ssub.s32 16, 16
          %1871 = vsyncadd %s1863, %s1870
          %s1872 = smul.addr %s37, 16
          %s1873 = scalar_lea.hbm %s15, %s1872
          %s1875 = sshll.u32 %s1865, 4
          %s1876 = int_to_ptr.vmem [resolvable:$true] %s1875
          %1878 = dma.vmem_to_hbm [thread:$0]  %s1876, 16, %s1873, %s1863
        $region128: #{tpu_custom_call.1} parent=79 // pred_fallthru
          _
      $region80: #{tpu_custom_call.1} parent=5 // pred_fallthru
        _
      %p1879 = scmp.le.s32.totalorder 2, %s32
      // Predicated region
      $region129: #{tpu_custom_call.1} parent=5 // pred_check
        %p1880 = pneg %p1879
      $region130: #{tpu_custom_call.1} parent=5 // pred_check_branch
        %1882 = sbr.rel (%p1880) target = $region132
      $region131: #{tpu_custom_call.1} parent=5 // pred_region
        %s1883 = ssub.s32 %s32, 2
        // Predicated region
        $region133: #{tpu_custom_call.1} parent=131 // pred_check
          %p1884 = pneg %p391
        $region134: #{tpu_custom_call.1} parent=131 // pred_check_branch
          %1886 = sbr.rel (%p1884) target = $region136
        $region135: #{tpu_custom_call.1} parent=131 // pred_region
          %s1887 = sand.u32 %s376, 1
          %s1888 = scalar_lea.sflag [#allocation4], %s1887
          %s1889 = sand.u32 %s376, 1
          %s1890 = scalar_lea.vmem [#allocation20], %s1889
          %1891 = dma.done %s1888, 16
        $region136: #{tpu_custom_call.1} parent=131 // pred_fallthru
          _
      $region132: #{tpu_custom_call.1} parent=5 // pred_fallthru
        _
    $region6: #{tpu_custom_call.1} parent=1 // loop_footer
      %s36 = sadd.s32 1, %s32
    $region7: #{tpu_custom_call.1} parent=1 // loop_footer_branch
      %31 = sbr.rel target = $region3
    $region8: #{tpu_custom_call.1} parent=1 // loop_exit
      _
    %1892 = vsyncpa [#allocation3], 1
    %s1893 = scalar_lea.sflag [#allocation3], 1
    %1894 = vsyncpa %s1893, 1
    %1895 = vsyncpa [#allocation6], 1
    %1896 = vsyncpa [#allocation9], 1
    %1897 = vsyncpa [#allocation12], 1
    %1898 = vsyncpa [#allocation15], 1
    %1899 = vsyncpa [#allocation18], 1
    %1900 = vsyncpa [#allocation4], 1
    %s1901 = scalar_lea.sflag [#allocation4], 1
    %1902 = vsyncpa %s1901, 1

// kernel: tpu_custom_call.1
$region0: #{tpu_custom_call.1}
  #allocation0 [shape = 'u32[]', space=smem, size = 0x4, offset = 0x4, fixed_abs, tag = 'smem constant byte address 0x4 - core index']
  #allocation1 [shape = 'u32[144,128]{1,0:T(1,128)}', space=vmem, size = 0x12000, scoped, tag = 'internal scratch']
  %s0 = inlined_call_operand.hbm [shape: f32[2,8,128], index: 0, kind: input, shape index: {}]
  %s1 = inlined_call_operand.vmem [shape: f32[2,1,8], index: 1, kind: input, shape index: {}]
  %s2 = inlined_call_operand.vmem [shape: f32[2,1,128], index: 2, kind: input, shape index: {}]
  %s3 = inlined_call_operand.hbm [shape: f32[12,128], index: 3, kind: input, shape index: {}]
  %s4 = inlined_call_operand.vmem [shape: f32[1,128], index: 4, kind: input, shape index: {}]
  %s5 = inlined_call_operand.vmem [shape: f32[1,128], index: 5, kind: input, shape index: {}]
  %s6 = inlined_call_operand.hbm [shape: bf16[128,128], index: 6, kind: input, shape index: {}]
  %s7 = inlined_call_operand.hbm [shape: bf16[128,128], index: 7, kind: input, shape index: {}]
  %s8 = inlined_call_operand.hbm [shape: bf16[128,128], index: 8, kind: input, shape index: {}]
  %s9 = inlined_call_operand.hbm [shape: bf16[128,128], index: 9, kind: input, shape index: {}]
  %s10 = inlined_call_operand.hbm [shape: bf16[128,128], index: 10, kind: input, shape index: {}]
  %s11 = inlined_call_operand.hbm [shape: bf16[128,128], index: 11, kind: input, shape index: {}]
  %s12 = inlined_call_operand.hbm [shape: bf16[128,128], index: 12, kind: input, shape index: {}]
  %s13 = inlined_call_operand.hbm [shape: bf16[128,128], index: 13, kind: input, shape index: {}]
  %s14 = inlined_call_operand.hbm [shape: bf16[128,128], index: 14, kind: input, shape index: {}]
  %s15 = inlined_call_operand.hbm [shape: f32[2,1,128], index: 15, kind: output, shape index: {}]
  %s16 = sld [smem:[#allocation0]]
  $region137: #{tpu_custom_call.1} parent=0
    _
  %s18 = ssub.s32 1, %s16
  %s19 = scalar_select 0, %s18, %s16
  $region1: #{tpu_custom_call.1} parent=0
    #allocation2 [shape = 'u8[8192]{0}', space=vmem, size = 0x2000, scoped, tag = 'input window, operand 0']
    #allocation3 [shape = 's32[2]{0}', space=sflag, size = 0x8, scoped, tag = 'scoped memory for tpu_custom_call.1']
    #allocation4 [shape = 's32[2]{0}', space=sflag, size = 0x8, scoped, tag = 'scoped memory for tpu_custom_call.1']
    #allocation5 [shape = 'u8[8192]{0}', space=vmem, size = 0x2000, scoped, tag = 'input window, operand 3, single buffered']
    #allocation6 [shape = 's32[1]{0}', space=sflag, size = 0x4, scoped, tag = 'scoped memory for tpu_custom_call.1']
    #allocation7 [shape = 'u8[32768]{0}', space=vmem, size = 0x8000, scoped, tag = 'input window, operand 6, single buffered']
    #allocation8 [shape = 'u8[32768]{0}', space=vmem, size = 0x8000, scoped, tag = 'input window, operand 7, single buffered']
    #allocation9 [shape = 's32[1]{0}', space=sflag, size = 0x4, scoped, tag = 'scoped memory for tpu_custom_call.1']
    #allocation10 [shape = 'u8[32768]{0}', space=vmem, size = 0x8000, scoped, tag = 'input window, operand 8, single buffered']
    #allocation11 [shape = 'u8[32768]{0}', space=vmem, size = 0x8000, scoped, tag = 'input window, operand 9, single buffered']
    #allocation12 [shape = 's32[1]{0}', space=sflag, size = 0x4, scoped, tag = 'scoped memory for tpu_custom_call.1']
    #allocation13 [shape = 'u8[32768]{0}', space=vmem, size = 0x8000, scoped, tag = 'input window, operand 10, single buffered']
    #allocation14 [shape = 'u8[32768]{0}', space=vmem, size = 0x8000, scoped, tag = 'input window, operand 11, single buffered']
    #allocation15 [shape = 's32[1]{0}', space=sflag, size = 0x4, scoped, tag = 'scoped memory for tpu_custom_call.1']
    #allocation16 [shape = 'u8[32768]{0}', space=vmem, size = 0x8000, scoped, tag = 'input window, operand 12, single buffered']
    #allocation17 [shape = 'u8[32768]{0}', space=vmem, size = 0x8000, scoped, tag = 'input window, operand 13, single buffered']
    #allocation18 [shape = 's32[1]{0}', space=sflag, size = 0x4, scoped, tag = 'scoped memory for tpu_custom_call.1']
    #allocation19 [shape = 'u8[32768]{0}', space=vmem, size = 0x8000, scoped, tag = 'input window, operand 14, single buffered']
    #allocation20 [shape = 'u8[1024]{0}', space=vmem, size = 0x400, scoped, tag = 'output window, operand 0']
    %20 = vsyncpa [#allocation3], 0
    %s21 = scalar_lea.sflag [#allocation3], 1
    %22 = vsyncpa %s21, 0
    %23 = vsyncpa [#allocation6], 0
    %24 = vsyncpa [#allocation9], 0
    %25 = vsyncpa [#allocation12], 0
    %26 = vsyncpa [#allocation15], 0
    %27 = vsyncpa [#allocation18], 0
    %28 = vsyncpa [#allocation4], 0
    %s29 = scalar_lea.sflag [#allocation4], 1
    %30 = vsyncpa %s29, 0
    loop: start=0, step=1, limit=4
    $region2: #{tpu_custom_call.1} parent=1 // loop_pre_header
      _
    $region3: #{tpu_custom_call.1} parent=1 // loop_header
      %s32 = sphi 0, %s36
      %p33 = scmp.ge.s32.totalorder %s32, 4
      %s42 = sphi 0, %s44
      %s45 = sphi 0, %s42
      %s46 = sphi 0, %s45
      %s62 = sphi 0, %s46
      %s68 = sphi 0, %s70
      %s71 = sphi 0, %s68
      %s72 = sphi 0, %s71
      %s88 = sphi 0, %s72
      %s94 = sphi 0, %s96
      %s97 = sphi 0, %s94
      %s98 = sphi 0, %s97
      %s114 = sphi 0, %s98
      %s118 = sphi 0, %s118
      %s120 = sphi 0, %s118
      %s121 = sphi 0, %s120
      %s135 = sphi 0, %s121
      %s139 = sphi 0, %s139
      %s141 = sphi 0, %s139
      %s142 = sphi 0, %s141
      %s156 = sphi 0, %s142
      %s160 = sphi 0, %s160
      %s162 = sphi 0, %s160
      %s163 = sphi 0, %s162
      %s177 = sphi 0, %s163
      %s181 = sphi 0, %s181
      %s183 = sphi 0, %s181
      %s184 = sphi 0, %s183
      %s198 = sphi 0, %s184
      %s202 = sphi 0, %s202
      %s204 = sphi 0, %s202
      %s205 = sphi 0, %s204
      %s219 = sphi 0, %s205
      %s223 = sphi 0, %s223
      %s225 = sphi 0, %s223
      %s226 = sphi 0, %s225
      %s240 = sphi 0, %s226
      %s244 = sphi 0, %s244
      %s246 = sphi 0, %s244
      %s247 = sphi 0, %s246
      %s261 = sphi 0, %s247
      %s265 = sphi 0, %s265
      %s267 = sphi 0, %s265
      %s268 = sphi 0, %s267
      %s282 = sphi 0, %s268
      %s286 = sphi 0, %s286
      %s288 = sphi 0, %s286
      %s289 = sphi 0, %s288
      %s303 = sphi 0, %s289
      %s307 = sphi 0, %s307
      %s309 = sphi 0, %s307
      %s310 = sphi 0, %s309
      %s324 = sphi 0, %s310
      %s328 = sphi 0, %s328
      %s330 = sphi 0, %s328
      %s331 = sphi 0, %s330
      %s345 = sphi 0, %s331
      %s349 = sphi 0, %s349
      %s351 = sphi 0, %s349
      %s352 = sphi 0, %s351
      %s366 = sphi 0, %s352
      %s372 = sphi 0, %s374
      %s375 = sphi 0, %s372
      %s376 = sphi 0, %s375
      %s392 = sphi 0, %s376
    $region4: #{tpu_custom_call.1} parent=1 // loop_header_branch
      %35 = sbr.rel (%p33) target = $region8
    $region5: #{tpu_custom_call.1} parent=1 // loop_body
      %s37 = ssub.s32 %s32, 1
      %s38 = ssub.s32 %s32, 2
      %s39 = sadd.s32 %s32, 1
      %s40 = ssub.s32 %s32, %s39
      %p41 = scmp.eq.s32.totalorder %s40, 0
      %s43 = sadd.s32 %s42, 1
      %s44 = scalar_select %p41, %s42, %s43
      %p47 = pneg %p41
      %p48 = scmp.eq.s32.totalorder %s32, 1
      %p49 = por %p47, %p48
      %p50 = scmp.ne.s32.totalorder %s42, %s45
      %p51 = scmp.eq.s32.totalorder %s32, 0
      %p52 = por %p50, %p51
      %p53 = scmp.ne.s32.totalorder %s42, %s45
      %p54 = scmp.eq.s32.totalorder %s37, 1
      %p55 = por %p53, %p54
      %p56 = scmp.ne.s32.totalorder %s45, %s46
      %p57 = scmp.eq.s32.totalorder %s37, 0
      %p58 = por %p56, %p57
      %p59 = scmp.ne.s32.totalorder %s45, %s46
      %p60 = scmp.eq.s32.totalorder %s38, 1
      %p61 = por %p59, %p60
      %p63 = scmp.ne.s32.totalorder %s46, %s62
      %p64 = scmp.eq.s32.totalorder %s38, 0
      %p65 = por %p63, %p64
      %s66 = ssub.s32 %s32, %s39
      %p67 = scmp.eq.s32.totalorder %s66, 0
      %s69 = sadd.s32 %s68, 1
      %s70 = scalar_select %p67, %s68, %s69
      %p73 = pneg %p67
      %p74 = scmp.eq.s32.totalorder %s32, 1
      %p75 = por %p73, %p74
      %p76 = scmp.ne.s32.totalorder %s68, %s71
      %p77 = scmp.eq.s32.totalorder %s32, 0
      %p78 = por %p76, %p77
      %p79 = scmp.ne.s32.totalorder %s68, %s71
      %p80 = scmp.eq.s32.totalorder %s37, 1
      %p81 = por %p79, %p80
      %p82 = scmp.ne.s32.totalorder %s71, %s72
      %p83 = scmp.eq.s32.totalorder %s37, 0
      %p84 = por %p82, %p83
      %p85 = scmp.ne.s32.totalorder %s71, %s72
      %p86 = scmp.eq.s32.totalorder %s38, 1
      %p87 = por %p85, %p86
      %p89 = scmp.ne.s32.totalorder %s72, %s88
      %p90 = scmp.eq.s32.totalorder %s38, 0
      %p91 = por %p89, %p90
      %s92 = ssub.s32 %s32, %s39
      %p93 = scmp.eq.s32.totalorder %s92, 0
      %s95 = sadd.s32 %s94, 1
      %s96 = scalar_select %p93, %s94, %s95
      %p99 = pneg %p93
      %p100 = scmp.eq.s32.totalorder %s32, 1
      %p101 = por %p99, %p100
      %p102 = scmp.ne.s32.totalorder %s94, %s97
      %p103 = scmp.eq.s32.totalorder %s32, 0
      %p104 = por %p102, %p103
      %p105 = scmp.ne.s32.totalorder %s94, %s97
      %p106 = scmp.eq.s32.totalorder %s37, 1
      %p107 = por %p105, %p106
      %p108 = scmp.ne.s32.totalorder %s97, %s98
      %p109 = scmp.eq.s32.totalorder %s37, 0
      %p110 = por %p108, %p109
      %p111 = scmp.ne.s32.totalorder %s97, %s98
      %p112 = scmp.eq.s32.totalorder %s38, 1
      %p113 = por %p111, %p112
      %p115 = scmp.ne.s32.totalorder %s98, %s114
      %p116 = scmp.eq.s32.totalorder %s38, 0
      %p117 = por %p115, %p116
      %s119 = sadd.s32 %s118, 1
      %p122 = scmp.eq.s32.totalorder %s32, 1
      %p123 = scmp.ne.s32.totalorder %s118, %s120
      %p124 = scmp.eq.s32.totalorder %s32, 0
      %p125 = por %p123, %p124
      %p126 = scmp.ne.s32.totalorder %s118, %s120
      %p127 = scmp.eq.s32.totalorder %s37, 1
      %p128 = por %p126, %p127
      %p129 = scmp.ne.s32.totalorder %s120, %s121
      %p130 = scmp.eq.s32.totalorder %s37, 0
      %p131 = por %p129, %p130
      %p132 = scmp.ne.s32.totalorder %s120, %s121
      %p133 = scmp.eq.s32.totalorder %s38, 1
      %p134 = por %p132, %p133
      %p136 = scmp.ne.s32.totalorder %s121, %s135
      %p137 = scmp.eq.s32.totalorder %s38, 0
      %p138 = por %p136, %p137
      %s140 = sadd.s32 %s139, 1
      %p143 = scmp.eq.s32.totalorder %s32, 1
      %p144 = scmp.ne.s32.totalorder %s139, %s141
      %p145 = scmp.eq.s32.totalorder %s32, 0
      %p146 = por %p144, %p145
      %p147 = scmp.ne.s32.totalorder %s139, %s141
      %p148 = scmp.eq.s32.totalorder %s37, 1
      %p149 = por %p147, %p148
      %p150 = scmp.ne.s32.totalorder %s141, %s142
      %p151 = scmp.eq.s32.totalorder %s37, 0
      %p152 = por %p150, %p151
      %p153 = scmp.ne.s32.totalorder %s141, %s142
      %p154 = scmp.eq.s32.totalorder %s38, 1
      %p155 = por %p153, %p154
      %p157 = scmp.ne.s32.totalorder %s142, %s156
      %p158 = scmp.eq.s32.totalorder %s38, 0
      %p159 = por %p157, %p158
      %s161 = sadd.s32 %s160, 1
      %p164 = scmp.eq.s32.totalorder %s32, 1
      %p165 = scmp.ne.s32.totalorder %s160, %s162
      %p166 = scmp.eq.s32.totalorder %s32, 0
      %p167 = por %p165, %p166
      %p168 = scmp.ne.s32.totalorder %s160, %s162
      %p169 = scmp.eq.s32.totalorder %s37, 1
      %p170 = por %p168, %p169
      %p171 = scmp.ne.s32.totalorder %s162, %s163
      %p172 = scmp.eq.s32.totalorder %s37, 0
      %p173 = por %p171, %p172
      %p174 = scmp.ne.s32.totalorder %s162, %s163
      %p175 = scmp.eq.s32.totalorder %s38, 1
      %p176 = por %p174, %p175
      %p178 = scmp.ne.s32.totalorder %s163, %s177
      %p179 = scmp.eq.s32.totalorder %s38, 0
      %p180 = por %p178, %p179
      %s182 = sadd.s32 %s181, 1
      %p185 = scmp.eq.s32.totalorder %s32, 1
      %p186 = scmp.ne.s32.totalorder %s181, %s183
      %p187 = scmp.eq.s32.totalorder %s32, 0
      %p188 = por %p186, %p187
      %p189 = scmp.ne.s32.totalorder %s181, %s183
      %p190 = scmp.eq.s32.totalorder %s37, 1
      %p191 = por %p189, %p190
      %p192 = scmp.ne.s32.totalorder %s183, %s184
      %p193 = scmp.eq.s32.totalorder %s37, 0
      %p194 = por %p192, %p193
      %p195 = scmp.ne.s32.totalorder %s183, %s184
      %p196 = scmp.eq.s32.totalorder %s38, 1
      %p197 = por %p195, %p196
      %p199 = scmp.ne.s32.totalorder %s184, %s198
      %p200 = scmp.eq.s32.totalorder %s38, 0
      %p201 = por %p199, %p200
      %s203 = sadd.s32 %s202, 1
      %p206 = scmp.eq.s32.totalorder %s32, 1
      %p207 = scmp.ne.s32.totalorder %s202, %s204
      %p208 = scmp.eq.s32.totalorder %s32, 0
      %p209 = por %p207, %p208
      %p210 = scmp.ne.s32.totalorder %s202, %s204
      %p211 = scmp.eq.s32.totalorder %s37, 1
      %p212 = por %p210, %p211
      %p213 = scmp.ne.s32.totalorder %s204, %s205
      %p214 = scmp.eq.s32.totalorder %s37, 0
      %p215 = por %p213, %p214
      %p216 = scmp.ne.s32.totalorder %s204, %s205
      %p217 = scmp.eq.s32.totalorder %s38, 1
      %p218 = por %p216, %p217
      %p220 = scmp.ne.s32.totalorder %s205, %s219
      %p221 = scmp.eq.s32.totalorder %s38, 0
      %p222 = por %p220, %p221
      %s224 = sadd.s32 %s223, 1
      %p227 = scmp.eq.s32.totalorder %s32, 1
      %p228 = scmp.ne.s32.totalorder %s223, %s225
      %p229 = scmp.eq.s32.totalorder %s32, 0
      %p230 = por %p228, %p229
      %p231 = scmp.ne.s32.totalorder %s223, %s225
      %p232 = scmp.eq.s32.totalorder %s37, 1
      %p233 = por %p231, %p232
      %p234 = scmp.ne.s32.totalorder %s225, %s226
      %p235 = scmp.eq.s32.totalorder %s37, 0
      %p236 = por %p234, %p235
      %p237 = scmp.ne.s32.totalorder %s225, %s226
      %p238 = scmp.eq.s32.totalorder %s38, 1
      %p239 = por %p237, %p238
      %p241 = scmp.ne.s32.totalorder %s226, %s240
      %p242 = scmp.eq.s32.totalorder %s38, 0
      %p243 = por %p241, %p242
      %s245 = sadd.s32 %s244, 1
      %p248 = scmp.eq.s32.totalorder %s32, 1
      %p249 = scmp.ne.s32.totalorder %s244, %s246
      %p250 = scmp.eq.s32.totalorder %s32, 0
      %p251 = por %p249, %p250
      %p252 = scmp.ne.s32.totalorder %s244, %s246
      %p253 = scmp.eq.s32.totalorder %s37, 1
      %p254 = por %p252, %p253
      %p255 = scmp.ne.s32.totalorder %s246, %s247
      %p256 = scmp.eq.s32.totalorder %s37, 0
      %p257 = por %p255, %p256
      %p258 = scmp.ne.s32.totalorder %s246, %s247
      %p259 = scmp.eq.s32.totalorder %s38, 1
      %p260 = por %p258, %p259
      %p262 = scmp.ne.s32.totalorder %s247, %s261
      %p263 = scmp.eq.s32.totalorder %s38, 0
      %p264 = por %p262, %p263
      %s266 = sadd.s32 %s265, 1
      %p269 = scmp.eq.s32.totalorder %s32, 1
      %p270 = scmp.ne.s32.totalorder %s265, %s267
      %p271 = scmp.eq.s32.totalorder %s32, 0
      %p272 = por %p270, %p271
      %p273 = scmp.ne.s32.totalorder %s265, %s267
      %p274 = scmp.eq.s32.totalorder %s37, 1
      %p275 = por %p273, %p274
      %p276 = scmp.ne.s32.totalorder %s267, %s268
      %p277 = scmp.eq.s32.totalorder %s37, 0
      %p278 = por %p276, %p277
      %p279 = scmp.ne.s32.totalorder %s267, %s268
      %p280 = scmp.eq.s32.totalorder %s38, 1
      %p281 = por %p279, %p280
      %p283 = scmp.ne.s32.totalorder %s268, %s282
      %p284 = scmp.eq.s32.totalorder %s38, 0
      %p285 = por %p283, %p284
      %s287 = sadd.s32 %s286, 1
      %p290 = scmp.eq.s32.totalorder %s32, 1
      %p291 = scmp.ne.s32.totalorder %s286, %s288
      %p292 = scmp.eq.s32.totalorder %s32, 0
      %p293 = por %p291, %p292
      %p294 = scmp.ne.s32.totalorder %s286, %s288
      %p295 = scmp.eq.s32.totalorder %s37, 1
      %p296 = por %p294, %p295
      %p297 = scmp.ne.s32.totalorder %s288, %s289
      %p298 = scmp.eq.s32.totalorder %s37, 0
      %p299 = por %p297, %p298
      %p300 = scmp.ne.s32.totalorder %s288, %s289
      %p301 = scmp.eq.s32.totalorder %s38, 1
      %p302 = por %p300, %p301
      %p304 = scmp.ne.s32.totalorder %s289, %s303
      %p305 = scmp.eq.s32.totalorder %s38, 0
      %p306 = por %p304, %p305
      %s308 = sadd.s32 %s307, 1
      %p311 = scmp.eq.s32.totalorder %s32, 1
      %p312 = scmp.ne.s32.totalorder %s307, %s309
      %p313 = scmp.eq.s32.totalorder %s32, 0
      %p314 = por %p312, %p313
      %p315 = scmp.ne.s32.totalorder %s307, %s309
      %p316 = scmp.eq.s32.totalorder %s37, 1
      %p317 = por %p315, %p316
      %p318 = scmp.ne.s32.totalorder %s309, %s310
      %p319 = scmp.eq.s32.totalorder %s37, 0
      %p320 = por %p318, %p319
      %p321 = scmp.ne.s32.totalorder %s309, %s310
      %p322 = scmp.eq.s32.totalorder %s38, 1
      %p323 = por %p321, %p322
      %p325 = scmp.ne.s32.totalorder %s310, %s324
      %p326 = scmp.eq.s32.totalorder %s38, 0
      %p327 = por %p325, %p326
      %s329 = sadd.s32 %s328, 1
      %p332 = scmp.eq.s32.totalorder %s32, 1
      %p333 = scmp.ne.s32.totalorder %s328, %s330
      %p334 = scmp.eq.s32.totalorder %s32, 0
      %p335 = por %p333, %p334
      %p336 = scmp.ne.s32.totalorder %s328, %s330
      %p337 = scmp.eq.s32.totalorder %s37, 1
      %p338 = por %p336, %p337
      %p339 = scmp.ne.s32.totalorder %s330, %s331
      %p340 = scmp.eq.s32.totalorder %s37, 0
      %p341 = por %p339, %p340
      %p342 = scmp.ne.s32.totalorder %s330, %s331
      %p343 = scmp.eq.s32.totalorder %s38, 1
      %p344 = por %p342, %p343
      %p346 = scmp.ne.s32.totalorder %s331, %s345
      %p347 = scmp.eq.s32.totalorder %s38, 0
      %p348 = por %p346, %p347
      %s350 = sadd.s32 %s349, 1
      %p353 = scmp.eq.s32.totalorder %s32, 1
      %p354 = scmp.ne.s32.totalorder %s349, %s351
      %p355 = scmp.eq.s32.totalorder %s32, 0
      %p356 = por %p354, %p355
      %p357 = scmp.ne.s32.totalorder %s349, %s351
      %p358 = scmp.eq.s32.totalorder %s37, 1
      %p359 = por %p357, %p358
      %p360 = scmp.ne.s32.totalorder %s351, %s352
      %p361 = scmp.eq.s32.totalorder %s37, 0
      %p362 = por %p360, %p361
      %p363 = scmp.ne.s32.totalorder %s351, %s352
      %p364 = scmp.eq.s32.totalorder %s38, 1
      %p365 = por %p363, %p364
      %p367 = scmp.ne.s32.totalorder %s352, %s366
      %p368 = scmp.eq.s32.totalorder %s38, 0
      %p369 = por %p367, %p368
      %s370 = ssub.s32 %s32, %s39
      %p371 = scmp.eq.s32.totalorder %s370, 0
      %s373 = sadd.s32 %s372, 1
      %s374 = scalar_select %p371, %s372, %s373
      %p377 = pneg %p371
      %p378 = scmp.eq.s32.totalorder %s32, 1
      %p379 = por %p377, %p378
      %p380 = scmp.ne.s32.totalorder %s372, %s375
      %p381 = scmp.eq.s32.totalorder %s32, 0
      %p382 = por %p380, %p381
      %p383 = scmp.ne.s32.totalorder %s372, %s375
      %p384 = scmp.eq.s32.totalorder %s37, 1
      %p385 = por %p383, %p384
      %p386 = scmp.ne.s32.totalorder %s375, %s376
      %p387 = scmp.eq.s32.totalorder %s37, 0
      %p388 = por %p386, %p387
      %p389 = scmp.ne.s32.totalorder %s375, %s376
      %p390 = scmp.eq.s32.totalorder %s38, 1
      %p391 = por %p389, %p390
      %p393 = scmp.ne.s32.totalorder %s376, %s392
      %p394 = scmp.eq.s32.totalorder %s38, 0
      %p395 = por %p393, %p394
      %p396 = scmp.le.s32.totalorder 1, %s32
      %p397 = scmp.lt.s32.totalorder %s32, 3
      %p398 = pnand %p396, %p397
      %p399 = pneg %p398
      // Predicated region
      $region9: #{tpu_custom_call.1} parent=5 // pred_check
        _
      $region10: #{tpu_custom_call.1} parent=5 // pred_check_branch
        %401 = sbr.rel (%p398) target = $region12
      $region11: #{tpu_custom_call.1} parent=5 // pred_region
        %s402 = ssub.s32 %s32, 1
        // Predicated region
        $region13: #{tpu_custom_call.1} parent=11 // pred_check
          %p403 = pneg %p131
        $region14: #{tpu_custom_call.1} parent=11 // pred_check_branch
          %405 = sbr.rel (%p403) target = $region16
        $region15: #{tpu_custom_call.1} parent=11 // pred_region
          %s407 = ssub.s32 256, 256
          %408 = vsyncadd [#allocation6], %s407
          %s409 = sshll.u32 [#allocation5], 4
          %s410 = int_to_ptr.vmem [resolvable:$true] %s409
          %415 = dma.hbm_to_vmem [thread:$0]  %s3, 256, %s410, [#allocation6], 128, 128, 8
        $region16: #{tpu_custom_call.1} parent=11 // pred_fallthru
          _
        // Predicated region
        $region17: #{tpu_custom_call.1} parent=11 // pred_check
          %p416 = pneg %p152
        $region18: #{tpu_custom_call.1} parent=11 // pred_check_branch
          %418 = sbr.rel (%p416) target = $region20
        $region19: #{tpu_custom_call.1} parent=11 // pred_region
          _
        $region20: #{tpu_custom_call.1} parent=11 // pred_fallthru
          _
        // Predicated region
        $region21: #{tpu_custom_call.1} parent=11 // pred_check
          %p419 = pneg %p173
        $region22: #{tpu_custom_call.1} parent=11 // pred_check_branch
          %421 = sbr.rel (%p419) target = $region24
        $region23: #{tpu_custom_call.1} parent=11 // pred_region
          _
        $region24: #{tpu_custom_call.1} parent=11 // pred_fallthru
          _
        // Predicated region
        $region25: #{tpu_custom_call.1} parent=11 // pred_check
          %p422 = pneg %p194
        $region26: #{tpu_custom_call.1} parent=11 // pred_check_branch
          %424 = sbr.rel (%p422) target = $region28
        $region27: #{tpu_custom_call.1} parent=11 // pred_region
          %s426 = ssub.s32 1024, 1024
          %427 = vsyncadd [#allocation6], %s426
          %s428 = sshll.u32 [#allocation7], 4
          %s429 = int_to_ptr.vmem [resolvable:$true] %s428
          %434 = dma.hbm_to_vmem [thread:$0]  %s6, 1024, %s429, [#allocation6], 64, 64, 4
        $region28: #{tpu_custom_call.1} parent=11 // pred_fallthru
          _
        // Predicated region
        $region29: #{tpu_custom_call.1} parent=11 // pred_check
          %p435 = pneg %p215
        $region30: #{tpu_custom_call.1} parent=11 // pred_check_branch
          %437 = sbr.rel (%p435) target = $region32
        $region31: #{tpu_custom_call.1} parent=11 // pred_region
          %s439 = ssub.s32 1024, 1024
          %440 = vsyncadd [#allocation9], %s439
          %s441 = sshll.u32 [#allocation8], 4
          %s442 = int_to_ptr.vmem [resolvable:$true] %s441
          %447 = dma.hbm_to_vmem [thread:$0]  %s7, 1024, %s442, [#allocation9], 64, 64, 4
        $region32: #{tpu_custom_call.1} parent=11 // pred_fallthru
          _
        // Predicated region
        $region33: #{tpu_custom_call.1} parent=11 // pred_check
          %p448 = pneg %p236
        $region34: #{tpu_custom_call.1} parent=11 // pred_check_branch
          %450 = sbr.rel (%p448) target = $region36
        $region35: #{tpu_custom_call.1} parent=11 // pred_region
          %s452 = ssub.s32 1024, 1024
          %453 = vsyncadd [#allocation9], %s452
          %s454 = sshll.u32 [#allocation10], 4
          %s455 = int_to_ptr.vmem [resolvable:$true] %s454
          %460 = dma.hbm_to_vmem [thread:$0]  %s8, 1024, %s455, [#allocation9], 64, 64, 4
        $region36: #{tpu_custom_call.1} parent=11 // pred_fallthru
          _
        // Predicated region
        $region37: #{tpu_custom_call.1} parent=11 // pred_check
          %p461 = pneg %p257
        $region38: #{tpu_custom_call.1} parent=11 // pred_check_branch
          %463 = sbr.rel (%p461) target = $region40
        $region39: #{tpu_custom_call.1} parent=11 // pred_region
          %s465 = ssub.s32 1024, 1024
          %466 = vsyncadd [#allocation12], %s465
          %s467 = sshll.u32 [#allocation11], 4
          %s468 = int_to_ptr.vmem [resolvable:$true] %s467
          %473 = dma.hbm_to_vmem [thread:$0]  %s9, 1024, %s468, [#allocation12], 64, 64, 4
        $region40: #{tpu_custom_call.1} parent=11 // pred_fallthru
          _
        // Predicated region
        $region41: #{tpu_custom_call.1} parent=11 // pred_check
          %p474 = pneg %p278
        $region42: #{tpu_custom_call.1} parent=11 // pred_check_branch
          %476 = sbr.rel (%p474) target = $region44
        $region43: #{tpu_custom_call.1} parent=11 // pred_region
          %s478 = ssub.s32 1024, 1024
          %479 = vsyncadd [#allocation12], %s478
          %s480 = sshll.u32 [#allocation13], 4
          %s481 = int_to_ptr.vmem [resolvable:$true] %s480
          %486 = dma.hbm_to_vmem [thread:$0]  %s10, 1024, %s481, [#allocation12], 64, 64, 4
        $region44: #{tpu_custom_call.1} parent=11 // pred_fallthru
          _
        // Predicated region
        $region45: #{tpu_custom_call.1} parent=11 // pred_check
          %p487 = pneg %p299
        $region46: #{tpu_custom_call.1} parent=11 // pred_check_branch
          %489 = sbr.rel (%p487) target = $region48
        $region47: #{tpu_custom_call.1} parent=11 // pred_region
          %s491 = ssub.s32 1024, 1024
          %492 = vsyncadd [#allocation15], %s491
          %s493 = sshll.u32 [#allocation14], 4
          %s494 = int_to_ptr.vmem [resolvable:$true] %s493
          %499 = dma.hbm_to_vmem [thread:$0]  %s11, 1024, %s494, [#allocation15], 64, 64, 4
        $region48: #{tpu_custom_call.1} parent=11 // pred_fallthru
          _
        // Predicated region
        $region49: #{tpu_custom_call.1} parent=11 // pred_check
          %p500 = pneg %p320
        $region50: #{tpu_custom_call.1} parent=11 // pred_check_branch
          %502 = sbr.rel (%p500) target = $region52
        $region51: #{tpu_custom_call.1} parent=11 // pred_region
          %s504 = ssub.s32 1024, 1024
          %505 = vsyncadd [#allocation15], %s504
          %s506 = sshll.u32 [#allocation16], 4
          %s507 = int_to_ptr.vmem [resolvable:$true] %s506
          %512 = dma.hbm_to_vmem [thread:$0]  %s12, 1024, %s507, [#allocation15], 64, 64, 4
        $region52: #{tpu_custom_call.1} parent=11 // pred_fallthru
          _
        // Predicated region
        $region53: #{tpu_custom_call.1} parent=11 // pred_check
          %p513 = pneg %p341
        $region54: #{tpu_custom_call.1} parent=11 // pred_check_branch
          %515 = sbr.rel (%p513) target = $region56
        $region55: #{tpu_custom_call.1} parent=11 // pred_region
          %s517 = ssub.s32 1024, 1024
          %518 = vsyncadd [#allocation18], %s517
          %s519 = sshll.u32 [#allocation17], 4
          %s520 = int_to_ptr.vmem [resolvable:$true] %s519
          %525 = dma.hbm_to_vmem [thread:$0]  %s13, 1024, %s520, [#allocation18], 64, 64, 4
        $region56: #{tpu_custom_call.1} parent=11 // pred_fallthru
          _
        // Predicated region
        $region57: #{tpu_custom_call.1} parent=11 // pred_check
          %p526 = pneg %p362
        $region58: #{tpu_custom_call.1} parent=11 // pred_check_branch
          %528 = sbr.rel (%p526) target = $region60
        $region59: #{tpu_custom_call.1} parent=11 // pred_region
          %s530 = ssub.s32 1024, 1024
          %531 = vsyncadd [#allocation18], %s530
          %s532 = sshll.u32 [#allocation19], 4
          %s533 = int_to_ptr.vmem [resolvable:$true] %s532
          %538 = dma.hbm_to_vmem [thread:$0]  %s14, 1024, %s533, [#allocation18], 64, 64, 4
        $region60: #{tpu_custom_call.1} parent=11 // pred_fallthru
          _
      $region12: #{tpu_custom_call.1} parent=5 // pred_fallthru
        _
      %p539 = scmp.lt.s32.totalorder %s32, 2
      // Predicated region
      $region61: #{tpu_custom_call.1} parent=5 // pred_check
        %p540 = pneg %p539
      $region62: #{tpu_custom_call.1} parent=5 // pred_check_branch
        %542 = sbr.rel (%p540) target = $region64
      $region63: #{tpu_custom_call.1} parent=5 // pred_region
        // Predicated region
        $region65: #{tpu_custom_call.1} parent=63 // pred_check
          %p543 = pneg %p52
        $region66: #{tpu_custom_call.1} parent=63 // pred_check_branch
          %545 = sbr.rel (%p543) target = $region68
        $region67: #{tpu_custom_call.1} parent=63 // pred_region
          %s546 = sand.u32 %s42, 1
          %s547 = scalar_lea.sflag [#allocation3], %s546
          %s548 = sand.u32 %s42, 1
          %s549 = smul.addr %s548, 8
          %s550 = scalar_lea.vmem [#allocation2], %s549
          %s552 = ssub.s32 128, 128
          %553 = vsyncadd %s547, %s552
          %s554 = smul.addr %s32, 128
          %s555 = scalar_lea.hbm %s0, %s554
          %s557 = sshll.u32 %s550, 4
          %s558 = int_to_ptr.vmem [resolvable:$true] %s557
          %560 = dma.hbm_to_vmem [thread:$0]  %s555, 128, %s558, %s547
        $region68: #{tpu_custom_call.1} parent=63 // pred_fallthru
          _
        // Predicated region
        $region69: #{tpu_custom_call.1} parent=63 // pred_check
          %p561 = pneg %p78
        $region70: #{tpu_custom_call.1} parent=63 // pred_check_branch
          %563 = sbr.rel (%p561) target = $region72
        $region71: #{tpu_custom_call.1} parent=63 // pred_region
          %p564 = scmp.lt.s32.totalorder %s32, 1
          %s565 = scalar_select %p564, %s32, 1
          %s566 = scalar_lea.vmem %s1, %s565
        $region72: #{tpu_custom_call.1} parent=63 // pred_fallthru
          _
        // Predicated region
        $region73: #{tpu_custom_call.1} parent=63 // pred_check
          %p567 = pneg %p104
        $region74: #{tpu_custom_call.1} parent=63 // pred_check_branch
          %569 = sbr.rel (%p567) target = $region76
        $region75: #{tpu_custom_call.1} parent=63 // pred_region
          %p570 = scmp.lt.s32.totalorder %s32, 1
          %s571 = scalar_select %p570, %s32, 1
          %s572 = scalar_lea.vmem %s2, %s571
        $region76: #{tpu_custom_call.1} parent=63 // pred_fallthru
          _
      $region64: #{tpu_custom_call.1} parent=5 // pred_fallthru
        _
      %p573 = scmp.le.s32.totalorder 1, %s32
      %p574 = scmp.lt.s32.totalorder %s32, 3
      %p575 = pnand %p573, %p574
      %p576 = pneg %p575
      // Predicated region
      $region77: #{tpu_custom_call.1} parent=5 // pred_check
        _
      $region78: #{tpu_custom_call.1} parent=5 // pred_check_branch
        %578 = sbr.rel (%p575) target = $region80
      $region79: #{tpu_custom_call.1} parent=5 // pred_region
        %s579 = ssub.s32 %s32, 1
        %s580 = sand.u32 %s45, 1
        %s581 = scalar_lea.sflag [#allocation3], %s580
        %s582 = sand.u32 %s45, 1
        %s583 = smul.addr %s582, 8
        %s584 = scalar_lea.vmem [#allocation2], %s583
        // Predicated region
        $region81: #{tpu_custom_call.1} parent=79 // pred_check
          %p585 = pneg %p58
        $region82: #{tpu_custom_call.1} parent=79 // pred_check_branch
          %587 = sbr.rel (%p585) target = $region84
        $region83: #{tpu_custom_call.1} parent=79 // pred_region
          %588 = dma.done %s581, 128
        $region84: #{tpu_custom_call.1} parent=79 // pred_fallthru
          _
        // Predicated region
        $region85: #{tpu_custom_call.1} parent=79 // pred_check
          %p589 = pneg %p131
        $region86: #{tpu_custom_call.1} parent=79 // pred_check_branch
          %591 = sbr.rel (%p589) target = $region88
        $region87: #{tpu_custom_call.1} parent=79 // pred_region
          %592 = dma.done [#allocation6], 256
        $region88: #{tpu_custom_call.1} parent=79 // pred_fallthru
          _
        // Predicated region
        $region89: #{tpu_custom_call.1} parent=79 // pred_check
          %p593 = pneg %p194
        $region90: #{tpu_custom_call.1} parent=79 // pred_check_branch
          %595 = sbr.rel (%p593) target = $region92
        $region91: #{tpu_custom_call.1} parent=79 // pred_region
          %596 = dma.done [#allocation6], 1024
        $region92: #{tpu_custom_call.1} parent=79 // pred_fallthru
          _
        // Predicated region
        $region93: #{tpu_custom_call.1} parent=79 // pred_check
          %p597 = pneg %p215
        $region94: #{tpu_custom_call.1} parent=79 // pred_check_branch
          %599 = sbr.rel (%p597) target = $region96
        $region95: #{tpu_custom_call.1} parent=79 // pred_region
          %600 = dma.done [#allocation9], 1024
        $region96: #{tpu_custom_call.1} parent=79 // pred_fallthru
          _
        // Predicated region
        $region97: #{tpu_custom_call.1} parent=79 // pred_check
          %p601 = pneg %p236
        $region98: #{tpu_custom_call.1} parent=79 // pred_check_branch
          %603 = sbr.rel (%p601) target = $region100
        $region99: #{tpu_custom_call.1} parent=79 // pred_region
          %604 = dma.done [#allocation9], 1024
        $region100: #{tpu_custom_call.1} parent=79 // pred_fallthru
          _
        // Predicated region
        $region101: #{tpu_custom_call.1} parent=79 // pred_check
          %p605 = pneg %p257
        $region102: #{tpu_custom_call.1} parent=79 // pred_check_branch
          %607 = sbr.rel (%p605) target = $region104
        $region103: #{tpu_custom_call.1} parent=79 // pred_region
          %608 = dma.done [#allocation12], 1024
        $region104: #{tpu_custom_call.1} parent=79 // pred_fallthru
          _
        // Predicated region
        $region105: #{tpu_custom_call.1} parent=79 // pred_check
          %p609 = pneg %p278
        $region106: #{tpu_custom_call.1} parent=79 // pred_check_branch
          %611 = sbr.rel (%p609) target = $region108
        $region107: #{tpu_custom_call.1} parent=79 // pred_region
          %612 = dma.done [#allocation12], 1024
        $region108: #{tpu_custom_call.1} parent=79 // pred_fallthru
          _
        // Predicated region
        $region109: #{tpu_custom_call.1} parent=79 // pred_check
          %p613 = pneg %p299
        $region110: #{tpu_custom_call.1} parent=79 // pred_check_branch
          %615 = sbr.rel (%p613) target = $region112
        $region111: #{tpu_custom_call.1} parent=79 // pred_region
          %616 = dma.done [#allocation15], 1024
        $region112: #{tpu_custom_call.1} parent=79 // pred_fallthru
          _
        // Predicated region
        $region113: #{tpu_custom_call.1} parent=79 // pred_check
          %p617 = pneg %p320
        $region114: #{tpu_custom_call.1} parent=79 // pred_check_branch
          %619 = sbr.rel (%p617) target = $region116
        $region115: #{tpu_custom_call.1} parent=79 // pred_region
          %620 = dma.done [#allocation15], 1024
        $region116: #{tpu_custom_call.1} parent=79 // pred_fallthru
          _
        // Predicated region
        $region117: #{tpu_custom_call.1} parent=79 // pred_check
          %p621 = pneg %p341
        $region118: #{tpu_custom_call.1} parent=79 // pred_check_branch
          %623 = sbr.rel (%p621) target = $region120
        $region119: #{tpu_custom_call.1} parent=79 // pred_region
          %624 = dma.done [#allocation18], 1024
        $region120: #{tpu_custom_call.1} parent=79 // pred_fallthru
          _
        // Predicated region
        $region121: #{tpu_custom_call.1} parent=79 // pred_check
          %p625 = pneg %p362
        $region122: #{tpu_custom_call.1} parent=79 // pred_check_branch
          %627 = sbr.rel (%p625) target = $region124
        $region123: #{tpu_custom_call.1} parent=79 // pred_region
          %628 = dma.done [#allocation18], 1024
        $region124: #{tpu_custom_call.1} parent=79 // pred_fallthru
          _
        %s629 = sand.u32 %s45, 1
        %s630 = scalar_lea.sflag [#allocation3], %s629
        %s631 = sand.u32 %s45, 1
        %s632 = smul.addr %s631, 8
        %s633 = scalar_lea.vmem [#allocation2], %s632
        %p634 = pneg %p58
        %p635 = pneg %p55
        %p636 = scmp.lt.s32.totalorder %s37, 1
        %s637 = scalar_select %p636, %s37, 1
        %s638 = scalar_lea.vmem %s1, %s637
        %p639 = pneg %p84
        %p640 = pneg %p81
        %p641 = scmp.lt.s32.totalorder %s37, 1
        %s642 = scalar_select %p641, %s37, 1
        %s643 = scalar_lea.vmem %s2, %s642
        %p644 = pneg %p110
        %p645 = pneg %p107
        %p646 = pneg %p131
        %p647 = pneg %p128
        %p648 = pneg %p152
        %p649 = pneg %p149
        %p650 = pneg %p173
        %p651 = pneg %p170
        %p652 = pneg %p194
        %p653 = pneg %p191
        %p654 = pneg %p215
        %p655 = pneg %p212
        %p656 = pneg %p236
        %p657 = pneg %p233
        %p658 = pneg %p257
        %p659 = pneg %p254
        %p660 = pneg %p278
        %p661 = pneg %p275
        %p662 = pneg %p299
        %p663 = pneg %p296
        %p664 = pneg %p320
        %p665 = pneg %p317
        %p666 = pneg %p341
        %p667 = pneg %p338
        %p668 = pneg %p362
        %p669 = pneg %p359
        %p670 = pneg %p388
        %p671 = pneg %p385
        %s672 = sand.u32 %s375, 1
        %s673 = scalar_lea.sflag [#allocation4], %s672
        %s674 = sand.u32 %s375, 1
        %s675 = scalar_lea.vmem [#allocation20], %s674
        %p676 = scmp.lt.s32.totalorder %s37, 1
        %s677 = scalar_select %p676, %s37, 1
        %s678 = scalar_lea.vmem %s1, %s677
        %p679 = scmp.lt.s32.totalorder %s37, 1
        %s680 = scalar_select %p679, %s37, 1
        %s681 = scalar_lea.vmem %s2, %s680
        %v683 = vld [vmem:[#allocation5] sm:$0x1]
        %v684 = vld [vmem:[#allocation5 + $0x1] sm:$0x1]
        %v685 = vld [vmem:[#allocation5 + $0x2] sm:$0x1]
        %v686 = vld [vmem:[#allocation5 + $0x3] sm:$0x1]
        %v687 = vld [vmem:[#allocation5 + $0x4] sm:$0x1]
        %v688 = vld [vmem:[#allocation5 + $0x5] sm:$0x1]
        %v689 = vld [vmem:[#allocation5 + $0x6] sm:$0x1]
        %v690 = vld [vmem:[#allocation5 + $0x7] sm:$0x1]
        %v691 = vld [vmem:[#allocation5 + $0x8] sm:$0x1]
        %v692 = vld [vmem:[#allocation5 + $0x9] sm:$0x1]
        %v693 = vld [vmem:[#allocation5 + $0xa] sm:$0x1]
        %v694 = vld [vmem:[#allocation5 + $0xb] sm:$0x1]
        %v695 = vld [vmem:[%s584] sm:$0xff]
        %696 = vadd.xlane.f32.xlu0 %v695
        %v697 = vpop.xlane.xlu0 %696
        %v698 = vmul.f32 %v695, %v695
        %699 = vadd.xlane.f32.xlu0 %v698
        %v700 = vpop.xlane.xlu0 %699
        %v701 = vrcp.pop 32.0
        %v702 = vmul.f32 %v697, %v701
        %v703 = vmul.f32 %v700, %v701
        %v704 = vmul.f32 %v702, %v702
        %v705 = vsub.f32 %v703, %v704
        %v706 = vsub.f32 %v695, %v702
        %v707 = vadd.f32 %v705, 1e-12
        %v708 = vrsqrt.pop %v707
        %v709 = vmul.f32 %v706, %v708
        %v710 = vlaneseq
        %v711 = vshrl.u32 %v710, 7
        %v712 = vsub.s32 0, %v711
        %v713 = vrot.slane %v683, %v712
        %v714 = vmul.f32 %v709, %v713
        %v715 = vlaneseq
        %v716 = vshrl.u32 %v715, 7
        %v717 = vsub.s32 0, %v716
        %v718 = vrot.slane %v684, %v717
        %v719 = vadd.f32 %v714, %v718
        %v720 = vpack.c.bf16 %v719, %v719
        %v721 = vld [vmem:[#allocation7] sm:$0xf]
        %v722 = vld [vmem:[#allocation7 + $0x4] sm:$0xf]
        %v723 = vld [vmem:[#allocation7 + $0x8] sm:$0xf]
        %v724 = vld [vmem:[#allocation7 + $0xc] sm:$0xf]
        %v725 = vld [vmem:[#allocation7 + $0x10] sm:$0xf]
        %v726 = vld [vmem:[#allocation7 + $0x14] sm:$0xf]
        %v727 = vld [vmem:[#allocation7 + $0x18] sm:$0xf]
        %v728 = vld [vmem:[#allocation7 + $0x1c] sm:$0xf]
        %v729 = vld [vmem:[#allocation7 + $0x20] sm:$0xf]
        %v730 = vld [vmem:[#allocation7 + $0x24] sm:$0xf]
        %v731 = vld [vmem:[#allocation7 + $0x28] sm:$0xf]
        %v732 = vld [vmem:[#allocation7 + $0x2c] sm:$0xf]
        %v733 = vld [vmem:[#allocation7 + $0x30] sm:$0xf]
        %v734 = vld [vmem:[#allocation7 + $0x34] sm:$0xf]
        %v735 = vld [vmem:[#allocation7 + $0x38] sm:$0xf]
        %v736 = vld [vmem:[#allocation7 + $0x3c] sm:$0xf]
        %v737 = vlaneseq
        %v738 = vshrl.u32 %v737, 7
        %v739 = vsub.s32 0, %v738
        %v740 = vrot.slane %v685, %v739
        %v757 = vunpack.c.l.b16 %v721
        %v758 = vunpack.c.l.b16 %v722
        %v759 = vunpack.c.l.b16 %v723
        %v760 = vunpack.c.l.b16 %v724
        %v761 = vunpack.c.l.b16 %v725
        %v762 = vunpack.c.l.b16 %v726
        %v763 = vunpack.c.l.b16 %v727
        %v764 = vunpack.c.l.b16 %v728
        %v765 = vunpack.c.l.b16 %v729
        %v766 = vunpack.c.l.b16 %v730
        %v767 = vunpack.c.l.b16 %v731
        %v768 = vunpack.c.l.b16 %v732
        %v769 = vunpack.c.l.b16 %v733
        %v770 = vunpack.c.l.b16 %v734
        %v771 = vunpack.c.l.b16 %v735
        %v772 = vunpack.c.l.b16 %v736
        %v773 = vpack.c.b16 %v758, %v757
        %v774 = vpack.c.b16 %v760, %v759
        %v775 = vpack.c.b16 %v762, %v761
        %v776 = vpack.c.b16 %v764, %v763
        %v777 = vpack.c.b16 %v766, %v765
        %v778 = vpack.c.b16 %v768, %v767
        %v779 = vpack.c.b16 %v770, %v769
        %v780 = vpack.c.b16 %v772, %v771
        %789 = vmatprep.subr.bf16.mxu0 0
        %790 = vmatpush1.bf16.msra.mxu0 %v773
        %791 = vmatprep.subr.bf16.mxu0 0
        %792 = vmatpush1.bf16.msra.mxu0 %v774
        %793 = vmatprep.subr.bf16.mxu0 0
        %794 = vmatpush1.bf16.msra.mxu0 %v775
        %795 = vmatprep.subr.bf16.mxu0 0
        %796 = vmatpush1.bf16.msra.mxu0 %v776
        %797 = vmatprep.subr.bf16.mxu0 0
        %798 = vmatpush1.bf16.msra.mxu0 %v777
        %799 = vmatprep.subr.bf16.mxu0 0
        %800 = vmatpush1.bf16.msra.mxu0 %v778
        %801 = vmatprep.subr.bf16.mxu0 0
        %802 = vmatpush1.bf16.msra.mxu0 %v779
        %803 = vmatprep.subr.bf16.mxu0 0
        %804 = vmatpush1.bf16.msra.mxu0 %v780
        %805 = vmatprep.subr.bf16.mxu0 0
        %806 = vmatpush1.bf16.msra.mxu0 0
        %807 = vmatprep.subr.bf16.mxu0 0
        %808 = vmatpush1.bf16.msra.mxu0 0
        %809 = vmatprep.subr.bf16.mxu0 0
        %810 = vmatpush1.bf16.msra.mxu0 0
        %811 = vmatprep.subr.bf16.mxu0 0
        %812 = vmatpush1.bf16.msra.mxu0 0
        %813 = vmatprep.subr.bf16.mxu0 0
        %814 = vmatpush1.bf16.msra.mxu0 0
        %815 = vmatprep.subr.bf16.mxu0 0
        %816 = vmatpush1.bf16.msra.mxu0 0
        %817 = vmatprep.subr.bf16.mxu0 0
        %818 = vmatpush1.bf16.msra.mxu0 0
        %819 = vmatprep.subr.bf16.mxu0 0
        %820 = vmatpush1.bf16.msra.mxu0 0
        %821 = vmatprep.mubr.bf16.mxu0 0
        %822 = vmatmul.mubr.bf16.gmra.mrb[0].mxu0 %v720
        %v823 = vpop.f32.mrb[0].mxu0
        %v824 = vadd.f32 %v740, %v823
        %v825 = vpop.f32.mrb[0].mxu0
        %v826 = vpop.f32.mrb[0].mxu0
        %v827 = vpop.f32.mrb[0].mxu0
        %828 = vdwg.mxu0
        %v829 = vld [vmem:[#allocation8] sm:$0xf]
        %v830 = vld [vmem:[#allocation8 + $0x4] sm:$0xf]
        %v831 = vld [vmem:[#allocation8 + $0x8] sm:$0xf]
        %v832 = vld [vmem:[#allocation8 + $0xc] sm:$0xf]
        %v833 = vld [vmem:[#allocation8 + $0x10] sm:$0xf]
        %v834 = vld [vmem:[#allocation8 + $0x14] sm:$0xf]
        %v835 = vld [vmem:[#allocation8 + $0x18] sm:$0xf]
        %v836 = vld [vmem:[#allocation8 + $0x1c] sm:$0xf]
        %v837 = vld [vmem:[#allocation8 + $0x20] sm:$0xf]
        %v838 = vld [vmem:[#allocation8 + $0x24] sm:$0xf]
        %v839 = vld [vmem:[#allocation8 + $0x28] sm:$0xf]
        %v840 = vld [vmem:[#allocation8 + $0x2c] sm:$0xf]
        %v841 = vld [vmem:[#allocation8 + $0x30] sm:$0xf]
        %v842 = vld [vmem:[#allocation8 + $0x34] sm:$0xf]
        %v843 = vld [vmem:[#allocation8 + $0x38] sm:$0xf]
        %v844 = vld [vmem:[#allocation8 + $0x3c] sm:$0xf]
        %v845 = vlaneseq
        %v846 = vshrl.u32 %v845, 7
        %v847 = vsub.s32 0, %v846
        %v848 = vrot.slane %v686, %v847
        %v865 = vunpack.c.l.b16 %v829
        %v866 = vunpack.c.l.b16 %v830
        %v867 = vunpack.c.l.b16 %v831
        %v868 = vunpack.c.l.b16 %v832
        %v869 = vunpack.c.l.b16 %v833
        %v870 = vunpack.c.l.b16 %v834
        %v871 = vunpack.c.l.b16 %v835
        %v872 = vunpack.c.l.b16 %v836
        %v873 = vunpack.c.l.b16 %v837
        %v874 = vunpack.c.l.b16 %v838
        %v875 = vunpack.c.l.b16 %v839
        %v876 = vunpack.c.l.b16 %v840
        %v877 = vunpack.c.l.b16 %v841
        %v878 = vunpack.c.l.b16 %v842
        %v879 = vunpack.c.l.b16 %v843
        %v880 = vunpack.c.l.b16 %v844
        %v881 = vpack.c.b16 %v866, %v865
        %v882 = vpack.c.b16 %v868, %v867
        %v883 = vpack.c.b16 %v870, %v869
        %v884 = vpack.c.b16 %v872, %v871
        %v885 = vpack.c.b16 %v874, %v873
        %v886 = vpack.c.b16 %v876, %v875
        %v887 = vpack.c.b16 %v878, %v877
        %v888 = vpack.c.b16 %v880, %v879
        %897 = vmatprep.subr.bf16.mxu0 0
        %898 = vmatpush1.bf16.msra.mxu0 %v881
        %899 = vmatprep.subr.bf16.mxu0 0
        %900 = vmatpush1.bf16.msra.mxu0 %v882
        %901 = vmatprep.subr.bf16.mxu0 0
        %902 = vmatpush1.bf16.msra.mxu0 %v883
        %903 = vmatprep.subr.bf16.mxu0 0
        %904 = vmatpush1.bf16.msra.mxu0 %v884
        %905 = vmatprep.subr.bf16.mxu0 0
        %906 = vmatpush1.bf16.msra.mxu0 %v885
        %907 = vmatprep.subr.bf16.mxu0 0
        %908 = vmatpush1.bf16.msra.mxu0 %v886
        %909 = vmatprep.subr.bf16.mxu0 0
        %910 = vmatpush1.bf16.msra.mxu0 %v887
        %911 = vmatprep.subr.bf16.mxu0 0
        %912 = vmatpush1.bf16.msra.mxu0 %v888
        %913 = vmatprep.subr.bf16.mxu0 0
        %914 = vmatpush1.bf16.msra.mxu0 0
        %915 = vmatprep.subr.bf16.mxu0 0
        %916 = vmatpush1.bf16.msra.mxu0 0
        %917 = vmatprep.subr.bf16.mxu0 0
        %918 = vmatpush1.bf16.msra.mxu0 0
        %919 = vmatprep.subr.bf16.mxu0 0
        %920 = vmatpush1.bf16.msra.mxu0 0
        %921 = vmatprep.subr.bf16.mxu0 0
        %922 = vmatpush1.bf16.msra.mxu0 0
        %923 = vmatprep.subr.bf16.mxu0 0
        %924 = vmatpush1.bf16.msra.mxu0 0
        %925 = vmatprep.subr.bf16.mxu0 0
        %926 = vmatpush1.bf16.msra.mxu0 0
        %927 = vmatprep.subr.bf16.mxu0 0
        %928 = vmatpush1.bf16.msra.mxu0 0
        %929 = vmatprep.mubr.bf16.mxu0 0
        %930 = vmatmul.mubr.bf16.gmra.mrb[0].mxu0 %v720
        %v931 = vpop.f32.mrb[0].mxu0
        %v932 = vadd.f32 %v848, %v931
        %v933 = vpop.f32.mrb[0].mxu0
        %v934 = vpop.f32.mrb[0].mxu0
        %v935 = vpop.f32.mrb[0].mxu0
        %936 = vdwg.mxu0
        %v937 = vld [vmem:[#allocation10] sm:$0xf]
        %v938 = vld [vmem:[#allocation10 + $0x4] sm:$0xf]
        %v939 = vld [vmem:[#allocation10 + $0x8] sm:$0xf]
        %v940 = vld [vmem:[#allocation10 + $0xc] sm:$0xf]
        %v941 = vld [vmem:[#allocation10 + $0x10] sm:$0xf]
        %v942 = vld [vmem:[#allocation10 + $0x14] sm:$0xf]
        %v943 = vld [vmem:[#allocation10 + $0x18] sm:$0xf]
        %v944 = vld [vmem:[#allocation10 + $0x1c] sm:$0xf]
        %v945 = vld [vmem:[#allocation10 + $0x20] sm:$0xf]
        %v946 = vld [vmem:[#allocation10 + $0x24] sm:$0xf]
        %v947 = vld [vmem:[#allocation10 + $0x28] sm:$0xf]
        %v948 = vld [vmem:[#allocation10 + $0x2c] sm:$0xf]
        %v949 = vld [vmem:[#allocation10 + $0x30] sm:$0xf]
        %v950 = vld [vmem:[#allocation10 + $0x34] sm:$0xf]
        %v951 = vld [vmem:[#allocation10 + $0x38] sm:$0xf]
        %v952 = vld [vmem:[#allocation10 + $0x3c] sm:$0xf]
        %v953 = vlaneseq
        %v954 = vshrl.u32 %v953, 7
        %v955 = vsub.s32 0, %v954
        %v956 = vrot.slane %v687, %v955
        %v973 = vunpack.c.l.b16 %v937
        %v974 = vunpack.c.l.b16 %v938
        %v975 = vunpack.c.l.b16 %v939
        %v976 = vunpack.c.l.b16 %v940
        %v977 = vunpack.c.l.b16 %v941
        %v978 = vunpack.c.l.b16 %v942
        %v979 = vunpack.c.l.b16 %v943
        %v980 = vunpack.c.l.b16 %v944
        %v981 = vunpack.c.l.b16 %v945
        %v982 = vunpack.c.l.b16 %v946
        %v983 = vunpack.c.l.b16 %v947
        %v984 = vunpack.c.l.b16 %v948
        %v985 = vunpack.c.l.b16 %v949
        %v986 = vunpack.c.l.b16 %v950
        %v987 = vunpack.c.l.b16 %v951
        %v988 = vunpack.c.l.b16 %v952
        %v989 = vpack.c.b16 %v974, %v973
        %v990 = vpack.c.b16 %v976, %v975
        %v991 = vpack.c.b16 %v978, %v977
        %v992 = vpack.c.b16 %v980, %v979
        %v993 = vpack.c.b16 %v982, %v981
        %v994 = vpack.c.b16 %v984, %v983
        %v995 = vpack.c.b16 %v986, %v985
        %v996 = vpack.c.b16 %v988, %v987
        %1005 = vmatprep.subr.bf16.mxu0 0
        %1006 = vmatpush1.bf16.msra.mxu0 %v989
        %1007 = vmatprep.subr.bf16.mxu0 0
        %1008 = vmatpush1.bf16.msra.mxu0 %v990
        %1009 = vmatprep.subr.bf16.mxu0 0
        %1010 = vmatpush1.bf16.msra.mxu0 %v991
        %1011 = vmatprep.subr.bf16.mxu0 0
        %1012 = vmatpush1.bf16.msra.mxu0 %v992
        %1013 = vmatprep.subr.bf16.mxu0 0
        %1014 = vmatpush1.bf16.msra.mxu0 %v993
        %1015 = vmatprep.subr.bf16.mxu0 0
        %1016 = vmatpush1.bf16.msra.mxu0 %v994
        %1017 = vmatprep.subr.bf16.mxu0 0
        %1018 = vmatpush1.bf16.msra.mxu0 %v995
        %1019 = vmatprep.subr.bf16.mxu0 0
        %1020 = vmatpush1.bf16.msra.mxu0 %v996
        %1021 = vmatprep.subr.bf16.mxu0 0
        %1022 = vmatpush1.bf16.msra.mxu0 0
        %1023 = vmatprep.subr.bf16.mxu0 0
        %1024 = vmatpush1.bf16.msra.mxu0 0
        %1025 = vmatprep.subr.bf16.mxu0 0
        %1026 = vmatpush1.bf16.msra.mxu0 0
        %1027 = vmatprep.subr.bf16.mxu0 0
        %1028 = vmatpush1.bf16.msra.mxu0 0
        %1029 = vmatprep.subr.bf16.mxu0 0
        %1030 = vmatpush1.bf16.msra.mxu0 0
        %1031 = vmatprep.subr.bf16.mxu0 0
        %1032 = vmatpush1.bf16.msra.mxu0 0
        %1033 = vmatprep.subr.bf16.mxu0 0
        %1034 = vmatpush1.bf16.msra.mxu0 0
        %1035 = vmatprep.subr.bf16.mxu0 0
        %1036 = vmatpush1.bf16.msra.mxu0 0
        %1037 = vmatprep.mubr.bf16.mxu0 0
        %1038 = vmatmul.mubr.bf16.gmra.mrb[0].mxu0 %v720
        %v1039 = vpop.f32.mrb[0].mxu0
        %v1040 = vadd.f32 %v956, %v1039
        %v1041 = vpop.f32.mrb[0].mxu0
        %v1042 = vpop.f32.mrb[0].mxu0
        %v1043 = vpop.f32.mrb[0].mxu0
        %1044 = vdwg.mxu0
        %v1045 = vpack.c.bf16 %v824, %v824
        %v1046 = vpack.c.bf16 %v932, %v932
        %v1047 = vld [vmem:[%s678] sm:$0x1]
        %v1049 = vlaneseq
        %v1050 = vshrl.u32 %v1049, 7
        %v1051 = vsub.s32 0, %v1050
        %v1052 = vrot.slane %v1047, %v1051
        %1054 = vmatprep.subr.bf16.mxu0 0
        %1055 = vmatpush1.bf16.xpose.msra.mxu0 %v1046
        %1056 = vmatprep.subr.bf16.mxu0 0
        %1057 = vmatpush1.bf16.xpose.msra.mxu0 0
        %1058 = vmatprep.subr.bf16.mxu0 0
        %1059 = vmatpush1.bf16.xpose.msra.mxu0 0
        %1060 = vmatprep.subr.bf16.mxu0 0
        %1061 = vmatpush1.bf16.xpose.msra.mxu0 0
        %1062 = vmatprep.subr.bf16.mxu0 0
        %1063 = vmatpush1.bf16.xpose.msra.mxu0 0
        %1064 = vmatprep.subr.bf16.mxu0 0
        %1065 = vmatpush1.bf16.xpose.msra.mxu0 0
        %1066 = vmatprep.subr.bf16.mxu0 0
        %1067 = vmatpush1.bf16.xpose.msra.mxu0 0
        %1068 = vmatprep.subr.bf16.mxu0 0
        %1069 = vmatpush1.bf16.xpose.msra.mxu0 0
        %1070 = vmatprep.subr.bf16.mxu0 0
        %1071 = vmatpush1.bf16.xpose.msra.mxu0 0
        %1072 = vmatprep.subr.bf16.mxu0 0
        %1073 = vmatpush1.bf16.xpose.msra.mxu0 0
        %1074 = vmatprep.subr.bf16.mxu0 0
        %1075 = vmatpush1.bf16.xpose.msra.mxu0 0
        %1076 = vmatprep.subr.bf16.mxu0 0
        %1077 = vmatpush1.bf16.xpose.msra.mxu0 0
        %1078 = vmatprep.subr.bf16.mxu0 0
        %1079 = vmatpush1.bf16.xpose.msra.mxu0 0
        %1080 = vmatprep.subr.bf16.mxu0 0
        %1081 = vmatpush1.bf16.xpose.msra.mxu0 0
        %1082 = vmatprep.subr.bf16.mxu0 0
        %1083 = vmatpush1.bf16.xpose.msra.mxu0 0
        %1084 = vmatprep.subr.bf16.mxu0 0
        %1085 = vmatpush1.bf16.xpose.msra.mxu0 0
        %1086 = vmatprep.mubr.bf16.mxu0 0
        %1087 = vmatmul.mubr.bf16.gmra.mrb[0].mxu0 %v1045
        %v1088 = vpop.f32.mrb[0].mxu0
        %v1089 = vadd.f32 %v1052, %v1088
        %v1090 = vpop.f32.mrb[0].mxu0
        %v1091 = vpop.f32.mrb[0].mxu0
        %v1092 = vpop.f32.mrb[0].mxu0
        %1093 = vdwg.mxu0
        %vm1094 = vcmask 64512
        %v1095 = vsel %vm1094, %v1089, -inf
        %1096 = vmax.xlane.f32.xlu0 %v1095
        %v1097 = vpop.xlane.xlu0 %1096
        %v1098 = vsub.f32 %v1089, %v1097
        %v1099 = vmul.f32 %v1098, 1.442695
        %v1100 = vpow.pop %v1099
        %v1101 = vsel %vm1094, %v1100, 0.0
        %1102 = vadd.xlane.f32.xlu0 %v1101
        %v1103 = vpop.xlane.xlu0 %1102
        %v1104 = vrcp.pop %v1103
        %v1105 = vmul.f32 %v1100, %v1104
        %v1106 = vpack.c.bf16 %v1105, %v1105
        %v1107 = vpack.c.bf16 %v1040, %v1040
        %v1109 = vsel %vm1094, %v1106, 0
        %vm1111 = vcmask 1043456
        %v1113 = vsel %vm1111, %v1107, 0
        %1115 = vmatprep.subr.bf16.mxu0 0
        %1116 = vmatpush1.bf16.msra.mxu0 %v1113
        %1117 = vmatprep.subr.bf16.mxu0 0
        %1118 = vmatpush1.bf16.msra.mxu0 0
        %1119 = vmatprep.subr.bf16.mxu0 0
        %1120 = vmatpush1.bf16.msra.mxu0 0
        %1121 = vmatprep.subr.bf16.mxu0 0
        %1122 = vmatpush1.bf16.msra.mxu0 0
        %1123 = vmatprep.subr.bf16.mxu0 0
        %1124 = vmatpush1.bf16.msra.mxu0 0
        %1125 = vmatprep.subr.bf16.mxu0 0
        %1126 = vmatpush1.bf16.msra.mxu0 0
        %1127 = vmatprep.subr.bf16.mxu0 0
        %1128 = vmatpush1.bf16.msra.mxu0 0
        %1129 = vmatprep.subr.bf16.mxu0 0
        %1130 = vmatpush1.bf16.msra.mxu0 0
        %1131 = vmatprep.subr.bf16.mxu0 0
        %1132 = vmatpush1.bf16.msra.mxu0 0
        %1133 = vmatprep.subr.bf16.mxu0 0
        %1134 = vmatpush1.bf16.msra.mxu0 0
        %1135 = vmatprep.subr.bf16.mxu0 0
        %1136 = vmatpush1.bf16.msra.mxu0 0
        %1137 = vmatprep.subr.bf16.mxu0 0
        %1138 = vmatpush1.bf16.msra.mxu0 0
        %1139 = vmatprep.subr.bf16.mxu0 0
        %1140 = vmatpush1.bf16.msra.mxu0 0
        %1141 = vmatprep.subr.bf16.mxu0 0
        %1142 = vmatpush1.bf16.msra.mxu0 0
        %1143 = vmatprep.subr.bf16.mxu0 0
        %1144 = vmatpush1.bf16.msra.mxu0 0
        %1145 = vmatprep.subr.bf16.mxu0 0
        %1146 = vmatpush1.bf16.msra.mxu0 0
        %1147 = vmatprep.mubr.bf16.mxu0 0
        %1148 = vmatmul.mubr.bf16.gmra.mrb[0].mxu0 %v1109
        %v1149 = vpop.f32.mrb[0].mxu0
        %v1150 = vadd.f32 0.0, %v1149
        %v1151 = vpop.f32.mrb[0].mxu0
        %v1152 = vpop.f32.mrb[0].mxu0
        %v1153 = vpop.f32.mrb[0].mxu0
        %1154 = vdwg.mxu0
        %v1155 = vpack.c.bf16 %v1150, %v1150
        %v1156 = vld [vmem:[#allocation11] sm:$0xf]
        %v1157 = vld [vmem:[#allocation11 + $0x4] sm:$0xf]
        %v1158 = vld [vmem:[#allocation11 + $0x8] sm:$0xf]
        %v1159 = vld [vmem:[#allocation11 + $0xc] sm:$0xf]
        %v1160 = vld [vmem:[#allocation11 + $0x10] sm:$0xf]
        %v1161 = vld [vmem:[#allocation11 + $0x14] sm:$0xf]
        %v1162 = vld [vmem:[#allocation11 + $0x18] sm:$0xf]
        %v1163 = vld [vmem:[#allocation11 + $0x1c] sm:$0xf]
        %v1164 = vld [vmem:[#allocation11 + $0x20] sm:$0xf]
        %v1165 = vld [vmem:[#allocation11 + $0x24] sm:$0xf]
        %v1166 = vld [vmem:[#allocation11 + $0x28] sm:$0xf]
        %v1167 = vld [vmem:[#allocation11 + $0x2c] sm:$0xf]
        %v1168 = vld [vmem:[#allocation11 + $0x30] sm:$0xf]
        %v1169 = vld [vmem:[#allocation11 + $0x34] sm:$0xf]
        %v1170 = vld [vmem:[#allocation11 + $0x38] sm:$0xf]
        %v1171 = vld [vmem:[#allocation11 + $0x3c] sm:$0xf]
        %v1172 = vlaneseq
        %v1173 = vshrl.u32 %v1172, 7
        %v1174 = vsub.s32 0, %v1173
        %v1175 = vrot.slane %v688, %v1174
        %v1192 = vunpack.c.l.b16 %v1156
        %v1193 = vunpack.c.l.b16 %v1157
        %v1194 = vunpack.c.l.b16 %v1158
        %v1195 = vunpack.c.l.b16 %v1159
        %v1196 = vunpack.c.l.b16 %v1160
        %v1197 = vunpack.c.l.b16 %v1161
        %v1198 = vunpack.c.l.b16 %v1162
        %v1199 = vunpack.c.l.b16 %v1163
        %v1200 = vunpack.c.l.b16 %v1164
        %v1201 = vunpack.c.l.b16 %v1165
        %v1202 = vunpack.c.l.b16 %v1166
        %v1203 = vunpack.c.l.b16 %v1167
        %v1204 = vunpack.c.l.b16 %v1168
        %v1205 = vunpack.c.l.b16 %v1169
        %v1206 = vunpack.c.l.b16 %v1170
        %v1207 = vunpack.c.l.b16 %v1171
        %v1208 = vpack.c.b16 %v1193, %v1192
        %v1209 = vpack.c.b16 %v1195, %v1194
        %v1210 = vpack.c.b16 %v1197, %v1196
        %v1211 = vpack.c.b16 %v1199, %v1198
        %v1212 = vpack.c.b16 %v1201, %v1200
        %v1213 = vpack.c.b16 %v1203, %v1202
        %v1214 = vpack.c.b16 %v1205, %v1204
        %v1215 = vpack.c.b16 %v1207, %v1206
        %1224 = vmatprep.subr.bf16.mxu0 0
        %1225 = vmatpush1.bf16.msra.mxu0 %v1208
        %1226 = vmatprep.subr.bf16.mxu0 0
        %1227 = vmatpush1.bf16.msra.mxu0 %v1209
        %1228 = vmatprep.subr.bf16.mxu0 0
        %1229 = vmatpush1.bf16.msra.mxu0 %v1210
        %1230 = vmatprep.subr.bf16.mxu0 0
        %1231 = vmatpush1.bf16.msra.mxu0 %v1211
        %1232 = vmatprep.subr.bf16.mxu0 0
        %1233 = vmatpush1.bf16.msra.mxu0 %v1212
        %1234 = vmatprep.subr.bf16.mxu0 0
        %1235 = vmatpush1.bf16.msra.mxu0 %v1213
        %1236 = vmatprep.subr.bf16.mxu0 0
        %1237 = vmatpush1.bf16.msra.mxu0 %v1214
        %1238 = vmatprep.subr.bf16.mxu0 0
        %1239 = vmatpush1.bf16.msra.mxu0 %v1215
        %1240 = vmatprep.subr.bf16.mxu0 0
        %1241 = vmatpush1.bf16.msra.mxu0 0
        %1242 = vmatprep.subr.bf16.mxu0 0
        %1243 = vmatpush1.bf16.msra.mxu0 0
        %1244 = vmatprep.subr.bf16.mxu0 0
        %1245 = vmatpush1.bf16.msra.mxu0 0
        %1246 = vmatprep.subr.bf16.mxu0 0
        %1247 = vmatpush1.bf16.msra.mxu0 0
        %1248 = vmatprep.subr.bf16.mxu0 0
        %1249 = vmatpush1.bf16.msra.mxu0 0
        %1250 = vmatprep.subr.bf16.mxu0 0
        %1251 = vmatpush1.bf16.msra.mxu0 0
        %1252 = vmatprep.subr.bf16.mxu0 0
        %1253 = vmatpush1.bf16.msra.mxu0 0
        %1254 = vmatprep.subr.bf16.mxu0 0
        %1255 = vmatpush1.bf16.msra.mxu0 0
        %1256 = vmatprep.mubr.bf16.mxu0 0
        %1257 = vmatmul.mubr.bf16.gmra.mrb[0].mxu0 %v1155
        %v1258 = vpop.f32.mrb[0].mxu0
        %v1259 = vadd.f32 %v1175, %v1258
        %v1260 = vpop.f32.mrb[0].mxu0
        %v1261 = vpop.f32.mrb[0].mxu0
        %v1262 = vpop.f32.mrb[0].mxu0
        %1263 = vdwg.mxu0
        %v1264 = vadd.f32 %v719, %v1259
        %1265 = vadd.xlane.f32.xlu0 %v1264
        %v1266 = vpop.xlane.xlu0 %1265
        %v1267 = vmul.f32 %v1264, %v1264
        %1268 = vadd.xlane.f32.xlu0 %v1267
        %v1269 = vpop.xlane.xlu0 %1268
        %v1270 = vmul.f32 %v1266, %v701
        %v1271 = vmul.f32 %v1269, %v701
        %v1272 = vmul.f32 %v1270, %v1270
        %v1273 = vsub.f32 %v1271, %v1272
        %v1274 = vsub.f32 %v1264, %v1270
        %v1275 = vadd.f32 %v1273, 1e-12
        %v1276 = vrsqrt.pop %v1275
        %v1277 = vmul.f32 %v1274, %v1276
        %v1278 = vlaneseq
        %v1279 = vshrl.u32 %v1278, 7
        %v1280 = vsub.s32 0, %v1279
        %v1281 = vrot.slane %v689, %v1280
        %v1282 = vmul.f32 %v1277, %v1281
        %v1283 = vlaneseq
        %v1284 = vshrl.u32 %v1283, 7
        %v1285 = vsub.s32 0, %v1284
        %v1286 = vrot.slane %v690, %v1285
        %v1287 = vadd.f32 %v1282, %v1286
        %v1288 = vpack.c.bf16 %v1287, %v1287
        %v1289 = vld [vmem:[#allocation13] sm:$0xf]
        %v1290 = vld [vmem:[#allocation13 + $0x4] sm:$0xf]
        %v1291 = vld [vmem:[#allocation13 + $0x8] sm:$0xf]
        %v1292 = vld [vmem:[#allocation13 + $0xc] sm:$0xf]
        %v1293 = vld [vmem:[#allocation13 + $0x10] sm:$0xf]
        %v1294 = vld [vmem:[#allocation13 + $0x14] sm:$0xf]
        %v1295 = vld [vmem:[#allocation13 + $0x18] sm:$0xf]
        %v1296 = vld [vmem:[#allocation13 + $0x1c] sm:$0xf]
        %v1297 = vld [vmem:[#allocation13 + $0x20] sm:$0xf]
        %v1298 = vld [vmem:[#allocation13 + $0x24] sm:$0xf]
        %v1299 = vld [vmem:[#allocation13 + $0x28] sm:$0xf]
        %v1300 = vld [vmem:[#allocation13 + $0x2c] sm:$0xf]
        %v1301 = vld [vmem:[#allocation13 + $0x30] sm:$0xf]
        %v1302 = vld [vmem:[#allocation13 + $0x34] sm:$0xf]
        %v1303 = vld [vmem:[#allocation13 + $0x38] sm:$0xf]
        %v1304 = vld [vmem:[#allocation13 + $0x3c] sm:$0xf]
        %v1305 = vld [vmem:[%s4] sm:$0x1]
        %v1307 = vlaneseq
        %v1308 = vshrl.u32 %v1307, 7
        %v1309 = vsub.s32 0, %v1308
        %v1310 = vrot.slane %v1305, %v1309
        %v1328 = vunpack.c.l.b16 %v1289
        %v1329 = vunpack.c.l.b16 %v1290
        %v1330 = vunpack.c.l.b16 %v1291
        %v1331 = vunpack.c.l.b16 %v1292
        %v1332 = vunpack.c.l.b16 %v1293
        %v1333 = vunpack.c.l.b16 %v1294
        %v1334 = vunpack.c.l.b16 %v1295
        %v1335 = vunpack.c.l.b16 %v1296
        %v1336 = vunpack.c.l.b16 %v1297
        %v1337 = vunpack.c.l.b16 %v1298
        %v1338 = vunpack.c.l.b16 %v1299
        %v1339 = vunpack.c.l.b16 %v1300
        %v1340 = vunpack.c.l.b16 %v1301
        %v1341 = vunpack.c.l.b16 %v1302
        %v1342 = vunpack.c.l.b16 %v1303
        %v1343 = vunpack.c.l.b16 %v1304
        %v1344 = vpack.c.b16 %v1329, %v1328
        %v1345 = vpack.c.b16 %v1331, %v1330
        %v1346 = vpack.c.b16 %v1333, %v1332
        %v1347 = vpack.c.b16 %v1335, %v1334
        %v1348 = vpack.c.b16 %v1337, %v1336
        %v1349 = vpack.c.b16 %v1339, %v1338
        %v1350 = vpack.c.b16 %v1341, %v1340
        %v1351 = vpack.c.b16 %v1343, %v1342
        %1360 = vmatprep.subr.bf16.mxu0 0
        %1361 = vmatpush1.bf16.msra.mxu0 %v1344
        %1362 = vmatprep.subr.bf16.mxu0 0
        %1363 = vmatpush1.bf16.msra.mxu0 %v1345
        %1364 = vmatprep.subr.bf16.mxu0 0
        %1365 = vmatpush1.bf16.msra.mxu0 %v1346
        %1366 = vmatprep.subr.bf16.mxu0 0
        %1367 = vmatpush1.bf16.msra.mxu0 %v1347
        %1368 = vmatprep.subr.bf16.mxu0 0
        %1369 = vmatpush1.bf16.msra.mxu0 %v1348
        %1370 = vmatprep.subr.bf16.mxu0 0
        %1371 = vmatpush1.bf16.msra.mxu0 %v1349
        %1372 = vmatprep.subr.bf16.mxu0 0
        %1373 = vmatpush1.bf16.msra.mxu0 %v1350
        %1374 = vmatprep.subr.bf16.mxu0 0
        %1375 = vmatpush1.bf16.msra.mxu0 %v1351
        %1376 = vmatprep.subr.bf16.mxu0 0
        %1377 = vmatpush1.bf16.msra.mxu0 0
        %1378 = vmatprep.subr.bf16.mxu0 0
        %1379 = vmatpush1.bf16.msra.mxu0 0
        %1380 = vmatprep.subr.bf16.mxu0 0
        %1381 = vmatpush1.bf16.msra.mxu0 0
        %1382 = vmatprep.subr.bf16.mxu0 0
        %1383 = vmatpush1.bf16.msra.mxu0 0
        %1384 = vmatprep.subr.bf16.mxu0 0
        %1385 = vmatpush1.bf16.msra.mxu0 0
        %1386 = vmatprep.subr.bf16.mxu0 0
        %1387 = vmatpush1.bf16.msra.mxu0 0
        %1388 = vmatprep.subr.bf16.mxu0 0
        %1389 = vmatpush1.bf16.msra.mxu0 0
        %1390 = vmatprep.subr.bf16.mxu0 0
        %1391 = vmatpush1.bf16.msra.mxu0 0
        %1392 = vmatprep.mubr.bf16.mxu0 0
        %1393 = vmatmul.mubr.bf16.gmra.mrb[0].mxu0 %v1288
        %v1394 = vpop.f32.mrb[0].mxu0
        %v1395 = vadd.f32 %v1310, %v1394
        %v1396 = vpop.f32.mrb[0].mxu0
        %v1397 = vpop.f32.mrb[0].mxu0
        %v1398 = vpop.f32.mrb[0].mxu0
        %1399 = vdwg.mxu0
        %v1400 = vmul.f32 %v1395, %v1395
        %v1401 = vmul.f32 %v1395, %v1400
        %v1402 = vmul.f32 %v1401, 0.044715
        %v1403 = vadd.f32 %v1395, %v1402
        %v1404 = vmul.f32 %v1403, 0.7978846
        %v1405 = vtanh.pop %v1404
        %v1406 = vadd.f32 %v1405, 1.0
        %v1407 = vmul.f32 %v1406, 0.5
        %v1408 = vmul.f32 %v1395, %v1407
        %v1409 = vpack.c.bf16 %v1408, %v1408
        %v1410 = vld [vmem:[#allocation14] sm:$0xf]
        %v1411 = vld [vmem:[#allocation14 + $0x4] sm:$0xf]
        %v1412 = vld [vmem:[#allocation14 + $0x8] sm:$0xf]
        %v1413 = vld [vmem:[#allocation14 + $0xc] sm:$0xf]
        %v1414 = vld [vmem:[#allocation14 + $0x10] sm:$0xf]
        %v1415 = vld [vmem:[#allocation14 + $0x14] sm:$0xf]
        %v1416 = vld [vmem:[#allocation14 + $0x18] sm:$0xf]
        %v1417 = vld [vmem:[#allocation14 + $0x1c] sm:$0xf]
        %v1418 = vld [vmem:[#allocation14 + $0x20] sm:$0xf]
        %v1419 = vld [vmem:[#allocation14 + $0x24] sm:$0xf]
        %v1420 = vld [vmem:[#allocation14 + $0x28] sm:$0xf]
        %v1421 = vld [vmem:[#allocation14 + $0x2c] sm:$0xf]
        %v1422 = vld [vmem:[#allocation14 + $0x30] sm:$0xf]
        %v1423 = vld [vmem:[#allocation14 + $0x34] sm:$0xf]
        %v1424 = vld [vmem:[#allocation14 + $0x38] sm:$0xf]
        %v1425 = vld [vmem:[#allocation14 + $0x3c] sm:$0xf]
        %v1426 = vlaneseq
        %v1427 = vshrl.u32 %v1426, 7
        %v1428 = vsub.s32 0, %v1427
        %v1429 = vrot.slane %v691, %v1428
        %v1446 = vunpack.c.l.b16 %v1410
        %v1447 = vunpack.c.l.b16 %v1411
        %v1448 = vunpack.c.l.b16 %v1412
        %v1449 = vunpack.c.l.b16 %v1413
        %v1450 = vunpack.c.l.b16 %v1414
        %v1451 = vunpack.c.l.b16 %v1415
        %v1452 = vunpack.c.l.b16 %v1416
        %v1453 = vunpack.c.l.b16 %v1417
        %v1454 = vunpack.c.l.b16 %v1418
        %v1455 = vunpack.c.l.b16 %v1419
        %v1456 = vunpack.c.l.b16 %v1420
        %v1457 = vunpack.c.l.b16 %v1421
        %v1458 = vunpack.c.l.b16 %v1422
        %v1459 = vunpack.c.l.b16 %v1423
        %v1460 = vunpack.c.l.b16 %v1424
        %v1461 = vunpack.c.l.b16 %v1425
        %v1462 = vpack.c.b16 %v1447, %v1446
        %v1463 = vpack.c.b16 %v1449, %v1448
        %v1464 = vpack.c.b16 %v1451, %v1450
        %v1465 = vpack.c.b16 %v1453, %v1452
        %v1466 = vpack.c.b16 %v1455, %v1454
        %v1467 = vpack.c.b16 %v1457, %v1456
        %v1468 = vpack.c.b16 %v1459, %v1458
        %v1469 = vpack.c.b16 %v1461, %v1460
        %1478 = vmatprep.subr.bf16.mxu0 0
        %1479 = vmatpush1.bf16.msra.mxu0 %v1462
        %1480 = vmatprep.subr.bf16.mxu0 0
        %1481 = vmatpush1.bf16.msra.mxu0 %v1463
        %1482 = vmatprep.subr.bf16.mxu0 0
        %1483 = vmatpush1.bf16.msra.mxu0 %v1464
        %1484 = vmatprep.subr.bf16.mxu0 0
        %1485 = vmatpush1.bf16.msra.mxu0 %v1465
        %1486 = vmatprep.subr.bf16.mxu0 0
        %1487 = vmatpush1.bf16.msra.mxu0 %v1466
        %1488 = vmatprep.subr.bf16.mxu0 0
        %1489 = vmatpush1.bf16.msra.mxu0 %v1467
        %1490 = vmatprep.subr.bf16.mxu0 0
        %1491 = vmatpush1.bf16.msra.mxu0 %v1468
        %1492 = vmatprep.subr.bf16.mxu0 0
        %1493 = vmatpush1.bf16.msra.mxu0 %v1469
        %1494 = vmatprep.subr.bf16.mxu0 0
        %1495 = vmatpush1.bf16.msra.mxu0 0
        %1496 = vmatprep.subr.bf16.mxu0 0
        %1497 = vmatpush1.bf16.msra.mxu0 0
        %1498 = vmatprep.subr.bf16.mxu0 0
        %1499 = vmatpush1.bf16.msra.mxu0 0
        %1500 = vmatprep.subr.bf16.mxu0 0
        %1501 = vmatpush1.bf16.msra.mxu0 0
        %1502 = vmatprep.subr.bf16.mxu0 0
        %1503 = vmatpush1.bf16.msra.mxu0 0
        %1504 = vmatprep.subr.bf16.mxu0 0
        %1505 = vmatpush1.bf16.msra.mxu0 0
        %1506 = vmatprep.subr.bf16.mxu0 0
        %1507 = vmatpush1.bf16.msra.mxu0 0
        %1508 = vmatprep.subr.bf16.mxu0 0
        %1509 = vmatpush1.bf16.msra.mxu0 0
        %1510 = vmatprep.mubr.bf16.mxu0 0
        %1511 = vmatmul.mubr.bf16.gmra.mrb[0].mxu0 %v1409
        %v1512 = vpop.f32.mrb[0].mxu0
        %v1513 = vadd.f32 %v1429, %v1512
        %v1514 = vpop.f32.mrb[0].mxu0
        %v1515 = vpop.f32.mrb[0].mxu0
        %v1516 = vpop.f32.mrb[0].mxu0
        %1517 = vdwg.mxu0
        %v1518 = vadd.f32 %v1287, %v1513
        %1519 = vadd.xlane.f32.xlu0 %v1518
        %v1520 = vpop.xlane.xlu0 %1519
        %v1521 = vmul.f32 %v1518, %v1518
        %1522 = vadd.xlane.f32.xlu0 %v1521
        %v1523 = vpop.xlane.xlu0 %1522
        %v1524 = vmul.f32 %v1520, %v701
        %v1525 = vmul.f32 %v1523, %v701
        %v1526 = vmul.f32 %v1524, %v1524
        %v1527 = vsub.f32 %v1525, %v1526
        %v1528 = vsub.f32 %v1518, %v1524
        %v1529 = vadd.f32 %v1527, 1e-12
        %v1530 = vrsqrt.pop %v1529
        %v1531 = vmul.f32 %v1528, %v1530
        %v1532 = vlaneseq
        %v1533 = vshrl.u32 %v1532, 7
        %v1534 = vsub.s32 0, %v1533
        %v1535 = vrot.slane %v692, %v1534
        %v1536 = vmul.f32 %v1531, %v1535
        %v1537 = vlaneseq
        %v1538 = vshrl.u32 %v1537, 7
        %v1539 = vsub.s32 0, %v1538
        %v1540 = vrot.slane %v693, %v1539
        %v1541 = vadd.f32 %v1536, %v1540
        %v1542 = vpack.c.bf16 %v1541, %v1541
        %v1543 = vld [vmem:[#allocation16] sm:$0xf]
        %v1544 = vld [vmem:[#allocation16 + $0x4] sm:$0xf]
        %v1545 = vld [vmem:[#allocation16 + $0x8] sm:$0xf]
        %v1546 = vld [vmem:[#allocation16 + $0xc] sm:$0xf]
        %v1547 = vld [vmem:[#allocation16 + $0x10] sm:$0xf]
        %v1548 = vld [vmem:[#allocation16 + $0x14] sm:$0xf]
        %v1549 = vld [vmem:[#allocation16 + $0x18] sm:$0xf]
        %v1550 = vld [vmem:[#allocation16 + $0x1c] sm:$0xf]
        %v1551 = vld [vmem:[#allocation16 + $0x20] sm:$0xf]
        %v1552 = vld [vmem:[#allocation16 + $0x24] sm:$0xf]
        %v1553 = vld [vmem:[#allocation16 + $0x28] sm:$0xf]
        %v1554 = vld [vmem:[#allocation16 + $0x2c] sm:$0xf]
        %v1555 = vld [vmem:[#allocation16 + $0x30] sm:$0xf]
        %v1556 = vld [vmem:[#allocation16 + $0x34] sm:$0xf]
        %v1557 = vld [vmem:[#allocation16 + $0x38] sm:$0xf]
        %v1558 = vld [vmem:[#allocation16 + $0x3c] sm:$0xf]
        %v1575 = vunpack.c.l.b16 %v1543
        %v1576 = vunpack.c.l.b16 %v1544
        %v1577 = vunpack.c.l.b16 %v1545
        %v1578 = vunpack.c.l.b16 %v1546
        %v1579 = vunpack.c.l.b16 %v1547
        %v1580 = vunpack.c.l.b16 %v1548
        %v1581 = vunpack.c.l.b16 %v1549
        %v1582 = vunpack.c.l.b16 %v1550
        %v1583 = vunpack.c.l.b16 %v1551
        %v1584 = vunpack.c.l.b16 %v1552
        %v1585 = vunpack.c.l.b16 %v1553
        %v1586 = vunpack.c.l.b16 %v1554
        %v1587 = vunpack.c.l.b16 %v1555
        %v1588 = vunpack.c.l.b16 %v1556
        %v1589 = vunpack.c.l.b16 %v1557
        %v1590 = vunpack.c.l.b16 %v1558
        %v1591 = vpack.c.b16 %v1576, %v1575
        %v1592 = vpack.c.b16 %v1578, %v1577
        %v1593 = vpack.c.b16 %v1580, %v1579
        %v1594 = vpack.c.b16 %v1582, %v1581
        %v1595 = vpack.c.b16 %v1584, %v1583
        %v1596 = vpack.c.b16 %v1586, %v1585
        %v1597 = vpack.c.b16 %v1588, %v1587
        %v1598 = vpack.c.b16 %v1590, %v1589
        %1607 = vmatprep.subr.bf16.mxu0 0
        %1608 = vmatpush1.bf16.msra.mxu0 %v1591
        %1609 = vmatprep.subr.bf16.mxu0 0
        %1610 = vmatpush1.bf16.msra.mxu0 %v1592
        %1611 = vmatprep.subr.bf16.mxu0 0
        %1612 = vmatpush1.bf16.msra.mxu0 %v1593
        %1613 = vmatprep.subr.bf16.mxu0 0
        %1614 = vmatpush1.bf16.msra.mxu0 %v1594
        %1615 = vmatprep.subr.bf16.mxu0 0
        %1616 = vmatpush1.bf16.msra.mxu0 %v1595
        %1617 = vmatprep.subr.bf16.mxu0 0
        %1618 = vmatpush1.bf16.msra.mxu0 %v1596
        %1619 = vmatprep.subr.bf16.mxu0 0
        %1620 = vmatpush1.bf16.msra.mxu0 %v1597
        %1621 = vmatprep.subr.bf16.mxu0 0
        %1622 = vmatpush1.bf16.msra.mxu0 %v1598
        %1623 = vmatprep.subr.bf16.mxu0 0
        %1624 = vmatpush1.bf16.msra.mxu0 0
        %1625 = vmatprep.subr.bf16.mxu0 0
        %1626 = vmatpush1.bf16.msra.mxu0 0
        %1627 = vmatprep.subr.bf16.mxu0 0
        %1628 = vmatpush1.bf16.msra.mxu0 0
        %1629 = vmatprep.subr.bf16.mxu0 0
        %1630 = vmatpush1.bf16.msra.mxu0 0
        %1631 = vmatprep.subr.bf16.mxu0 0
        %1632 = vmatpush1.bf16.msra.mxu0 0
        %1633 = vmatprep.subr.bf16.mxu0 0
        %1634 = vmatpush1.bf16.msra.mxu0 0
        %1635 = vmatprep.subr.bf16.mxu0 0
        %1636 = vmatpush1.bf16.msra.mxu0 0
        %1637 = vmatprep.subr.bf16.mxu0 0
        %1638 = vmatpush1.bf16.msra.mxu0 0
        %1639 = vmatprep.mubr.bf16.mxu0 0
        %1640 = vmatmul.mubr.bf16.gmra.mrb[0].mxu0 %v1542
        %v1641 = vpop.f32.mrb[0].mxu0
        %v1642 = vadd.f32 %v694, %v1641
        %v1643 = vpop.f32.mrb[0].mxu0
        %v1644 = vpop.f32.mrb[0].mxu0
        %v1645 = vpop.f32.mrb[0].mxu0
        %1646 = vdwg.mxu0
        %v1647 = vtanh.pop %v1642
        %v1648 = vld [vmem:[%s681] sm:$0x1]
        %v1649 = vpack.c.bf16 %v1648, %v1648
        %v1650 = vpack.c.bf16 %v1647, %v1647
        %v1651 = vld [vmem:[#allocation17] sm:$0xf]
        %v1652 = vld [vmem:[#allocation17 + $0x4] sm:$0xf]
        %v1653 = vld [vmem:[#allocation17 + $0x8] sm:$0xf]
        %v1654 = vld [vmem:[#allocation17 + $0xc] sm:$0xf]
        %v1655 = vld [vmem:[#allocation17 + $0x10] sm:$0xf]
        %v1656 = vld [vmem:[#allocation17 + $0x14] sm:$0xf]
        %v1657 = vld [vmem:[#allocation17 + $0x18] sm:$0xf]
        %v1658 = vld [vmem:[#allocation17 + $0x1c] sm:$0xf]
        %v1659 = vld [vmem:[#allocation17 + $0x20] sm:$0xf]
        %v1660 = vld [vmem:[#allocation17 + $0x24] sm:$0xf]
        %v1661 = vld [vmem:[#allocation17 + $0x28] sm:$0xf]
        %v1662 = vld [vmem:[#allocation17 + $0x2c] sm:$0xf]
        %v1663 = vld [vmem:[#allocation17 + $0x30] sm:$0xf]
        %v1664 = vld [vmem:[#allocation17 + $0x34] sm:$0xf]
        %v1665 = vld [vmem:[#allocation17 + $0x38] sm:$0xf]
        %v1666 = vld [vmem:[#allocation17 + $0x3c] sm:$0xf]
        %v1667 = vld [vmem:[#allocation19] sm:$0xf]
        %v1668 = vld [vmem:[#allocation19 + $0x4] sm:$0xf]
        %v1669 = vld [vmem:[#allocation19 + $0x8] sm:$0xf]
        %v1670 = vld [vmem:[#allocation19 + $0xc] sm:$0xf]
        %v1671 = vld [vmem:[#allocation19 + $0x10] sm:$0xf]
        %v1672 = vld [vmem:[#allocation19 + $0x14] sm:$0xf]
        %v1673 = vld [vmem:[#allocation19 + $0x18] sm:$0xf]
        %v1674 = vld [vmem:[#allocation19 + $0x1c] sm:$0xf]
        %v1675 = vld [vmem:[#allocation19 + $0x20] sm:$0xf]
        %v1676 = vld [vmem:[#allocation19 + $0x24] sm:$0xf]
        %v1677 = vld [vmem:[#allocation19 + $0x28] sm:$0xf]
        %v1678 = vld [vmem:[#allocation19 + $0x2c] sm:$0xf]
        %v1679 = vld [vmem:[#allocation19 + $0x30] sm:$0xf]
        %v1680 = vld [vmem:[#allocation19 + $0x34] sm:$0xf]
        %v1681 = vld [vmem:[#allocation19 + $0x38] sm:$0xf]
        %v1682 = vld [vmem:[#allocation19 + $0x3c] sm:$0xf]
        %v1699 = vunpack.c.l.b16 %v1667
        %v1700 = vunpack.c.l.b16 %v1668
        %v1701 = vunpack.c.l.b16 %v1669
        %v1702 = vunpack.c.l.b16 %v1670
        %v1703 = vunpack.c.l.b16 %v1671
        %v1704 = vunpack.c.l.b16 %v1672
        %v1705 = vunpack.c.l.b16 %v1673
        %v1706 = vunpack.c.l.b16 %v1674
        %v1707 = vunpack.c.l.b16 %v1675
        %v1708 = vunpack.c.l.b16 %v1676
        %v1709 = vunpack.c.l.b16 %v1677
        %v1710 = vunpack.c.l.b16 %v1678
        %v1711 = vunpack.c.l.b16 %v1679
        %v1712 = vunpack.c.l.b16 %v1680
        %v1713 = vunpack.c.l.b16 %v1681
        %v1714 = vunpack.c.l.b16 %v1682
        %v1715 = vpack.c.b16 %v1700, %v1699
        %v1716 = vpack.c.b16 %v1702, %v1701
        %v1717 = vpack.c.b16 %v1704, %v1703
        %v1718 = vpack.c.b16 %v1706, %v1705
        %v1719 = vpack.c.b16 %v1708, %v1707
        %v1720 = vpack.c.b16 %v1710, %v1709
        %v1721 = vpack.c.b16 %v1712, %v1711
        %v1722 = vpack.c.b16 %v1714, %v1713
        %1731 = vmatprep.subr.bf16.mxu0 0
        %1732 = vmatpush1.bf16.msra.mxu0 %v1715
        %1733 = vmatprep.subr.bf16.mxu0 0
        %1734 = vmatpush1.bf16.msra.mxu0 %v1716
        %1735 = vmatprep.subr.bf16.mxu0 0
        %1736 = vmatpush1.bf16.msra.mxu0 %v1717
        %1737 = vmatprep.subr.bf16.mxu0 0
        %1738 = vmatpush1.bf16.msra.mxu0 %v1718
        %1739 = vmatprep.subr.bf16.mxu0 0
        %1740 = vmatpush1.bf16.msra.mxu0 %v1719
        %1741 = vmatprep.subr.bf16.mxu0 0
        %1742 = vmatpush1.bf16.msra.mxu0 %v1720
        %1743 = vmatprep.subr.bf16.mxu0 0
        %1744 = vmatpush1.bf16.msra.mxu0 %v1721
        %1745 = vmatprep.subr.bf16.mxu0 0
        %1746 = vmatpush1.bf16.msra.mxu0 %v1722
        %1747 = vmatprep.subr.bf16.mxu0 0
        %1748 = vmatpush1.bf16.msra.mxu0 0
        %1749 = vmatprep.subr.bf16.mxu0 0
        %1750 = vmatpush1.bf16.msra.mxu0 0
        %1751 = vmatprep.subr.bf16.mxu0 0
        %1752 = vmatpush1.bf16.msra.mxu0 0
        %1753 = vmatprep.subr.bf16.mxu0 0
        %1754 = vmatpush1.bf16.msra.mxu0 0
        %1755 = vmatprep.subr.bf16.mxu0 0
        %1756 = vmatpush1.bf16.msra.mxu0 0
        %1757 = vmatprep.subr.bf16.mxu0 0
        %1758 = vmatpush1.bf16.msra.mxu0 0
        %1759 = vmatprep.subr.bf16.mxu0 0
        %1760 = vmatpush1.bf16.msra.mxu0 0
        %1761 = vmatprep.subr.bf16.mxu0 0
        %1762 = vmatpush1.bf16.msra.mxu0 0
        %1763 = vmatprep.mubr.bf16.mxu0 0
        %1764 = vmatmul.mubr.bf16.gmra.mrb[0].mxu0 %v1649
        %v1765 = vpop.f32.mrb[0].mxu0
        %v1766 = vadd.f32 0.0, %v1765
        %v1767 = vpop.f32.mrb[0].mxu0
        %v1768 = vpop.f32.mrb[0].mxu0
        %v1769 = vpop.f32.mrb[0].mxu0
        %1770 = vdwg.mxu0
        %v1787 = vunpack.c.l.b16 %v1651
        %v1788 = vunpack.c.l.b16 %v1652
        %v1789 = vunpack.c.l.b16 %v1653
        %v1790 = vunpack.c.l.b16 %v1654
        %v1791 = vunpack.c.l.b16 %v1655
        %v1792 = vunpack.c.l.b16 %v1656
        %v1793 = vunpack.c.l.b16 %v1657
        %v1794 = vunpack.c.l.b16 %v1658
        %v1795 = vunpack.c.l.b16 %v1659
        %v1796 = vunpack.c.l.b16 %v1660
        %v1797 = vunpack.c.l.b16 %v1661
        %v1798 = vunpack.c.l.b16 %v1662
        %v1799 = vunpack.c.l.b16 %v1663
        %v1800 = vunpack.c.l.b16 %v1664
        %v1801 = vunpack.c.l.b16 %v1665
        %v1802 = vunpack.c.l.b16 %v1666
        %v1803 = vpack.c.b16 %v1788, %v1787
        %v1804 = vpack.c.b16 %v1790, %v1789
        %v1805 = vpack.c.b16 %v1792, %v1791
        %v1806 = vpack.c.b16 %v1794, %v1793
        %v1807 = vpack.c.b16 %v1796, %v1795
        %v1808 = vpack.c.b16 %v1798, %v1797
        %v1809 = vpack.c.b16 %v1800, %v1799
        %v1810 = vpack.c.b16 %v1802, %v1801
        %1819 = vmatprep.subr.bf16.mxu0 0
        %1820 = vmatpush1.bf16.msra.mxu0 %v1803
        %1821 = vmatprep.subr.bf16.mxu0 0
        %1822 = vmatpush1.bf16.msra.mxu0 %v1804
        %1823 = vmatprep.subr.bf16.mxu0 0
        %1824 = vmatpush1.bf16.msra.mxu0 %v1805
        %1825 = vmatprep.subr.bf16.mxu0 0
        %1826 = vmatpush1.bf16.msra.mxu0 %v1806
        %1827 = vmatprep.subr.bf16.mxu0 0
        %1828 = vmatpush1.bf16.msra.mxu0 %v1807
        %1829 = vmatprep.subr.bf16.mxu0 0
        %1830 = vmatpush1.bf16.msra.mxu0 %v1808
        %1831 = vmatprep.subr.bf16.mxu0 0
        %1832 = vmatpush1.bf16.msra.mxu0 %v1809
        %1833 = vmatprep.subr.bf16.mxu0 0
        %1834 = vmatpush1.bf16.msra.mxu0 %v1810
        %1835 = vmatprep.subr.bf16.mxu0 0
        %1836 = vmatpush1.bf16.msra.mxu0 0
        %1837 = vmatprep.subr.bf16.mxu0 0
        %1838 = vmatpush1.bf16.msra.mxu0 0
        %1839 = vmatprep.subr.bf16.mxu0 0
        %1840 = vmatpush1.bf16.msra.mxu0 0
        %1841 = vmatprep.subr.bf16.mxu0 0
        %1842 = vmatpush1.bf16.msra.mxu0 0
        %1843 = vmatprep.subr.bf16.mxu0 0
        %1844 = vmatpush1.bf16.msra.mxu0 0
        %1845 = vmatprep.subr.bf16.mxu0 0
        %1846 = vmatpush1.bf16.msra.mxu0 0
        %1847 = vmatprep.subr.bf16.mxu0 0
        %1848 = vmatpush1.bf16.msra.mxu0 0
        %1849 = vmatprep.subr.bf16.mxu0 0
        %1850 = vmatpush1.bf16.msra.mxu0 0
        %1851 = vmatprep.mubr.bf16.mxu0 0
        %1852 = vmatmul.mubr.bf16.gmra.mrb[0].mxu0 %v1650
        %v1853 = vpop.f32.mrb[0].mxu0
        %v1854 = vadd.f32 %v1766, %v1853
        %v1855 = vpop.f32.mrb[0].mxu0
        %v1856 = vpop.f32.mrb[0].mxu0
        %v1857 = vpop.f32.mrb[0].mxu0
        %1858 = vdwg.mxu0
        %v1859 = vld [vmem:[%s5] sm:$0x1]
        %v1860 = vadd.f32 %v1854, %v1859
        %1861 = vst [vmem:[%s675] sm:$0x1] %v1860
        %s1862 = sand.u32 %s375, 1
        %s1863 = scalar_lea.sflag [#allocation4], %s1862
        %s1864 = sand.u32 %s375, 1
        %s1865 = scalar_lea.vmem [#allocation20], %s1864
        // Predicated region
        $region125: #{tpu_custom_call.1} parent=79 // pred_check
          %p1866 = pneg %p385
        $region126: #{tpu_custom_call.1} parent=79 // pred_check_branch
          %1868 = sbr.rel (%p1866) target = $region128
        $region127: #{tpu_custom_call.1} parent=79 // pred_region
          %s1870 = ssub.s32 16, 16
          %1871 = vsyncadd %s1863, %s1870
          %s1872 = smul.addr %s37, 16
          %s1873 = scalar_lea.hbm %s15, %s1872
          %s1875 = sshll.u32 %s1865, 4
          %s1876 = int_to_ptr.vmem [resolvable:$true] %s1875
          %1878 = dma.vmem_to_hbm [thread:$0]  %s1876, 16, %s1873, %s1863
        $region128: #{tpu_custom_call.1} parent=79 // pred_fallthru
          _
      $region80: #{tpu_custom_call.1} parent=5 // pred_fallthru
        _
      %p1879 = scmp.le.s32.totalorder 2, %s32
      // Predicated region
      $region129: #{tpu_custom_call.1} parent=5 // pred_check
        %p1880 = pneg %p1879
      $region130: #{tpu_custom_call.1} parent=5 // pred_check_branch
        %1882 = sbr.rel (%p1880) target = $region132
      $region131: #{tpu_custom_call.1} parent=5 // pred_region
        %s1883 = ssub.s32 %s32, 2
        // Predicated region
        $region133: #{tpu_custom_call.1} parent=131 // pred_check
          %p1884 = pneg %p391
        $region134: #{tpu_custom_call.1} parent=131 // pred_check_branch
          %1886 = sbr.rel (%p1884) target = $region136
        $region135: #{tpu_custom_call.1} parent=131 // pred_region
          %s1887 = sand.u32 %s376, 1
          %s1888 = scalar_lea.sflag [#allocation4], %s1887
          %s1889 = sand.u32 %s376, 1
          %s1890 = scalar_lea.vmem [#allocation20], %s1889
          %1891 = dma.done %s1888, 16
        $region136: #{tpu_custom_call.1} parent=131 // pred_fallthru
          _
      $region132: #{tpu_custom_call.1} parent=5 // pred_fallthru
        _
    $region6: #{tpu_custom_call.1} parent=1 // loop_footer
      %s36 = sadd.s32 1, %s32
    $region7: #{tpu_custom_call.1} parent=1 // loop_footer_branch
      %31 = sbr.rel target = $region3
    $region8: #{tpu_custom_call.1} parent=1 // loop_exit
      _
    %1892 = vsyncpa [#allocation3], 1
    %s1893 = scalar_lea.sflag [#allocation3], 1
    %1894 = vsyncpa %s1893, 1
    %1895 = vsyncpa [#allocation6], 1
    %1896 = vsyncpa [#allocation9], 1
    %1897 = vsyncpa [#allocation12], 1
    %1898 = vsyncpa [#allocation15], 1
    %1899 = vsyncpa [#allocation18], 1
    %1900 = vsyncpa [#allocation4], 1
    %s1901 = scalar_lea.sflag [#allocation4], 1
    %1902 = vsyncpa %s1901, 1

</llo_original>
